<compile_context>
chip_gen: v6e
topology: v6e:2x2x1
jax: 0.10.0
libtpu: 0.0.40
codegen_flags: <defaults>
</compile_context>

<pallas_src>
import functools
import math

import jax
import jax.numpy as jnp
from jax.experimental import pallas as pl
from jax.experimental.pallas import tpu as pltpu


def _largest_divisor_at_most(n, cap, multiple_of=1):
    cap = max(1, min(n, int(cap)))
    for d in range(cap, 0, -1):
        if n % d == 0 and d % multiple_of == 0:
            return d
    return None


def _vmem_limit_bytes():
    cap = 64 * 1024 * 1024                      # conservative fallback = v7x physical VMEM
    try:
        cap = int(pltpu.get_tpu_info().vmem_capacity_bytes)
    except Exception:
        pass
    # leave ~25% headroom for compiler-internal scratch / extra double buffers:
    #   v7x  (64 MiB physical)  -> 48 MiB scoped limit
    #   v5e/v6e (128 MiB)       -> 96 MiB scoped limit
    return (cap * 3) // 4


def _bf16_transcendentals_ok():
    # bf16 EUP exists on v6e / v7x; v5e (and older) keep the f32 exp path.
    try:
        kind = jax.devices()[0].device_kind.lower()
    except Exception:
        return False
    return ("v6" in kind) or ("v7" in kind)


def _pick_tq(S, S2, C, D, Dp, tb, vmem_budget):
    """Generation-aware query-tile size: largest divisor of S whose live set fits the budget."""
    fixed = (tb * S * Dp * 2                      # x_sc scratch (bf16 K/V cache)
             + tb * Dp * max(S2, 128) * 2         # espdT_sc scratch (bf16, lane-padded)
             + 2 * tb * S * D * 2                 # src block (bf16, double-buffered)
             + 2 * tb * C * S2 * 2                # spd block (bf16, double-buffered)
             + D * Dp * 2 + Dp * 4 + Dp * C * 2 + Dp * 4)   # single-buffered weights / biases
    per_row = tb * ((S + S2) * (4 + 2 + 2)        # f32 scores + bf16 exp copy + int8 masks x2
                    + Dp * (4 * 2 + 4 * 2))       # int32 out (x2 buffers) + f32 code/mix temps
    cap_rows = (vmem_budget - fixed) // max(per_row, 1)
    if cap_rows >= S:
        return S
    cap_rows = max(8, int(cap_rows))
    for m in (32, 8, 1):                          # prefer int8-mask-friendly multiples of 32
        t = _largest_divisor_at_most(S, cap_rows, multiple_of=m)
        if t is not None:
            return t
    return S


def cross_attention_kernel(src_ref, spd_ref, smask_ref, xmask_ref,
                           we2_ref, be2_ref, wspdT_ref, bspdT_ref,
                           out_ref, x_sc, espdT_sc,
                           *, scale, n_rows, use_bf16_exp):
    """Grid = (B // TB, S // TQ); batch axis parallel, query axis sequential.

    src_ref   : (TB, S, D)   bf16  raw src features (constant over the query axis)
    spd_ref   : (TB, C, S2)  bf16  obd_spd in native NCT layout
    smask_ref : (TB, TQ, S)  int8  self-attention mask tile
    xmask_ref : (TB, TQ, S2) int8  cross-attention mask tile
    we2_ref   : (D, Dp)  bf16  folded src_embed weight (we@we), feature dim zero-padded
    be2_ref   : (1, Dp)  f32   folded src_embed bias   (be@we+be), zero-padded
    wspdT_ref : (Dp, C)  bf16  enc_extra_embed weight, pre-transposed + zero-padded
    bspdT_ref : (Dp, 1)  f32   enc_extra_embed bias,   pre-transposed + zero-padded
    out_ref   : (TB, TQ, Dp) int32  embedding-row indices of (code + mix)
    x_sc      : (TB, S, Dp)  bf16  scratch: embedded src (self-attn K/V), persists over q steps
    espdT_sc  : (TB, Dp, S2) bf16  scratch: embedded obd_spd (cross-attn K/V, transposed layout)
    """
    tb, s, d = src_ref.shape
    dp = we2_ref.shape[1]
    tq = smask_ref.shape[1]
    qi = pl.program_id(1)

    # ---- per-batch-block setup (q == 0): embed K/V once, cache in bf16 VMEM scratch ----
    @pl.when(qi == 0)
    def _():
        # folded src_embed(src_embed(src)): one (TB*S, D) x (D, Dp) matmul, f32 accumulation
        x = jnp.dot(src_ref[...].reshape(tb * s, d), we2_ref[...],
                    preferred_element_type=jnp.float32) + be2_ref[...]
        x_sc[...] = x.reshape(tb, s, dp).astype(jnp.bfloat16)
        # enc_extra_embed on native layout: W^T (Dp,C) @ spd_b (C,S2) -> espd^T; no transposes
        for b in range(tb):          # static unroll; tb kept small by the wrapper
            e = jnp.dot(wspdT_ref[...], spd_ref[b],
                        preferred_element_type=jnp.float32) + bspdT_ref[...]
            espdT_sc[b] = e.astype(jnp.bfloat16)

    start = pl.multiple_of(qi * tq, tq)
    xq = x_sc[:, pl.ds(start, tq), :]      # (TB, TQ, Dp) bf16 queries
    xk = x_sc[...]                         # (TB, S,  Dp) bf16 self-attn keys/values
    espd_t = espdT_sc[...]                 # (TB, Dp, S2) bf16 cross-attn keys/values (transposed)

    exp_dtype = jnp.bfloat16 if use_bf16_exp else jnp.float32
    neg_inf = jnp.float32(-1e9)

    def attend(scores, mask_i8, kv, pv_pattern):
        # 1/sqrt(D) folded into the exponent: softmax(s*c) == exp(c*(s - max)) / sum.
        sm = jnp.where(mask_i8 != 0, scores, neg_inf)            # int8 compare, no upcast
        m = jnp.max(sm, axis=-1, keepdims=True)
        e = jnp.exp(((sm - m) * scale).astype(exp_dtype))        # bf16 exp on v6e/v7x, f32 on v5e
        denom = jnp.sum(e.astype(jnp.float32), axis=-1, keepdims=True)
        o = jnp.einsum(pv_pattern, e.astype(jnp.bfloat16), kv,
                       preferred_element_type=jnp.float32)       # unnormalized PV, f32 acc
        return o * pl.reciprocal(denom, approx=True)             # normalize on the (TQ, Dp) output

    # --- self attention over embedded src -> "code" ---
    s_self = jnp.einsum('bqd,bkd->bqk', xq, xk, preferred_element_type=jnp.float32)
    code = attend(s_self, smask_ref[...], xk, 'bqk,bkd->bqd')

    # --- cross attention (src queries, obd-speed keys/values) -> "mix" ---
    s_x = jnp.einsum('bqd,bds->bqs', xq, espd_t, preferred_element_type=jnp.float32)
    mix = attend(s_x, xmask_ref[...], espd_t, 'bqs,bds->bqd')

    # self.out = nn.Embedding(2*D, 512) applied to (code + mix): emit the gather indices
    # directly as a lane-dense int32 tile (last dim Dp is a multiple of 128 -> unmasked vst).
    # TODO(synk): nn.Embedding on a float tensor is ill-typed in PyTorch; round-half-up + clip
    # to [0, 2*D-1] is an interpretation, not a bit-exact reference behavior.
    vals = code + mix
    out_ref[...] = jnp.clip(vals + 0.5, 0.0, jnp.float32(n_rows - 1)).astype(jnp.int32)


def init_params(key, d_model, c_spd, emb_dim=512):
    k1, k2, k3, k4, k5 = jax.random.split(key, 5)
    scale_e = 1.0 / math.sqrt(d_model)
    scale_s = 1.0 / math.sqrt(c_spd)
    return {
        "we": jax.random.normal(k1, (d_model, d_model), jnp.float32) * scale_e,
        "be": jax.random.normal(k2, (1, d_model), jnp.float32) * 0.01,
        "wspd": jax.random.normal(k3, (c_spd, d_model), jnp.float32) * scale_s,
        "bspd": jax.random.normal(k4, (1, d_model), jnp.float32) * 0.01,
        # self.out = nn.Embedding(encoder.size * 2, 512); encoder.size == d_model
        "out_table": jax.random.normal(k5, (2 * d_model, emb_dim), jnp.float32),
    }


def cross_attention_forward(src, obd_spd, src_mask, obd_enc_mask, params, *,
                            tb=None, tq=None, single_buffer_consts=True):
    B, S, D = src.shape
    _, C, S2 = obd_spd.shape
    Dp = ((D + 127) // 128) * 128          # lane-dense / MXU-friendly feature dim (zero-padded)

    # Fold the double src_embed (forward() embeds once, encode() embeds again):
    #   x = (src @ we + be) @ we + be = src @ (we @ we) + (be @ we + be)
    we, be = params["we"], params["be"]
    we2 = jnp.dot(we, we)
    be2 = jnp.dot(be, we) + be
    we2_p = jnp.zeros((D, Dp), jnp.bfloat16).at[:, :D].set(we2.astype(jnp.bfloat16))
    be2_p = jnp.zeros((1, Dp), jnp.float32).at[:, :D].set(be2.astype(jnp.float32))
    wspdT_p = jnp.zeros((Dp, C), jnp.bfloat16).at[:D, :].set(params["wspd"].T.astype(jnp.bfloat16))
    bspdT_p = jnp.zeros((Dp, 1), jnp.float32).at[:D, :].set(
        params["bspd"].reshape(D, 1).astype(jnp.float32))

    # bf16 activations (they are MXU operands anyway) -> half the DMA / resident VMEM;
    # int8 masks -> 4x less mask DMA than f32; obd_spd stays in native (B, C, S2) layout.
    src_b = src.astype(jnp.bfloat16)
    spd_b = obd_spd.astype(jnp.bfloat16)
    smask = src_mask.astype(jnp.int8)
    xmask = obd_enc_mask.astype(jnp.int8)

    vmem_limit = _vmem_limit_bytes()
    use_bf16_exp = _bf16_transcendentals_ok()

    # --- tiling: TB batch elements and TQ query rows per grid step ---
    if tb is None:
        if S >= 256:
            tb = 1                                   # tall M for the MXU, one batch per step
        else:
            cap = min(max(1, 256 // S), 8)           # ~256 rows/step, bounded static unroll
            if B >= 2:
                cap = min(cap, max(1, B // 2))       # keep >= 2 batch grid steps for megacore
            tb = _largest_divisor_at_most(B, cap) or 1
    if tq is None:
        tq = _pick_tq(S, S2, C, D, Dp, tb, vmem_limit)
    assert B % tb == 0, (B, tb)
    assert S % tq == 0 and (tq == S or tq % 8 == 0), (S, tq)

    grid = (B // tb, S // tq)

    def _const_spec(shape):
        zero_map = lambda b, q: (0,) * len(shape)
        if single_buffer_consts:
            # grid-invariant operand: one VMEM buffer is enough (the block never changes)
            return pl.BlockSpec(shape, zero_map, pipeline_mode=pl.Buffered(1))
        return pl.BlockSpec(shape, zero_map)

    in_specs = [
        pl.BlockSpec((tb, S, D), lambda b, q: (b, 0, 0)),     # src (constant over q -> no re-DMA)
        pl.BlockSpec((tb, C, S2), lambda b, q: (b, 0, 0)),    # obd_spd, native NCT layout
        pl.BlockSpec((tb, tq, S), lambda b, q: (b, q, 0)),    # self-attn mask tile (int8)
        pl.BlockSpec((tb, tq, S2), lambda b, q: (b, q, 0)),   # cross-attn mask tile (int8)
        _const_spec((D, Dp)),                                 # folded src_embed weight (bf16)
        _const_spec((1, Dp)),                                 # folded src_embed bias
        _const_spec((Dp, C)),                                 # enc_extra_embed weight^T (bf16)
        _const_spec((Dp, 1)),                                 # enc_extra_embed bias^T
    ]

    flops = 2 * B * (S * D * Dp + C * S2 * Dp + 2 * S * S * Dp + 2 * S * S2 * Dp)
    transcendentals = B * S * (S + S2)
    bytes_accessed = (src_b.size * 2 + spd_b.size * 2 + smask.size + xmask.size
                      + we2_p.size * 2 + wspdT_p.size * 2 + be2_p.size * 4 + bspdT_p.size * 4
                      + B * S * Dp * 4)

    kernel = functools.partial(cross_attention_kernel,
                               scale=1.0 / math.sqrt(D),
                               n_rows=2 * D,
                               use_bf16_exp=use_bf16_exp)

    idx_padded = pl.pallas_call(
        kernel,
        out_shape=jax.ShapeDtypeStruct((B, S, Dp), jnp.int32),
        grid_spec=pltpu.PrefetchScalarGridSpec(
            num_scalar_prefetch=0,
            grid=grid,
            in_specs=in_specs,
            out_specs=pl.BlockSpec((tb, tq, Dp), lambda b, q: (b, q, 0)),
            scratch_shapes=[
                pltpu.VMEM((tb, S, Dp), jnp.bfloat16),    # embedded src (self-attn K/V)
                pltpu.VMEM((tb, Dp, S2), jnp.bfloat16),   # embedded obd_spd (cross K/V, transposed)
            ],
        ),
        compiler_params=pltpu.CompilerParams(
            dimension_semantics=("parallel", "arbitrary"),
            vmem_limit_bytes=vmem_limit,
        ),
        cost_estimate=pl.CostEstimate(
            flops=flops, transcendentals=transcendentals, bytes_accessed=bytes_accessed),
    )(src_b, spd_b, smask, xmask, we2_p, be2_p, wspdT_p, bspdT_p)

    # self.out(code + mix): gather the 512-wide embedding rows for the in-kernel indices.
    idx = idx_padded[:, :, :D]                       # drop the zero-padded feature columns
    return jnp.take(params["out_table"], idx, axis=0)   # (B, S, D, 512)


if __name__ == "__main__":
    B, S, D = 4, 8, 32          # batch, src seq len, d_model (encoder.size = D)
    C, S2 = 4, 16               # obd_spd channels, obd_spd seq len

    key = jax.random.PRNGKey(0)
    kp, k1, k2 = jax.random.split(key, 3)

    params = init_params(kp, d_model=D, c_spd=C, emb_dim=512)

    src = jax.random.normal(k1, (B, S, D), jnp.float32)
    obd_spd = jax.random.normal(k2, (B, C, S2), jnp.float32)
    # masks as int8: causal self-attention mask, full cross-attention mask (1 = keep, 0 = mask)
    src_mask = jnp.broadcast_to(jnp.tril(jnp.ones((S, S), jnp.int8)), (B, S, S))
    obd_enc_mask = jnp.ones((B, S, S2), jnp.int8)

    def run(single_buffer_consts):
        fwd = jax.jit(functools.partial(cross_attention_forward,
                                        single_buffer_consts=single_buffer_consts))
        return jax.block_until_ready(fwd(src, obd_spd, src_mask, obd_enc_mask, params))

    try:
        out = run(True)
    except Exception:
        # Fallback if this jax build rejects single-buffered (pl.Buffered(1)) constant operands.
        out = run(False)

    assert out.shape == (B, S, D, 512), out.shape
    assert bool(jnp.all(jnp.isfinite(out)))
    print("KERNEL_OK")
</pallas_src>

<mosaic_0001>
module attributes {stable_mosaic.version = 11 : i64} {
  func.func @cross_attention_kernel(%arg0: i32, %arg1: i32, %arg2: memref<2x8x32xbf16, #tpu.memory_space<vmem>>, %arg3: memref<2x4x16xbf16, #tpu.memory_space<vmem>>, %arg4: memref<2x8x8xi8, #tpu.memory_space<vmem>>, %arg5: memref<2x8x16xi8, #tpu.memory_space<vmem>>, %arg6: memref<32x128xbf16, #tpu.memory_space<vmem>>, %arg7: memref<1x128xf32, #tpu.memory_space<vmem>>, %arg8: memref<128x4xbf16, #tpu.memory_space<vmem>>, %arg9: memref<128x1xf32, #tpu.memory_space<vmem>>, %arg10: memref<2x8x128xi32, #tpu.memory_space<vmem>>, %arg11: memref<2x8x128xbf16, #tpu.memory_space<vmem>>, %arg12: memref<2x128x16xbf16, #tpu.memory_space<vmem>>) attributes {dimension_semantics = [#tpu.dimension_semantics<parallel>, #tpu.dimension_semantics<arbitrary>], iteration_bounds = array<i64: 2, 1>, scalar_prefetch = 0 : i64, scratch_operands = 2 : i64, tpu.core_type = #tpu.core_type<tc>, window_params = [{transform_indices = @transform_0, window_bounds = array<i64: 2, 8, 32>}, {transform_indices = @transform_1, window_bounds = array<i64: 2, 4, 16>}, {transform_indices = @transform_2, window_bounds = array<i64: 2, 8, 8>}, {transform_indices = @transform_3, window_bounds = array<i64: 2, 8, 16>}, {pipeline_mode = #tpu.pipeline_mode<synchronous>, transform_indices = @transform_4, window_bounds = array<i64: 32, 128>}, {pipeline_mode = #tpu.pipeline_mode<synchronous>, transform_indices = @transform_5, window_bounds = array<i64: 1, 128>}, {pipeline_mode = #tpu.pipeline_mode<synchronous>, transform_indices = @transform_6, window_bounds = array<i64: 128, 4>}, {pipeline_mode = #tpu.pipeline_mode<synchronous>, transform_indices = @transform_7, window_bounds = array<i64: 128, 1>}, {transform_indices = @transform_8, window_bounds = array<i64: 2, 8, 128>}]} {
    %c0_i32 = arith.constant 0 : i32
    %0 = arith.cmpi eq, %arg1, %c0_i32 : i32
    %1 = arith.extui %0 : i1 to i32
    %c0_i32_0 = arith.constant 0 : i32
    %2 = arith.cmpi ne, %1, %c0_i32_0 : i32
    scf.if %2 {
      %c0_32 = arith.constant 0 : index
      %c0_33 = arith.constant 0 : index
      %c0_34 = arith.constant 0 : index
      %58 = vector.load %arg2[%c0_32, %c0_33, %c0_34] : memref<2x8x32xbf16, #tpu.memory_space<vmem>>, vector<2x8x32xbf16>
      %59 = vector.shape_cast %58 : vector<2x8x32xbf16> to vector<16x32xbf16>
      %c0_35 = arith.constant 0 : index
      %c0_36 = arith.constant 0 : index
      %60 = vector.load %arg6[%c0_35, %c0_36] : memref<32x128xbf16, #tpu.memory_space<vmem>>, vector<32x128xbf16>
      %cst_37 = arith.constant dense<0.000000e+00> : vector<16x128xf32>
      %61 = tpu.matmul %59, %60, %cst_37 {dimension_numbers = #tpu.dot_dimension_numbers<[1], [0], [0], [1], [0, 0, 1, 1], [], []>} : vector<16x32xbf16>, vector<32x128xbf16>, vector<16x128xf32> -> vector<16x128xf32>
      %c0_38 = arith.constant 0 : index
      %c0_39 = arith.constant 0 : index
      %62 = vector.load %arg7[%c0_38, %c0_39] : memref<1x128xf32, #tpu.memory_space<vmem>>, vector<1x128xf32>
      %63 = vector.broadcast %62 : vector<1x128xf32> to vector<16x128xf32>
      %64 = arith.addf %61, %63 : vector<16x128xf32>
      %65 = vector.shape_cast %64 : vector<16x128xf32> to vector<2x8x128xf32>
      %66 = arith.truncf %65 : vector<2x8x128xf32> to vector<2x8x128xbf16>
      %c0_40 = arith.constant 0 : index
      %c0_41 = arith.constant 0 : index
      %c0_42 = arith.constant 0 : index
      %67 = vector.load %arg11[%c0_40, %c0_41, %c0_42] : memref<2x8x128xbf16, #tpu.memory_space<vmem>>, vector<2x8x128xbf16>
      tpu.vector_store %arg11[%c0_40, %c0_41, %c0_42], %66 {strides = array<i32>} : memref<2x8x128xbf16, #tpu.memory_space<vmem>>, vector<2x8x128xbf16>,
      %c0_43 = arith.constant 0 : index
      %c0_44 = arith.constant 0 : index
      %68 = vector.load %arg8[%c0_43, %c0_44] : memref<128x4xbf16, #tpu.memory_space<vmem>>, vector<128x4xbf16>
      %c0_45 = arith.constant 0 : index
      %c0_46 = arith.constant 0 : index
      %c0_47 = arith.constant 0 : index
      %69 = vector.load %arg3[%c0_45, %c0_46, %c0_47] : memref<2x4x16xbf16, #tpu.memory_space<vmem>>, vector<1x4x16xbf16>
      %70 = vector.shape_cast %69 : vector<1x4x16xbf16> to vector<4x16xbf16>
      %cst_48 = arith.constant dense<0.000000e+00> : vector<128x16xf32>
      %71 = tpu.matmul %68, %70, %cst_48 {dimension_numbers = #tpu.dot_dimension_numbers<[1], [0], [0], [1], [0, 0, 1, 1], [], []>} : vector<128x4xbf16>, vector<4x16xbf16>, vector<128x16xf32> -> vector<128x16xf32>
      %c0_49 = arith.constant 0 : index
      %c0_50 = arith.constant 0 : index
      %72 = vector.load %arg9[%c0_49, %c0_50] : memref<128x1xf32, #tpu.memory_space<vmem>>, vector<128x1xf32>
      %73 = vector.broadcast %72 : vector<128x1xf32> to vector<128x16xf32>
      %74 = arith.addf %71, %73 : vector<128x16xf32>
      %75 = arith.truncf %74 : vector<128x16xf32> to vector<128x16xbf16>
      %c0_51 = arith.constant 0 : index
      %c0_52 = arith.constant 0 : index
      %c0_53 = arith.constant 0 : index
      %76 = vector.load %arg12[%c0_51, %c0_52, %c0_53] : memref<2x128x16xbf16, #tpu.memory_space<vmem>>, vector<1x128x16xbf16>
      %77 = vector.shape_cast %76 : vector<1x128x16xbf16> to vector<128x16xbf16>
      %78 = vector.shape_cast %75 : vector<128x16xbf16> to vector<1x128x16xbf16>
      tpu.vector_store %arg12[%c0_51, %c0_52, %c0_53], %78 {strides = array<i32>} : memref<2x128x16xbf16, #tpu.memory_space<vmem>>, vector<1x128x16xbf16>,
      %c0_54 = arith.constant 0 : index
      %c0_55 = arith.constant 0 : index
      %79 = vector.load %arg8[%c0_54, %c0_55] : memref<128x4xbf16, #tpu.memory_space<vmem>>, vector<128x4xbf16>
      %c1 = arith.constant 1 : index
      %c0_56 = arith.constant 0 : index
      %c0_57 = arith.constant 0 : index
      %80 = vector.load %arg3[%c1, %c0_56, %c0_57] : memref<2x4x16xbf16, #tpu.memory_space<vmem>>, vector<1x4x16xbf16>
      %81 = vector.shape_cast %80 : vector<1x4x16xbf16> to vector<4x16xbf16>
      %cst_58 = arith.constant dense<0.000000e+00> : vector<128x16xf32>
      %82 = tpu.matmul %79, %81, %cst_58 {dimension_numbers = #tpu.dot_dimension_numbers<[1], [0], [0], [1], [0, 0, 1, 1], [], []>} : vector<128x4xbf16>, vector<4x16xbf16>, vector<128x16xf32> -> vector<128x16xf32>
      %c0_59 = arith.constant 0 : index
      %c0_60 = arith.constant 0 : index
      %83 = vector.load %arg9[%c0_59, %c0_60] : memref<128x1xf32, #tpu.memory_space<vmem>>, vector<128x1xf32>
      %84 = vector.broadcast %83 : vector<128x1xf32> to vector<128x16xf32>
      %85 = arith.addf %82, %84 : vector<128x16xf32>
      %86 = arith.truncf %85 : vector<128x16xf32> to vector<128x16xbf16>
      %c1_61 = arith.constant 1 : index
      %c0_62 = arith.constant 0 : index
      %c0_63 = arith.constant 0 : index
      %87 = vector.load %arg12[%c1_61, %c0_62, %c0_63] : memref<2x128x16xbf16, #tpu.memory_space<vmem>>, vector<1x128x16xbf16>
      %88 = vector.shape_cast %87 : vector<1x128x16xbf16> to vector<128x16xbf16>
      %89 = vector.shape_cast %86 : vector<128x16xbf16> to vector<1x128x16xbf16>
      tpu.vector_store %arg12[%c1_61, %c0_62, %c0_63], %89 {strides = array<i32>} : memref<2x128x16xbf16, #tpu.memory_space<vmem>>, vector<1x128x16xbf16>,
    } else {
    }
    %c8_i32 = arith.constant 8 : i32
    %3 = arith.muli %arg1, %c8_i32 : i32
    %4 = tpu.assume_multiple %3, 8 : i32
    %c0 = arith.constant 0 : index
    %5 = arith.index_cast %4 : i32 to index
    %c0_1 = arith.constant 0 : index
    %6 = vector.load %arg11[%c0, %5, %c0_1] : memref<2x8x128xbf16, #tpu.memory_space<vmem>>, vector<2x8x128xbf16>
    %c0_2 = arith.constant 0 : index
    %c0_3 = arith.constant 0 : index
    %c0_4 = arith.constant 0 : index
    %7 = vector.load %arg11[%c0_2, %c0_3, %c0_4] : memref<2x8x128xbf16, #tpu.memory_space<vmem>>, vector<2x8x128xbf16>
    %c0_5 = arith.constant 0 : index
    %c0_6 = arith.constant 0 : index
    %c0_7 = arith.constant 0 : index
    %8 = vector.load %arg12[%c0_5, %c0_6, %c0_7] : memref<2x128x16xbf16, #tpu.memory_space<vmem>>, vector<2x128x16xbf16>
    "tpu.trace_start"() <{level = 10 : i32, message = "bqd,bkd->bqk"}> : () -> ()
    %cst = arith.constant dense<0.000000e+00> : vector<2x8x8xf32>
    %9 = tpu.matmul %6, %7, %cst {dimension_numbers = #tpu.dot_dimension_numbers<[2], [2], [1], [1], [0, 0, 0, 1, 1, 1], [0], [0]>} : vector<2x8x128xbf16>, vector<2x8x128xbf16>, vector<2x8x8xf32> -> vector<2x8x8xf32>
    "tpu.trace_stop"() : () -> ()
    %c0_8 = arith.constant 0 : index
    %c0_9 = arith.constant 0 : index
    %c0_10 = arith.constant 0 : index
    %10 = vector.load %arg4[%c0_8, %c0_9, %c0_10] : memref<2x8x8xi8, #tpu.memory_space<vmem>>, vector<2x8x8xi8>
    %c0_i8 = arith.constant 0 : i8
    %11 = vector.broadcast %c0_i8 : i8 to vector<2x8x8xi8>
    %12 = arith.cmpi ne, %10, %11 : vector<2x8x8xi8>
    %cst_11 = arith.constant -1.000000e+09 : f32
    %13 = vector.broadcast %cst_11 : f32 to vector<2x8x8xf32>
    %14 = arith.select %12, %9, %13 : vector<2x8x8xi1>, vector<2x8x8xf32>
    %cst_12 = arith.constant dense<0xFF800000> : vector<2x8xf32>
    %15 = vector.multi_reduction <maximumf>, %14, %cst_12 [2] : vector<2x8x8xf32> to vector<2x8xf32>
    %16 = vector.shape_cast %15 : vector<2x8xf32> to vector<2x8x1xf32>
    %17 = vector.broadcast %16 : vector<2x8x1xf32> to vector<2x8x8xf32>
    %18 = arith.subf %14, %17 : vector<2x8x8xf32>
    %cst_13 = arith.constant 0.176776692 : f32
    %19 = vector.broadcast %cst_13 : f32 to vector<2x8x8xf32>
    %20 = arith.mulf %18, %19 : vector<2x8x8xf32>
    %21 = math.exp %20 : vector<2x8x8xf32>
    %cst_14 = arith.constant dense<0.000000e+00> : vector<2x8xf32>
    %22 = vector.multi_reduction <add>, %21, %cst_14 [2] : vector<2x8x8xf32> to vector<2x8xf32>
    %23 = vector.shape_cast %22 : vector<2x8xf32> to vector<2x8x1xf32>
    %24 = arith.truncf %21 : vector<2x8x8xf32> to vector<2x8x8xbf16>
    "tpu.trace_start"() <{level = 10 : i32, message = "bqk,bkd->bqd"}> : () -> ()
    %cst_15 = arith.constant dense<0.000000e+00> : vector<2x8x128xf32>
    %25 = tpu.matmul %24, %7, %cst_15 {dimension_numbers = #tpu.dot_dimension_numbers<[2], [1], [1], [2], [0, 0, 0, 1, 1, 2], [0], [0]>} : vector<2x8x8xbf16>, vector<2x8x128xbf16>, vector<2x8x128xf32> -> vector<2x8x128xf32>
    "tpu.trace_stop"() : () -> ()
    %26 = tpu.reciprocal %23 {approx = true} : vector<2x8x1xf32> -> vector<2x8x1xf32>
    %27 = vector.broadcast %26 : vector<2x8x1xf32> to vector<2x8x128xf32>
    %28 = arith.mulf %25, %27 : vector<2x8x128xf32>
    "tpu.trace_start"() <{level = 10 : i32, message = "bqd,bds->bqs"}> : () -> ()
    %cst_16 = arith.constant dense<0.000000e+00> : vector<2x8x16xf32>
    %29 = tpu.matmul %6, %8, %cst_16 {dimension_numbers = #tpu.dot_dimension_numbers<[2], [1], [1], [2], [0, 0, 0, 1, 1, 2], [0], [0]>} : vector<2x8x128xbf16>, vector<2x128x16xbf16>, vector<2x8x16xf32> -> vector<2x8x16xf32>
    "tpu.trace_stop"() : () -> ()
    %c0_17 = arith.constant 0 : index
    %c0_18 = arith.constant 0 : index
    %c0_19 = arith.constant 0 : index
    %30 = vector.load %arg5[%c0_17, %c0_18, %c0_19] : memref<2x8x16xi8, #tpu.memory_space<vmem>>, vector<2x8x16xi8>
    %c0_i8_20 = arith.constant 0 : i8
    %31 = vector.broadcast %c0_i8_20 : i8 to vector<2x8x16xi8>
    %32 = arith.cmpi ne, %30, %31 : vector<2x8x16xi8>
    %cst_21 = arith.constant -1.000000e+09 : f32
    %33 = vector.broadcast %cst_21 : f32 to vector<2x8x16xf32>
    %34 = arith.select %32, %29, %33 : vector<2x8x16xi1>, vector<2x8x16xf32>
    %cst_22 = arith.constant dense<0xFF800000> : vector<2x8xf32>
    %35 = vector.multi_reduction <maximumf>, %34, %cst_22 [2] : vector<2x8x16xf32> to vector<2x8xf32>
    %36 = vector.shape_cast %35 : vector<2x8xf32> to vector<2x8x1xf32>
    %37 = vector.broadcast %36 : vector<2x8x1xf32> to vector<2x8x16xf32>
    %38 = arith.subf %34, %37 : vector<2x8x16xf32>
    %cst_23 = arith.constant 0.176776692 : f32
    %39 = vector.broadcast %cst_23 : f32 to vector<2x8x16xf32>
    %40 = arith.mulf %38, %39 : vector<2x8x16xf32>
    %41 = math.exp %40 : vector<2x8x16xf32>
    %cst_24 = arith.constant dense<0.000000e+00> : vector<2x8xf32>
    %42 = vector.multi_reduction <add>, %41, %cst_24 [2] : vector<2x8x16xf32> to vector<2x8xf32>
    %43 = vector.shape_cast %42 : vector<2x8xf32> to vector<2x8x1xf32>
    %44 = arith.truncf %41 : vector<2x8x16xf32> to vector<2x8x16xbf16>
    "tpu.trace_start"() <{level = 10 : i32, message = "bqs,bds->bqd"}> : () -> ()
    %cst_25 = arith.constant dense<0.000000e+00> : vector<2x8x128xf32>
    %45 = tpu.matmul %44, %8, %cst_25 {dimension_numbers = #tpu.dot_dimension_numbers<[2], [2], [1], [1], [0, 0, 0, 1, 1, 1], [0], [0]>} : vector<2x8x16xbf16>, vector<2x128x16xbf16>, vector<2x8x128xf32> -> vector<2x8x128xf32>
    "tpu.trace_stop"() : () -> ()
    %46 = tpu.reciprocal %43 {approx = true} : vector<2x8x1xf32> -> vector<2x8x1xf32>
    %47 = vector.broadcast %46 : vector<2x8x1xf32> to vector<2x8x128xf32>
    %48 = arith.mulf %45, %47 : vector<2x8x128xf32>
    %49 = arith.addf %28, %48 : vector<2x8x128xf32>
    %cst_26 = arith.constant 5.000000e-01 : f32
    %50 = vector.broadcast %cst_26 : f32 to vector<2x8x128xf32>
    %51 = arith.addf %49, %50 : vector<2x8x128xf32>
    %cst_27 = arith.constant 0.000000e+00 : f32
    %cst_28 = arith.constant 6.300000e+01 : f32
    %52 = vector.broadcast %cst_27 : f32 to vector<2x8x128xf32>
    %53 = arith.maximumf %52, %51 : vector<2x8x128xf32>
    %54 = vector.broadcast %cst_28 : f32 to vector<2x8x128xf32>
    %55 = arith.minimumf %54, %53 : vector<2x8x128xf32>
    %56 = arith.fptosi %55 : vector<2x8x128xf32> to vector<2x8x128xi32>
    %c0_29 = arith.constant 0 : index
    %c0_30 = arith.constant 0 : index
    %c0_31 = arith.constant 0 : index
    %57 = vector.load %arg10[%c0_29, %c0_30, %c0_31] : memref<2x8x128xi32, #tpu.memory_space<vmem>>, vector<2x8x128xi32>
    tpu.vector_store %arg10[%c0_29, %c0_30, %c0_31], %56 {strides = array<i32>} : memref<2x8x128xi32, #tpu.memory_space<vmem>>, vector<2x8x128xi32>,
    return
  }
  func.func @transform_0(%arg0: i32, %arg1: i32) -> (i32, i32, i32) {
    %c0_i32 = arith.constant 0 : i32
    %c0_i32_0 = arith.constant 0 : i32
    %c0_i32_1 = arith.constant 0 : i32
    return %arg0, %c0_i32, %c0_i32_0 : i32, i32, i32
  }
  func.func @transform_1(%arg0: i32, %arg1: i32) -> (i32, i32, i32) {
    %c0_i32 = arith.constant 0 : i32
    %c0_i32_0 = arith.constant 0 : i32
    %c0_i32_1 = arith.constant 0 : i32
    return %arg0, %c0_i32, %c0_i32_0 : i32, i32, i32
  }
  func.func @transform_2(%arg0: i32, %arg1: i32) -> (i32, i32, i32) {
    %c0_i32 = arith.constant 0 : i32
    %c0_i32_0 = arith.constant 0 : i32
    return %arg0, %arg1, %c0_i32 : i32, i32, i32
  }
  func.func @transform_3(%arg0: i32, %arg1: i32) -> (i32, i32, i32) {
    %c0_i32 = arith.constant 0 : i32
    %c0_i32_0 = arith.constant 0 : i32
    return %arg0, %arg1, %c0_i32 : i32, i32, i32
  }
  func.func @transform_4(%arg0: i32, %arg1: i32) -> (i32, i32) {
    %c0_i32 = arith.constant 0 : i32
    %c0_i32_0 = arith.constant 0 : i32
    %c0_i32_1 = arith.constant 0 : i32
    return %c0_i32, %c0_i32_0 : i32, i32
  }
  func.func @transform_5(%arg0: i32, %arg1: i32) -> (i32, i32) {
    %c0_i32 = arith.constant 0 : i32
    %c0_i32_0 = arith.constant 0 : i32
    %c0_i32_1 = arith.constant 0 : i32
    return %c0_i32, %c0_i32_0 : i32, i32
  }
  func.func @transform_6(%arg0: i32, %arg1: i32) -> (i32, i32) {
    %c0_i32 = arith.constant 0 : i32
    %c0_i32_0 = arith.constant 0 : i32
    %c0_i32_1 = arith.constant 0 : i32
    return %c0_i32, %c0_i32_0 : i32, i32
  }
  func.func @transform_7(%arg0: i32, %arg1: i32) -> (i32, i32) {
    %c0_i32 = arith.constant 0 : i32
    %c0_i32_0 = arith.constant 0 : i32
    %c0_i32_1 = arith.constant 0 : i32
    return %c0_i32, %c0_i32_0 : i32, i32
  }
  func.func @transform_8(%arg0: i32, %arg1: i32) -> (i32, i32, i32) {
    %c0_i32 = arith.constant 0 : i32
    %c0_i32_0 = arith.constant 0 : i32
    return %arg0, %arg1, %c0_i32 : i32, i32, i32
  }
}

module attributes {stable_mosaic.version = 11 : i64} {
  func.func @cross_attention_kernel(%arg0: i32, %arg1: i32, %arg2: memref<2x8x32xbf16, #tpu.memory_space<vmem>>, %arg3: memref<2x4x16xbf16, #tpu.memory_space<vmem>>, %arg4: memref<2x8x8xi8, #tpu.memory_space<vmem>>, %arg5: memref<2x8x16xi8, #tpu.memory_space<vmem>>, %arg6: memref<32x128xbf16, #tpu.memory_space<vmem>>, %arg7: memref<1x128xf32, #tpu.memory_space<vmem>>, %arg8: memref<128x4xbf16, #tpu.memory_space<vmem>>, %arg9: memref<128x1xf32, #tpu.memory_space<vmem>>, %arg10: memref<2x8x128xi32, #tpu.memory_space<vmem>>, %arg11: memref<2x8x128xbf16, #tpu.memory_space<vmem>>, %arg12: memref<2x128x16xbf16, #tpu.memory_space<vmem>>) attributes {dimension_semantics = [#tpu.dimension_semantics<parallel>, #tpu.dimension_semantics<arbitrary>], iteration_bounds = array<i64: 2, 1>, scalar_prefetch = 0 : i64, scratch_operands = 2 : i64, tpu.core_type = #tpu.core_type<tc>, window_params = [{transform_indices = @transform_0, window_bounds = array<i64: 2, 8, 32>}, {transform_indices = @transform_1, window_bounds = array<i64: 2, 4, 16>}, {transform_indices = @transform_2, window_bounds = array<i64: 2, 8, 8>}, {transform_indices = @transform_3, window_bounds = array<i64: 2, 8, 16>}, {pipeline_mode = #tpu.pipeline_mode<synchronous>, transform_indices = @transform_4, window_bounds = array<i64: 32, 128>}, {pipeline_mode = #tpu.pipeline_mode<synchronous>, transform_indices = @transform_5, window_bounds = array<i64: 1, 128>}, {pipeline_mode = #tpu.pipeline_mode<synchronous>, transform_indices = @transform_6, window_bounds = array<i64: 128, 4>}, {pipeline_mode = #tpu.pipeline_mode<synchronous>, transform_indices = @transform_7, window_bounds = array<i64: 128, 1>}, {transform_indices = @transform_8, window_bounds = array<i64: 2, 8, 128>}]} {
    %c0_i32 = arith.constant 0 : i32
    %0 = arith.cmpi eq, %arg1, %c0_i32 : i32
    %1 = arith.extui %0 : i1 to i32
    %c0_i32_0 = arith.constant 0 : i32
    %2 = arith.cmpi ne, %1, %c0_i32_0 : i32
    scf.if %2 {
      %c0_32 = arith.constant 0 : index
      %c0_33 = arith.constant 0 : index
      %c0_34 = arith.constant 0 : index
      %58 = vector.load %arg2[%c0_32, %c0_33, %c0_34] : memref<2x8x32xbf16, #tpu.memory_space<vmem>>, vector<2x8x32xbf16>
      %59 = vector.shape_cast %58 : vector<2x8x32xbf16> to vector<16x32xbf16>
      %c0_35 = arith.constant 0 : index
      %c0_36 = arith.constant 0 : index
      %60 = vector.load %arg6[%c0_35, %c0_36] : memref<32x128xbf16, #tpu.memory_space<vmem>>, vector<32x128xbf16>
      %cst_37 = arith.constant dense<0.000000e+00> : vector<16x128xf32>
      %61 = tpu.matmul %59, %60, %cst_37 {dimension_numbers = #tpu.dot_dimension_numbers<[1], [0], [0], [1], [0, 0, 1, 1], [], []>} : vector<16x32xbf16>, vector<32x128xbf16>, vector<16x128xf32> -> vector<16x128xf32>
      %c0_38 = arith.constant 0 : index
      %c0_39 = arith.constant 0 : index
      %62 = vector.load %arg7[%c0_38, %c0_39] : memref<1x128xf32, #tpu.memory_space<vmem>>, vector<1x128xf32>
      %63 = vector.broadcast %62 : vector<1x128xf32> to vector<16x128xf32>
      %64 = arith.addf %61, %63 : vector<16x128xf32>
      %65 = vector.shape_cast %64 : vector<16x128xf32> to vector<2x8x128xf32>
      %66 = arith.truncf %65 : vector<2x8x128xf32> to vector<2x8x128xbf16>
      %c0_40 = arith.constant 0 : index
      %c0_41 = arith.constant 0 : index
      %c0_42 = arith.constant 0 : index
      %67 = vector.load %arg11[%c0_40, %c0_41, %c0_42] : memref<2x8x128xbf16, #tpu.memory_space<vmem>>, vector<2x8x128xbf16>
      tpu.vector_store %arg11[%c0_40, %c0_41, %c0_42], %66 {strides = array<i32>} : memref<2x8x128xbf16, #tpu.memory_space<vmem>>, vector<2x8x128xbf16>,
      %c0_43 = arith.constant 0 : index
      %c0_44 = arith.constant 0 : index
      %68 = vector.load %arg8[%c0_43, %c0_44] : memref<128x4xbf16, #tpu.memory_space<vmem>>, vector<128x4xbf16>
      %c0_45 = arith.constant 0 : index
      %c0_46 = arith.constant 0 : index
      %c0_47 = arith.constant 0 : index
      %69 = vector.load %arg3[%c0_45, %c0_46, %c0_47] : memref<2x4x16xbf16, #tpu.memory_space<vmem>>, vector<1x4x16xbf16>
      %70 = vector.shape_cast %69 : vector<1x4x16xbf16> to vector<4x16xbf16>
      %cst_48 = arith.constant dense<0.000000e+00> : vector<128x16xf32>
      %71 = tpu.matmul %68, %70, %cst_48 {dimension_numbers = #tpu.dot_dimension_numbers<[1], [0], [0], [1], [0, 0, 1, 1], [], []>} : vector<128x4xbf16>, vector<4x16xbf16>, vector<128x16xf32> -> vector<128x16xf32>
      %c0_49 = arith.constant 0 : index
      %c0_50 = arith.constant 0 : index
      %72 = vector.load %arg9[%c0_49, %c0_50] : memref<128x1xf32, #tpu.memory_space<vmem>>, vector<128x1xf32>
      %73 = vector.broadcast %72 : vector<128x1xf32> to vector<128x16xf32>
      %74 = arith.addf %71, %73 : vector<128x16xf32>
      %75 = arith.truncf %74 : vector<128x16xf32> to vector<128x16xbf16>
      %c0_51 = arith.constant 0 : index
      %c0_52 = arith.constant 0 : index
      %c0_53 = arith.constant 0 : index
      %76 = vector.load %arg12[%c0_51, %c0_52, %c0_53] : memref<2x128x16xbf16, #tpu.memory_space<vmem>>, vector<1x128x16xbf16>
      %77 = vector.shape_cast %76 : vector<1x128x16xbf16> to vector<128x16xbf16>
      %78 = vector.shape_cast %75 : vector<128x16xbf16> to vector<1x128x16xbf16>
      tpu.vector_store %arg12[%c0_51, %c0_52, %c0_53], %78 {strides = array<i32>} : memref<2x128x16xbf16, #tpu.memory_space<vmem>>, vector<1x128x16xbf16>,
      %c0_54 = arith.constant 0 : index
      %c0_55 = arith.constant 0 : index
      %79 = vector.load %arg8[%c0_54, %c0_55] : memref<128x4xbf16, #tpu.memory_space<vmem>>, vector<128x4xbf16>
      %c1 = arith.constant 1 : index
      %c0_56 = arith.constant 0 : index
      %c0_57 = arith.constant 0 : index
      %80 = vector.load %arg3[%c1, %c0_56, %c0_57] : memref<2x4x16xbf16, #tpu.memory_space<vmem>>, vector<1x4x16xbf16>
      %81 = vector.shape_cast %80 : vector<1x4x16xbf16> to vector<4x16xbf16>
      %cst_58 = arith.constant dense<0.000000e+00> : vector<128x16xf32>
      %82 = tpu.matmul %79, %81, %cst_58 {dimension_numbers = #tpu.dot_dimension_numbers<[1], [0], [0], [1], [0, 0, 1, 1], [], []>} : vector<128x4xbf16>, vector<4x16xbf16>, vector<128x16xf32> -> vector<128x16xf32>
      %c0_59 = arith.constant 0 : index
      %c0_60 = arith.constant 0 : index
      %83 = vector.load %arg9[%c0_59, %c0_60] : memref<128x1xf32, #tpu.memory_space<vmem>>, vector<128x1xf32>
      %84 = vector.broadcast %83 : vector<128x1xf32> to vector<128x16xf32>
      %85 = arith.addf %82, %84 : vector<128x16xf32>
      %86 = arith.truncf %85 : vector<128x16xf32> to vector<128x16xbf16>
      %c1_61 = arith.constant 1 : index
      %c0_62 = arith.constant 0 : index
      %c0_63 = arith.constant 0 : index
      %87 = vector.load %arg12[%c1_61, %c0_62, %c0_63] : memref<2x128x16xbf16, #tpu.memory_space<vmem>>, vector<1x128x16xbf16>
      %88 = vector.shape_cast %87 : vector<1x128x16xbf16> to vector<128x16xbf16>
      %89 = vector.shape_cast %86 : vector<128x16xbf16> to vector<1x128x16xbf16>
      tpu.vector_store %arg12[%c1_61, %c0_62, %c0_63], %89 {strides = array<i32>} : memref<2x128x16xbf16, #tpu.memory_space<vmem>>, vector<1x128x16xbf16>,
    } else {
    }
    %c8_i32 = arith.constant 8 : i32
    %3 = arith.muli %arg1, %c8_i32 : i32
    %4 = tpu.assume_multiple %3, 8 : i32
    %c0 = arith.constant 0 : index
    %5 = arith.index_cast %4 : i32 to index
    %c0_1 = arith.constant 0 : index
    %6 = vector.load %arg11[%c0, %5, %c0_1] : memref<2x8x128xbf16, #tpu.memory_space<vmem>>, vector<2x8x128xbf16>
    %c0_2 = arith.constant 0 : index
    %c0_3 = arith.constant 0 : index
    %c0_4 = arith.constant 0 : index
    %7 = vector.load %arg11[%c0_2, %c0_3, %c0_4] : memref<2x8x128xbf16, #tpu.memory_space<vmem>>, vector<2x8x128xbf16>
    %c0_5 = arith.constant 0 : index
    %c0_6 = arith.constant 0 : index
    %c0_7 = arith.constant 0 : index
    %8 = vector.load %arg12[%c0_5, %c0_6, %c0_7] : memref<2x128x16xbf16, #tpu.memory_space<vmem>>, vector<2x128x16xbf16>
    "tpu.trace_start"() <{level = 10 : i32, message = "bqd,bkd->bqk"}> : () -> ()
    %cst = arith.constant dense<0.000000e+00> : vector<2x8x8xf32>
    %9 = tpu.matmul %6, %7, %cst {dimension_numbers = #tpu.dot_dimension_numbers<[2], [2], [1], [1], [0, 0, 0, 1, 1, 1], [0], [0]>} : vector<2x8x128xbf16>, vector<2x8x128xbf16>, vector<2x8x8xf32> -> vector<2x8x8xf32>
    "tpu.trace_stop"() : () -> ()
    %c0_8 = arith.constant 0 : index
    %c0_9 = arith.constant 0 : index
    %c0_10 = arith.constant 0 : index
    %10 = vector.load %arg4[%c0_8, %c0_9, %c0_10] : memref<2x8x8xi8, #tpu.memory_space<vmem>>, vector<2x8x8xi8>
    %c0_i8 = arith.constant 0 : i8
    %11 = vector.broadcast %c0_i8 : i8 to vector<2x8x8xi8>
    %12 = arith.cmpi ne, %10, %11 : vector<2x8x8xi8>
    %cst_11 = arith.constant -1.000000e+09 : f32
    %13 = vector.broadcast %cst_11 : f32 to vector<2x8x8xf32>
    %14 = arith.select %12, %9, %13 : vector<2x8x8xi1>, vector<2x8x8xf32>
    %cst_12 = arith.constant dense<0xFF800000> : vector<2x8xf32>
    %15 = vector.multi_reduction <maximumf>, %14, %cst_12 [2] : vector<2x8x8xf32> to vector<2x8xf32>
    %16 = vector.shape_cast %15 : vector<2x8xf32> to vector<2x8x1xf32>
    %17 = vector.broadcast %16 : vector<2x8x1xf32> to vector<2x8x8xf32>
    %18 = arith.subf %14, %17 : vector<2x8x8xf32>
    %cst_13 = arith.constant 0.176776692 : f32
    %19 = vector.broadcast %cst_13 : f32 to vector<2x8x8xf32>
    %20 = arith.mulf %18, %19 : vector<2x8x8xf32>
    %21 = math.exp %20 : vector<2x8x8xf32>
    %cst_14 = arith.constant dense<0.000000e+00> : vector<2x8xf32>
    %22 = vector.multi_reduction <add>, %21, %cst_14 [2] : vector<2x8x8xf32> to vector<2x8xf32>
    %23 = vector.shape_cast %22 : vector<2x8xf32> to vector<2x8x1xf32>
    %24 = arith.truncf %21 : vector<2x8x8xf32> to vector<2x8x8xbf16>
    "tpu.trace_start"() <{level = 10 : i32, message = "bqk,bkd->bqd"}> : () -> ()
    %cst_15 = arith.constant dense<0.000000e+00> : vector<2x8x128xf32>
    %25 = tpu.matmul %24, %7, %cst_15 {dimension_numbers = #tpu.dot_dimension_numbers<[2], [1], [1], [2], [0, 0, 0, 1, 1, 2], [0], [0]>} : vector<2x8x8xbf16>, vector<2x8x128xbf16>, vector<2x8x128xf32> -> vector<2x8x128xf32>
    "tpu.trace_stop"() : () -> ()
    %26 = tpu.reciprocal %23 {approx = true} : vector<2x8x1xf32> -> vector<2x8x1xf32>
    %27 = vector.broadcast %26 : vector<2x8x1xf32> to vector<2x8x128xf32>
    %28 = arith.mulf %25, %27 : vector<2x8x128xf32>
    "tpu.trace_start"() <{level = 10 : i32, message = "bqd,bds->bqs"}> : () -> ()
    %cst_16 = arith.constant dense<0.000000e+00> : vector<2x8x16xf32>
    %29 = tpu.matmul %6, %8, %cst_16 {dimension_numbers = #tpu.dot_dimension_numbers<[2], [1], [1], [2], [0, 0, 0, 1, 1, 2], [0], [0]>} : vector<2x8x128xbf16>, vector<2x128x16xbf16>, vector<2x8x16xf32> -> vector<2x8x16xf32>
    "tpu.trace_stop"() : () -> ()
    %c0_17 = arith.constant 0 : index
    %c0_18 = arith.constant 0 : index
    %c0_19 = arith.constant 0 : index
    %30 = vector.load %arg5[%c0_17, %c0_18, %c0_19] : memref<2x8x16xi8, #tpu.memory_space<vmem>>, vector<2x8x16xi8>
    %c0_i8_20 = arith.constant 0 : i8
    %31 = vector.broadcast %c0_i8_20 : i8 to vector<2x8x16xi8>
    %32 = arith.cmpi ne, %30, %31 : vector<2x8x16xi8>
    %cst_21 = arith.constant -1.000000e+09 : f32
    %33 = vector.broadcast %cst_21 : f32 to vector<2x8x16xf32>
    %34 = arith.select %32, %29, %33 : vector<2x8x16xi1>, vector<2x8x16xf32>
    %cst_22 = arith.constant dense<0xFF800000> : vector<2x8xf32>
    %35 = vector.multi_reduction <maximumf>, %34, %cst_22 [2] : vector<2x8x16xf32> to vector<2x8xf32>
    %36 = vector.shape_cast %35 : vector<2x8xf32> to vector<2x8x1xf32>
    %37 = vector.broadcast %36 : vector<2x8x1xf32> to vector<2x8x16xf32>
    %38 = arith.subf %34, %37 : vector<2x8x16xf32>
    %cst_23 = arith.constant 0.176776692 : f32
    %39 = vector.broadcast %cst_23 : f32 to vector<2x8x16xf32>
    %40 = arith.mulf %38, %39 : vector<2x8x16xf32>
    %41 = math.exp %40 : vector<2x8x16xf32>
    %cst_24 = arith.constant dense<0.000000e+00> : vector<2x8xf32>
    %42 = vector.multi_reduction <add>, %41, %cst_24 [2] : vector<2x8x16xf32> to vector<2x8xf32>
    %43 = vector.shape_cast %42 : vector<2x8xf32> to vector<2x8x1xf32>
    %44 = arith.truncf %41 : vector<2x8x16xf32> to vector<2x8x16xbf16>
    "tpu.trace_start"() <{level = 10 : i32, message = "bqs,bds->bqd"}> : () -> ()
    %cst_25 = arith.constant dense<0.000000e+00> : vector<2x8x128xf32>
    %45 = tpu.matmul %44, %8, %cst_25 {dimension_numbers = #tpu.dot_dimension_numbers<[2], [2], [1], [1], [0, 0, 0, 1, 1, 1], [0], [0]>} : vector<2x8x16xbf16>, vector<2x128x16xbf16>, vector<2x8x128xf32> -> vector<2x8x128xf32>
    "tpu.trace_stop"() : () -> ()
    %46 = tpu.reciprocal %43 {approx = true} : vector<2x8x1xf32> -> vector<2x8x1xf32>
    %47 = vector.broadcast %46 : vector<2x8x1xf32> to vector<2x8x128xf32>
    %48 = arith.mulf %45, %47 : vector<2x8x128xf32>
    %49 = arith.addf %28, %48 : vector<2x8x128xf32>
    %cst_26 = arith.constant 5.000000e-01 : f32
    %50 = vector.broadcast %cst_26 : f32 to vector<2x8x128xf32>
    %51 = arith.addf %49, %50 : vector<2x8x128xf32>
    %cst_27 = arith.constant 0.000000e+00 : f32
    %cst_28 = arith.constant 6.300000e+01 : f32
    %52 = vector.broadcast %cst_27 : f32 to vector<2x8x128xf32>
    %53 = arith.maximumf %52, %51 : vector<2x8x128xf32>
    %54 = vector.broadcast %cst_28 : f32 to vector<2x8x128xf32>
    %55 = arith.minimumf %54, %53 : vector<2x8x128xf32>
    %56 = arith.fptosi %55 : vector<2x8x128xf32> to vector<2x8x128xi32>
    %c0_29 = arith.constant 0 : index
    %c0_30 = arith.constant 0 : index
    %c0_31 = arith.constant 0 : index
    %57 = vector.load %arg10[%c0_29, %c0_30, %c0_31] : memref<2x8x128xi32, #tpu.memory_space<vmem>>, vector<2x8x128xi32>
    tpu.vector_store %arg10[%c0_29, %c0_30, %c0_31], %56 {strides = array<i32>} : memref<2x8x128xi32, #tpu.memory_space<vmem>>, vector<2x8x128xi32>,
    return
  }
  func.func @transform_0(%arg0: i32, %arg1: i32) -> (i32, i32, i32) {
    %c0_i32 = arith.constant 0 : i32
    %c0_i32_0 = arith.constant 0 : i32
    %c0_i32_1 = arith.constant 0 : i32
    return %arg0, %c0_i32, %c0_i32_0 : i32, i32, i32
  }
  func.func @transform_1(%arg0: i32, %arg1: i32) -> (i32, i32, i32) {
    %c0_i32 = arith.constant 0 : i32
    %c0_i32_0 = arith.constant 0 : i32
    %c0_i32_1 = arith.constant 0 : i32
    return %arg0, %c0_i32, %c0_i32_0 : i32, i32, i32
  }
  func.func @transform_2(%arg0: i32, %arg1: i32) -> (i32, i32, i32) {
    %c0_i32 = arith.constant 0 : i32
    %c0_i32_0 = arith.constant 0 : i32
    return %arg0, %arg1, %c0_i32 : i32, i32, i32
  }
  func.func @transform_3(%arg0: i32, %arg1: i32) -> (i32, i32, i32) {
    %c0_i32 = arith.constant 0 : i32
    %c0_i32_0 = arith.constant 0 : i32
    return %arg0, %arg1, %c0_i32 : i32, i32, i32
  }
  func.func @transform_4(%arg0: i32, %arg1: i32) -> (i32, i32) {
    %c0_i32 = arith.constant 0 : i32
    %c0_i32_0 = arith.constant 0 : i32
    %c0_i32_1 = arith.constant 0 : i32
    return %c0_i32, %c0_i32_0 : i32, i32
  }
  func.func @transform_5(%arg0: i32, %arg1: i32) -> (i32, i32) {
    %c0_i32 = arith.constant 0 : i32
    %c0_i32_0 = arith.constant 0 : i32
    %c0_i32_1 = arith.constant 0 : i32
    return %c0_i32, %c0_i32_0 : i32, i32
  }
  func.func @transform_6(%arg0: i32, %arg1: i32) -> (i32, i32) {
    %c0_i32 = arith.constant 0 : i32
    %c0_i32_0 = arith.constant 0 : i32
    %c0_i32_1 = arith.constant 0 : i32
    return %c0_i32, %c0_i32_0 : i32, i32
  }
  func.func @transform_7(%arg0: i32, %arg1: i32) -> (i32, i32) {
    %c0_i32 = arith.constant 0 : i32
    %c0_i32_0 = arith.constant 0 : i32
    %c0_i32_1 = arith.constant 0 : i32
    return %c0_i32, %c0_i32_0 : i32, i32
  }
  func.func @transform_8(%arg0: i32, %arg1: i32) -> (i32, i32, i32) {
    %c0_i32 = arith.constant 0 : i32
    %c0_i32_0 = arith.constant 0 : i32
    return %arg0, %arg1, %c0_i32 : i32, i32, i32
  }
}

</mosaic_0001>

<llo_original>
// kernel: cross_attention_forward.1
$region0: #{cross_attention_forward.1}
  #allocation0 [shape = 'u32[]', space=smem, size = 0x4, offset = 0x4, fixed_abs, tag = 'smem constant byte address 0x4 - core index']
  #allocation1 [shape = 'u32[144,128]{1,0:T(1,128)}', space=vmem, size = 0x12000, scoped, tag = 'internal scratch']
  #allocation2 [shape = 'bf16[2,8,128]{2,1,0:T(8,128)(2,1)}', space=vmem, size = 0x1000, scoped, tag = 'scratch operand']
  #allocation3 [shape = 'bf16[2,128,16]{2,1,0:T(8,128)(2,1)}', space=vmem, size = 0x10000, scoped, tag = 'scratch operand']
  %s0 = inlined_call_operand.vmem [shape: bf16[4,8,32], index: 0, kind: input, shape index: {}]
  %s1 = inlined_call_operand.vmem [shape: bf16[4,4,16], index: 1, kind: input, shape index: {}]
  %s2 = inlined_call_operand.hbm [shape: s8[4,8,8], index: 2, kind: input, shape index: {}]
  %s3 = inlined_call_operand.hbm [shape: s8[4,8,16], index: 3, kind: input, shape index: {}]
  %s4 = inlined_call_operand.vmem [shape: bf16[32,128], index: 4, kind: input, shape index: {}]
  %s5 = inlined_call_operand.vmem [shape: f32[1,128], index: 5, kind: input, shape index: {}]
  %s6 = inlined_call_operand.vmem [shape: bf16[128,4], index: 6, kind: input, shape index: {}]
  %s7 = inlined_call_operand.vmem [shape: f32[128,1], index: 7, kind: input, shape index: {}]
  %s8 = inlined_call_operand.vmem [shape: s32[4,8,128], index: 8, kind: output, shape index: {}]
  %s9 = sld [smem:[#allocation0]]
  $region77: #{cross_attention_forward.1} parent=0
    _
  %s11 = ssub.s32 1, %s9
  %s12 = scalar_select 0, %s11, %s9
  $region1: #{cross_attention_forward.1} parent=0
    #allocation4 [shape = 'u8[4096]{0}', space=vmem, size = 0x1000, scoped, tag = 'input window, operand 2']
    #allocation5 [shape = 's32[2]{0}', space=sflag, size = 0x8, scoped, tag = 'scoped memory for cross_attention_forward.1']
    #allocation6 [shape = 'u8[4096]{0}', space=vmem, size = 0x1000, scoped, tag = 'input window, operand 3']
    #allocation7 [shape = 's32[2]{0}', space=sflag, size = 0x8, scoped, tag = 'scoped memory for cross_attention_forward.1']
    %13 = vsyncpa [#allocation5], 0
    %s14 = scalar_lea.sflag [#allocation5], 1
    %15 = vsyncpa %s14, 0
    %16 = vsyncpa [#allocation7], 0
    %s17 = scalar_lea.sflag [#allocation7], 1
    %18 = vsyncpa %s17, 0
    loop: start=0, step=1, limit=4
    $region2: #{cross_attention_forward.1} parent=1 // loop_pre_header
      _
    $region3: #{cross_attention_forward.1} parent=1 // loop_header
      %s20 = sphi 0, %s24
      %p21 = scmp.ge.s32.totalorder %s20, 4
      %s27 = sphi 0, %s39
      %s28 = sphi 0, %s35
      %s29 = sphi 0, %s27
      %s30 = sphi 0, %s28
      %s31 = sphi 0, %s29
      %s32 = sphi 0, %s30
      %s42 = sphi 0, %s44
      %s45 = sphi 0, %s42
      %s46 = sphi 0, %s45
      %s62 = sphi 0, %s46
      %s68 = sphi 0, %s70
      %s71 = sphi 0, %s68
      %s72 = sphi 0, %s71
      %s88 = sphi 0, %s72
      %s96 = sphi 0, %s98
      %s99 = sphi 0, %s96
      %s100 = sphi 0, %s99
      %s116 = sphi 0, %s100
      %s124 = sphi 0, %s126
      %s127 = sphi 0, %s124
      %s128 = sphi 0, %s127
      %s144 = sphi 0, %s128
      %s148 = sphi 0, %s148
      %s150 = sphi 0, %s148
      %s151 = sphi 0, %s150
      %s165 = sphi 0, %s151
      %s169 = sphi 0, %s169
      %s171 = sphi 0, %s169
      %s172 = sphi 0, %s171
      %s186 = sphi 0, %s172
      %s190 = sphi 0, %s190
      %s192 = sphi 0, %s190
      %s193 = sphi 0, %s192
      %s207 = sphi 0, %s193
      %s211 = sphi 0, %s211
      %s213 = sphi 0, %s211
      %s214 = sphi 0, %s213
      %s228 = sphi 0, %s214
      %s236 = sphi 0, %s238
      %s239 = sphi 0, %s236
      %s240 = sphi 0, %s239
      %s256 = sphi 0, %s240
    $region4: #{cross_attention_forward.1} parent=1 // loop_header_branch
      %23 = sbr.rel (%p21) target = $region8
    $region5: #{cross_attention_forward.1} parent=1 // loop_body
      %s25 = ssub.s32 %s20, 1
      %s26 = ssub.s32 %s20, 2
      %s33 = sadd.s32 1, %s28
      %p34 = scmp.ge.s32.totalorder %s33, 1
      %s35 = scalar_select %p34, 0, %s33
      %s36 = sadd.s32 1, %s27
      %s37 = scalar_select %p34, %s36, %s27
      %p38 = scmp.ge.s32.totalorder %s37, 2
      %s39 = scalar_select %p38, 0, %s37
      %s40 = ssub.s32 %s27, %s39
      %p41 = scmp.eq.s32.totalorder %s40, 0
      %s43 = sadd.s32 %s42, 1
      %s44 = scalar_select %p41, %s42, %s43
      %p47 = pneg %p41
      %p48 = scmp.eq.s32.totalorder %s20, 1
      %p49 = por %p47, %p48
      %p50 = scmp.ne.s32.totalorder %s42, %s45
      %p51 = scmp.eq.s32.totalorder %s20, 0
      %p52 = por %p50, %p51
      %p53 = scmp.ne.s32.totalorder %s42, %s45
      %p54 = scmp.eq.s32.totalorder %s25, 1
      %p55 = por %p53, %p54
      %p56 = scmp.ne.s32.totalorder %s45, %s46
      %p57 = scmp.eq.s32.totalorder %s25, 0
      %p58 = por %p56, %p57
      %p59 = scmp.ne.s32.totalorder %s45, %s46
      %p60 = scmp.eq.s32.totalorder %s26, 1
      %p61 = por %p59, %p60
      %p63 = scmp.ne.s32.totalorder %s46, %s62
      %p64 = scmp.eq.s32.totalorder %s26, 0
      %p65 = por %p63, %p64
      %s66 = ssub.s32 %s27, %s39
      %p67 = scmp.eq.s32.totalorder %s66, 0
      %s69 = sadd.s32 %s68, 1
      %s70 = scalar_select %p67, %s68, %s69
      %p73 = pneg %p67
      %p74 = scmp.eq.s32.totalorder %s20, 1
      %p75 = por %p73, %p74
      %p76 = scmp.ne.s32.totalorder %s68, %s71
      %p77 = scmp.eq.s32.totalorder %s20, 0
      %p78 = por %p76, %p77
      %p79 = scmp.ne.s32.totalorder %s68, %s71
      %p80 = scmp.eq.s32.totalorder %s25, 1
      %p81 = por %p79, %p80
      %p82 = scmp.ne.s32.totalorder %s71, %s72
      %p83 = scmp.eq.s32.totalorder %s25, 0
      %p84 = por %p82, %p83
      %p85 = scmp.ne.s32.totalorder %s71, %s72
      %p86 = scmp.eq.s32.totalorder %s26, 1
      %p87 = por %p85, %p86
      %p89 = scmp.ne.s32.totalorder %s72, %s88
      %p90 = scmp.eq.s32.totalorder %s26, 0
      %p91 = por %p89, %p90
      %s92 = ssub.s32 %s27, %s39
      %s93 = ssub.s32 %s28, %s35
      %s94 = sor.u32 %s92, %s93
      %p95 = scmp.eq.s32.totalorder %s94, 0
      %s97 = sadd.s32 %s96, 1
      %s98 = scalar_select %p95, %s96, %s97
      %p101 = pneg %p95
      %p102 = scmp.eq.s32.totalorder %s20, 1
      %p103 = por %p101, %p102
      %p104 = scmp.ne.s32.totalorder %s96, %s99
      %p105 = scmp.eq.s32.totalorder %s20, 0
      %p106 = por %p104, %p105
      %p107 = scmp.ne.s32.totalorder %s96, %s99
      %p108 = scmp.eq.s32.totalorder %s25, 1
      %p109 = por %p107, %p108
      %p110 = scmp.ne.s32.totalorder %s99, %s100
      %p111 = scmp.eq.s32.totalorder %s25, 0
      %p112 = por %p110, %p111
      %p113 = scmp.ne.s32.totalorder %s99, %s100
      %p114 = scmp.eq.s32.totalorder %s26, 1
      %p115 = por %p113, %p114
      %p117 = scmp.ne.s32.totalorder %s100, %s116
      %p118 = scmp.eq.s32.totalorder %s26, 0
      %p119 = por %p117, %p118
      %s120 = ssub.s32 %s27, %s39
      %s121 = ssub.s32 %s28, %s35
      %s122 = sor.u32 %s120, %s121
      %p123 = scmp.eq.s32.totalorder %s122, 0
      %s125 = sadd.s32 %s124, 1
      %s126 = scalar_select %p123, %s124, %s125
      %p129 = pneg %p123
      %p130 = scmp.eq.s32.totalorder %s20, 1
      %p131 = por %p129, %p130
      %p132 = scmp.ne.s32.totalorder %s124, %s127
      %p133 = scmp.eq.s32.totalorder %s20, 0
      %p134 = por %p132, %p133
      %p135 = scmp.ne.s32.totalorder %s124, %s127
      %p136 = scmp.eq.s32.totalorder %s25, 1
      %p137 = por %p135, %p136
      %p138 = scmp.ne.s32.totalorder %s127, %s128
      %p139 = scmp.eq.s32.totalorder %s25, 0
      %p140 = por %p138, %p139
      %p141 = scmp.ne.s32.totalorder %s127, %s128
      %p142 = scmp.eq.s32.totalorder %s26, 1
      %p143 = por %p141, %p142
      %p145 = scmp.ne.s32.totalorder %s128, %s144
      %p146 = scmp.eq.s32.totalorder %s26, 0
      %p147 = por %p145, %p146
      %s149 = sadd.s32 %s148, 1
      %p152 = scmp.eq.s32.totalorder %s20, 1
      %p153 = scmp.ne.s32.totalorder %s148, %s150
      %p154 = scmp.eq.s32.totalorder %s20, 0
      %p155 = por %p153, %p154
      %p156 = scmp.ne.s32.totalorder %s148, %s150
      %p157 = scmp.eq.s32.totalorder %s25, 1
      %p158 = por %p156, %p157
      %p159 = scmp.ne.s32.totalorder %s150, %s151
      %p160 = scmp.eq.s32.totalorder %s25, 0
      %p161 = por %p159, %p160
      %p162 = scmp.ne.s32.totalorder %s150, %s151
      %p163 = scmp.eq.s32.totalorder %s26, 1
      %p164 = por %p162, %p163
      %p166 = scmp.ne.s32.totalorder %s151, %s165
      %p167 = scmp.eq.s32.totalorder %s26, 0
      %p168 = por %p166, %p167
      %s170 = sadd.s32 %s169, 1
      %p173 = scmp.eq.s32.totalorder %s20, 1
      %p174 = scmp.ne.s32.totalorder %s169, %s171
      %p175 = scmp.eq.s32.totalorder %s20, 0
      %p176 = por %p174, %p175
      %p177 = scmp.ne.s32.totalorder %s169, %s171
      %p178 = scmp.eq.s32.totalorder %s25, 1
      %p179 = por %p177, %p178
      %p180 = scmp.ne.s32.totalorder %s171, %s172
      %p181 = scmp.eq.s32.totalorder %s25, 0
      %p182 = por %p180, %p181
      %p183 = scmp.ne.s32.totalorder %s171, %s172
      %p184 = scmp.eq.s32.totalorder %s26, 1
      %p185 = por %p183, %p184
      %p187 = scmp.ne.s32.totalorder %s172, %s186
      %p188 = scmp.eq.s32.totalorder %s26, 0
      %p189 = por %p187, %p188
      %s191 = sadd.s32 %s190, 1
      %p194 = scmp.eq.s32.totalorder %s20, 1
      %p195 = scmp.ne.s32.totalorder %s190, %s192
      %p196 = scmp.eq.s32.totalorder %s20, 0
      %p197 = por %p195, %p196
      %p198 = scmp.ne.s32.totalorder %s190, %s192
      %p199 = scmp.eq.s32.totalorder %s25, 1
      %p200 = por %p198, %p199
      %p201 = scmp.ne.s32.totalorder %s192, %s193
      %p202 = scmp.eq.s32.totalorder %s25, 0
      %p203 = por %p201, %p202
      %p204 = scmp.ne.s32.totalorder %s192, %s193
      %p205 = scmp.eq.s32.totalorder %s26, 1
      %p206 = por %p204, %p205
      %p208 = scmp.ne.s32.totalorder %s193, %s207
      %p209 = scmp.eq.s32.totalorder %s26, 0
      %p210 = por %p208, %p209
      %s212 = sadd.s32 %s211, 1
      %p215 = scmp.eq.s32.totalorder %s20, 1
      %p216 = scmp.ne.s32.totalorder %s211, %s213
      %p217 = scmp.eq.s32.totalorder %s20, 0
      %p218 = por %p216, %p217
      %p219 = scmp.ne.s32.totalorder %s211, %s213
      %p220 = scmp.eq.s32.totalorder %s25, 1
      %p221 = por %p219, %p220
      %p222 = scmp.ne.s32.totalorder %s213, %s214
      %p223 = scmp.eq.s32.totalorder %s25, 0
      %p224 = por %p222, %p223
      %p225 = scmp.ne.s32.totalorder %s213, %s214
      %p226 = scmp.eq.s32.totalorder %s26, 1
      %p227 = por %p225, %p226
      %p229 = scmp.ne.s32.totalorder %s214, %s228
      %p230 = scmp.eq.s32.totalorder %s26, 0
      %p231 = por %p229, %p230
      %s232 = ssub.s32 %s27, %s39
      %s233 = ssub.s32 %s28, %s35
      %s234 = sor.u32 %s232, %s233
      %p235 = scmp.eq.s32.totalorder %s234, 0
      %s237 = sadd.s32 %s236, 1
      %s238 = scalar_select %p235, %s236, %s237
      %p241 = pneg %p235
      %p242 = scmp.eq.s32.totalorder %s20, 1
      %p243 = por %p241, %p242
      %p244 = scmp.ne.s32.totalorder %s236, %s239
      %p245 = scmp.eq.s32.totalorder %s20, 0
      %p246 = por %p244, %p245
      %p247 = scmp.ne.s32.totalorder %s236, %s239
      %p248 = scmp.eq.s32.totalorder %s25, 1
      %p249 = por %p247, %p248
      %p250 = scmp.ne.s32.totalorder %s239, %s240
      %p251 = scmp.eq.s32.totalorder %s25, 0
      %p252 = por %p250, %p251
      %p253 = scmp.ne.s32.totalorder %s239, %s240
      %p254 = scmp.eq.s32.totalorder %s26, 1
      %p255 = por %p253, %p254
      %p257 = scmp.ne.s32.totalorder %s240, %s256
      %p258 = scmp.eq.s32.totalorder %s26, 0
      %p259 = por %p257, %p258
      %p260 = scmp.le.s32.totalorder 1, %s20
      %p261 = scmp.lt.s32.totalorder %s20, 3
      %p262 = pnand %p260, %p261
      %p263 = pneg %p262
      // Predicated region
      $region9: #{cross_attention_forward.1} parent=5 // pred_check
        _
      $region10: #{cross_attention_forward.1} parent=5 // pred_check_branch
        %265 = sbr.rel (%p262) target = $region12
      $region11: #{cross_attention_forward.1} parent=5 // pred_region
        %s266 = ssub.s32 %s20, 1
        // Predicated region
        $region13: #{cross_attention_forward.1} parent=11 // pred_check
          %p267 = pneg %p161
        $region14: #{cross_attention_forward.1} parent=11 // pred_check_branch
          %269 = sbr.rel (%p267) target = $region16
        $region15: #{cross_attention_forward.1} parent=11 // pred_region
          _
        $region16: #{cross_attention_forward.1} parent=11 // pred_fallthru
          _
        // Predicated region
        $region17: #{cross_attention_forward.1} parent=11 // pred_check
          %p270 = pneg %p182
        $region18: #{cross_attention_forward.1} parent=11 // pred_check_branch
          %272 = sbr.rel (%p270) target = $region20
        $region19: #{cross_attention_forward.1} parent=11 // pred_region
          _
        $region20: #{cross_attention_forward.1} parent=11 // pred_fallthru
          _
        // Predicated region
        $region21: #{cross_attention_forward.1} parent=11 // pred_check
          %p273 = pneg %p203
        $region22: #{cross_attention_forward.1} parent=11 // pred_check_branch
          %275 = sbr.rel (%p273) target = $region24
        $region23: #{cross_attention_forward.1} parent=11 // pred_region
          _
        $region24: #{cross_attention_forward.1} parent=11 // pred_fallthru
          _
        // Predicated region
        $region25: #{cross_attention_forward.1} parent=11 // pred_check
          %p276 = pneg %p224
        $region26: #{cross_attention_forward.1} parent=11 // pred_check_branch
          %278 = sbr.rel (%p276) target = $region28
        $region27: #{cross_attention_forward.1} parent=11 // pred_region
          _
        $region28: #{cross_attention_forward.1} parent=11 // pred_fallthru
          _
      $region12: #{cross_attention_forward.1} parent=5 // pred_fallthru
        _
      %p279 = scmp.lt.s32.totalorder %s20, 2
      // Predicated region
      $region29: #{cross_attention_forward.1} parent=5 // pred_check
        %p280 = pneg %p279
      $region30: #{cross_attention_forward.1} parent=5 // pred_check_branch
        %282 = sbr.rel (%p280) target = $region32
      $region31: #{cross_attention_forward.1} parent=5 // pred_region
        // Predicated region
        $region33: #{cross_attention_forward.1} parent=31 // pred_check
          %p283 = pneg %p52
        $region34: #{cross_attention_forward.1} parent=31 // pred_check_branch
          %285 = sbr.rel (%p283) target = $region36
        $region35: #{cross_attention_forward.1} parent=31 // pred_region
          %s286 = smul.u32 2, %s27
          %p287 = scmp.lt.s32.totalorder %s286, 3
          %s288 = scalar_select %p287, %s286, 3
          %s289 = smul.addr %s288, 4
          %s290 = scalar_lea.vmem %s0, %s289
          %s291 = smul.u32 2, %s27
        $region36: #{cross_attention_forward.1} parent=31 // pred_fallthru
          _
        // Predicated region
        $region37: #{cross_attention_forward.1} parent=31 // pred_check
          %p292 = pneg %p78
        $region38: #{cross_attention_forward.1} parent=31 // pred_check_branch
          %294 = sbr.rel (%p292) target = $region40
        $region39: #{cross_attention_forward.1} parent=31 // pred_region
          %s295 = smul.u32 2, %s27
          %p296 = scmp.lt.s32.totalorder %s295, 3
          %s297 = scalar_select %p296, %s295, 3
          %s298 = smul.addr %s297, 2
          %s299 = scalar_lea.vmem %s1, %s298
          %s300 = smul.u32 2, %s27
        $region40: #{cross_attention_forward.1} parent=31 // pred_fallthru
          _
        // Predicated region
        $region41: #{cross_attention_forward.1} parent=31 // pred_check
          %p301 = pneg %p106
        $region42: #{cross_attention_forward.1} parent=31 // pred_check_branch
          %303 = sbr.rel (%p301) target = $region44
        $region43: #{cross_attention_forward.1} parent=31 // pred_region
          %s304 = sand.u32 %s96, 1
          %s305 = scalar_lea.sflag [#allocation5], %s304
          %s306 = sand.u32 %s96, 1
          %s307 = smul.addr %s306, 4
          %s308 = scalar_lea.vmem [#allocation4], %s307
          %s309 = smul.u32 2, %s27
          %s311 = ssub.s32 64, 64
          %312 = vsyncadd %s305, %s311
          %s313 = sadd.s32 %s28, %s309
          %s314 = smul.addr %s313, 32
          %s315 = scalar_lea.hbm %s2, %s314
          %s316 = sshll.u32 %s308, 4
          %s317 = int_to_ptr.vmem [resolvable:$true] %s316
          %322 = dma.hbm_to_vmem [thread:$0]  %s315, 64, %s317, %s305, 32, 32, 2
        $region44: #{cross_attention_forward.1} parent=31 // pred_fallthru
          _
        // Predicated region
        $region45: #{cross_attention_forward.1} parent=31 // pred_check
          %p323 = pneg %p134
        $region46: #{cross_attention_forward.1} parent=31 // pred_check_branch
          %325 = sbr.rel (%p323) target = $region48
        $region47: #{cross_attention_forward.1} parent=31 // pred_region
          %s326 = sand.u32 %s124, 1
          %s327 = scalar_lea.sflag [#allocation7], %s326
          %s328 = sand.u32 %s124, 1
          %s329 = smul.addr %s328, 4
          %s330 = scalar_lea.vmem [#allocation6], %s329
          %s331 = smul.u32 2, %s27
          %s333 = ssub.s32 64, 64
          %334 = vsyncadd %s327, %s333
          %s335 = sadd.s32 %s28, %s331
          %s336 = smul.addr %s335, 32
          %s337 = scalar_lea.hbm %s3, %s336
          %s338 = sshll.u32 %s330, 4
          %s339 = int_to_ptr.vmem [resolvable:$true] %s338
          %344 = dma.hbm_to_vmem [thread:$0]  %s337, 64, %s339, %s327, 32, 32, 2
        $region48: #{cross_attention_forward.1} parent=31 // pred_fallthru
          _
      $region32: #{cross_attention_forward.1} parent=5 // pred_fallthru
        _
      %p345 = scmp.le.s32.totalorder 1, %s20
      %p346 = scmp.lt.s32.totalorder %s20, 3
      %p347 = pnand %p345, %p346
      %p348 = pneg %p347
      // Predicated region
      $region49: #{cross_attention_forward.1} parent=5 // pred_check
        _
      $region50: #{cross_attention_forward.1} parent=5 // pred_check_branch
        %350 = sbr.rel (%p347) target = $region52
      $region51: #{cross_attention_forward.1} parent=5 // pred_region
        %s351 = ssub.s32 %s20, 1
        %s352 = sand.u32 %s99, 1
        %s353 = scalar_lea.sflag [#allocation5], %s352
        %s354 = sand.u32 %s99, 1
        %s355 = smul.addr %s354, 4
        %s356 = scalar_lea.vmem [#allocation4], %s355
        // Predicated region
        $region53: #{cross_attention_forward.1} parent=51 // pred_check
          %p357 = pneg %p112
        $region54: #{cross_attention_forward.1} parent=51 // pred_check_branch
          %359 = sbr.rel (%p357) target = $region56
        $region55: #{cross_attention_forward.1} parent=51 // pred_region
          %360 = dma.done %s353, 64
        $region56: #{cross_attention_forward.1} parent=51 // pred_fallthru
          _
        %s361 = sand.u32 %s127, 1
        %s362 = scalar_lea.sflag [#allocation7], %s361
        %s363 = sand.u32 %s127, 1
        %s364 = smul.addr %s363, 4
        %s365 = scalar_lea.vmem [#allocation6], %s364
        // Predicated region
        $region57: #{cross_attention_forward.1} parent=51 // pred_check
          %p366 = pneg %p140
        $region58: #{cross_attention_forward.1} parent=51 // pred_check_branch
          %368 = sbr.rel (%p366) target = $region60
        $region59: #{cross_attention_forward.1} parent=51 // pred_region
          %369 = dma.done %s362, 64
        $region60: #{cross_attention_forward.1} parent=51 // pred_fallthru
          _
        %s370 = smul.u32 2, %s29
        %p371 = scmp.lt.s32.totalorder %s370, 3
        %s372 = scalar_select %p371, %s370, 3
        %s373 = smul.addr %s372, 4
        %s374 = scalar_lea.vmem %s0, %s373
        %p375 = pneg %p58
        %p376 = pneg %p55
        %s377 = smul.u32 2, %s29
        %p378 = scmp.lt.s32.totalorder %s377, 3
        %s379 = scalar_select %p378, %s377, 3
        %s380 = smul.addr %s379, 2
        %s381 = scalar_lea.vmem %s1, %s380
        %p382 = pneg %p84
        %p383 = pneg %p81
        %s384 = sand.u32 %s99, 1
        %s385 = scalar_lea.sflag [#allocation5], %s384
        %s386 = sand.u32 %s99, 1
        %s387 = smul.addr %s386, 4
        %s388 = scalar_lea.vmem [#allocation4], %s387
        %p389 = pneg %p112
        %p390 = pneg %p109
        %s391 = sand.u32 %s127, 1
        %s392 = scalar_lea.sflag [#allocation7], %s391
        %s393 = sand.u32 %s127, 1
        %s394 = smul.addr %s393, 4
        %s395 = scalar_lea.vmem [#allocation6], %s394
        %p396 = pneg %p140
        %p397 = pneg %p137
        %p398 = pneg %p161
        %p399 = pneg %p158
        %p400 = pneg %p182
        %p401 = pneg %p179
        %p402 = pneg %p203
        %p403 = pneg %p200
        %p404 = pneg %p224
        %p405 = pneg %p221
        %p406 = pneg %p252
        %p407 = pneg %p249
        %s408 = smul.u32 2, %s29
        %p409 = scmp.lt.s32.totalorder %s408, 3
        %s410 = scalar_select %p409, %s408, 3
        %p411 = scmp.lt.s32.totalorder %s30, 0
        %s412 = scalar_select %p411, %s30, 0
        %s413 = sadd.s32 %s412, %s410
        %s414 = smul.addr %s413, 8
        %s415 = scalar_lea.vmem %s8, %s414
        %s416 = smul.u32 2, %s29
        %p417 = scmp.lt.s32.totalorder %s416, 3
        %s418 = scalar_select %p417, %s416, 3
        %s419 = smul.addr %s418, 4
        %s420 = scalar_lea.vmem %s0, %s419
        %s421 = smul.u32 2, %s29
        %s422 = smul.u32 2, %s29
        %p423 = scmp.lt.s32.totalorder %s422, 3
        %s424 = scalar_select %p423, %s422, 3
        %s425 = smul.addr %s424, 2
        %s426 = scalar_lea.vmem %s1, %s425
        %s427 = smul.u32 2, %s29
        %s428 = smul.u32 2, %s29
        %s429 = smul.u32 2, %s29
        %s430 = smul.u32 2, %s29
        %p431 = scmp.lt.s32.totalorder %s430, 3
        %s432 = scalar_select %p431, %s430, 3
        %p433 = scmp.lt.s32.totalorder %s30, 0
        %s434 = scalar_select %p433, %s30, 0
        %s435 = sadd.s32 %s434, %s432
        %s436 = smul.addr %s435, 8
        %s437 = scalar_lea.vmem %s8, %s436
        %s438 = smul.u32 2, %s29
        %p442 = scmp.eq.s32.totalorder %s30, 0
        // Predicated region
        $region61: #{cross_attention_forward.1} parent=51 // pred_check
          %p443 = pneg %p442
        $region62: #{cross_attention_forward.1} parent=51 // pred_check_branch
          %445 = sbr.rel (%p443) target = $region64
        $region63: #{cross_attention_forward.1} parent=51 // pred_region
          %v446 = vld [vmem:[%s420] sm:$0xf]
          %v447 = vld [vmem:[%s420 + $0x4] sm:$0xf]
          %v448 = vld [vmem:[%s4] sm:$0xf]
          %v449 = vld [vmem:[%s4 + $0x4] sm:$0xf]
          %v450 = vld [vmem:[%s4 + $0x8] sm:$0xf]
          %v451 = vld [vmem:[%s4 + $0xc] sm:$0xf]
          %v452 = vld [vmem:[%s5] sm:$0x1]
          %v454 = vlaneseq
          %v455 = vshrl.u32 %v454, 7
          %v456 = vsub.s32 0, %v455
          %v457 = vrot.slane %v452, %v456
          %v461 = vunpack.c.l.b16 %v446
          %v462 = vunpack.c.l.b16 %v447
          %v463 = vpack.c.b16 %v462, %v461
          %v468 = vunpack.c.l.b16 %v448
          %v469 = vunpack.c.l.b16 %v449
          %v470 = vunpack.c.l.b16 %v450
          %v471 = vunpack.c.l.b16 %v451
          %v472 = vpack.c.b16 %v469, %v468
          %v473 = vpack.c.b16 %v471, %v470
          %vm476 = vcmask 261120
          %v478 = vsel %vm476, %v463, 0
          %480 = vmatprep.subr.bf16.mxu0 0
          %481 = vmatpush1.bf16.msra.mxu0 0
          %482 = vmatprep.subr.bf16.mxu0 0
          %483 = vmatpush1.bf16.msra.mxu0 0
          %484 = vmatprep.subr.bf16.mxu0 0
          %485 = vmatpush1.bf16.msra.mxu0 0
          %486 = vmatprep.subr.bf16.mxu0 0
          %487 = vmatpush1.bf16.msra.mxu0 0
          %488 = vmatprep.subr.bf16.mxu0 0
          %489 = vmatpush1.bf16.msra.mxu0 0
          %490 = vmatprep.subr.bf16.mxu0 0
          %491 = vmatpush1.bf16.msra.mxu0 0
          %492 = vmatprep.subr.bf16.mxu0 0
          %493 = vmatpush1.bf16.msra.mxu0 %v473
          %494 = vmatprep.subr.bf16.mxu0 0
          %495 = vmatpush1.bf16.msra.mxu0 %v472
          %496 = vmatprep.subr.bf16.mxu0 0
          %497 = vmatpush2.bf16.msra.mxu0 0
          %498 = vmatprep.subr.bf16.mxu0 0
          %499 = vmatpush2.bf16.msra.mxu0 0
          %500 = vmatprep.subr.bf16.mxu0 0
          %501 = vmatpush2.bf16.msra.mxu0 0
          %502 = vmatprep.subr.bf16.mxu0 0
          %503 = vmatpush2.bf16.msra.mxu0 0
          %504 = vmatprep.subr.bf16.mxu0 0
          %505 = vmatpush2.bf16.msra.mxu0 0
          %506 = vmatprep.subr.bf16.mxu0 0
          %507 = vmatpush2.bf16.msra.mxu0 0
          %508 = vmatprep.subr.bf16.mxu0 0
          %509 = vmatpush2.bf16.msra.mxu0 0
          %510 = vmatprep.subr.bf16.mxu0 0
          %511 = vmatpush2.bf16.msra.mxu0 0
          %512 = vmatprep.mubr.bf16.mxu0 0
          %513 = vmatmul.mubr.bf16.gmra.mxu0 %v478
          %v514 = vpop.f32.mrf.mxu0
          %v515 = vadd.f32 %v457, %v514
          %v516 = vpop.f32.mrf.mxu0
          %v517 = vpop.f32.mrf.mxu0
          %v518 = vadd.f32 %v457, %v517
          %v519 = vpop.f32.mrf.mxu0
          %520 = vdwg.mxu0
          %v521 = vpack.c.bf16 %v515, %v515
          %v522 = vpack.c.bf16 %v518, %v518
          %523 = vst [vmem:[#allocation2] sm:$0xf] %v521
          %524 = vst [vmem:[#allocation2 + $0x4] sm:$0xf] %v522
          %v525 = vld [vmem:[%s6] sm:$0xf]
          %v526 = vld [vmem:[%s6 + $0x4] sm:$0xf]
          %v527 = vld [vmem:[%s6 + $0x8] sm:$0xf]
          %v528 = vld [vmem:[%s6 + $0xc] sm:$0xf]
          %v529 = vld [vmem:[%s6 + $0x10] sm:$0xf]
          %v530 = vld [vmem:[%s6 + $0x14] sm:$0xf]
          %v531 = vld [vmem:[%s6 + $0x18] sm:$0xf]
          %v532 = vld [vmem:[%s6 + $0x1c] sm:$0xf]
          %v533 = vld [vmem:[%s6 + $0x20] sm:$0xf]
          %v534 = vld [vmem:[%s6 + $0x24] sm:$0xf]
          %v535 = vld [vmem:[%s6 + $0x28] sm:$0xf]
          %v536 = vld [vmem:[%s6 + $0x2c] sm:$0xf]
          %v537 = vld [vmem:[%s6 + $0x30] sm:$0xf]
          %v538 = vld [vmem:[%s6 + $0x34] sm:$0xf]
          %v539 = vld [vmem:[%s6 + $0x38] sm:$0xf]
          %v540 = vld [vmem:[%s6 + $0x3c] sm:$0xf]
          %v541 = vld [vmem:[%s426] sm:$0x3]
          %v542 = vld [vmem:[%s7] sm:$0xff]
          %v543 = vld [vmem:[%s7 + $0x8] sm:$0xff]
          %v544 = vld [vmem:[%s7 + $0x10] sm:$0xff]
          %v545 = vld [vmem:[%s7 + $0x18] sm:$0xff]
          %v546 = vld [vmem:[%s7 + $0x20] sm:$0xff]
          %v547 = vld [vmem:[%s7 + $0x28] sm:$0xff]
          %v548 = vld [vmem:[%s7 + $0x30] sm:$0xff]
          %v549 = vld [vmem:[%s7 + $0x38] sm:$0xff]
          %v550 = vld [vmem:[%s7 + $0x40] sm:$0xff]
          %v551 = vld [vmem:[%s7 + $0x48] sm:$0xff]
          %v552 = vld [vmem:[%s7 + $0x50] sm:$0xff]
          %v553 = vld [vmem:[%s7 + $0x58] sm:$0xff]
          %v554 = vld [vmem:[%s7 + $0x60] sm:$0xff]
          %v555 = vld [vmem:[%s7 + $0x68] sm:$0xff]
          %v556 = vld [vmem:[%s7 + $0x70] sm:$0xff]
          %v557 = vld [vmem:[%s7 + $0x78] sm:$0xff]
          %559 = vset.pattern.permute.xlu0 0
          %560 = vperm.xlu0 %559, %v542
          %v561 = vpop.permute.xlu0 %560
          %564 = vset.pattern.permute.xlu0 0
          %565 = vperm.xlu0 %564, %v543
          %v566 = vpop.permute.xlu0 %565
          %569 = vset.pattern.permute.xlu0 0
          %570 = vperm.xlu0 %569, %v544
          %v571 = vpop.permute.xlu0 %570
          %574 = vset.pattern.permute.xlu0 0
          %575 = vperm.xlu0 %574, %v545
          %v576 = vpop.permute.xlu0 %575
          %579 = vset.pattern.permute.xlu0 0
          %580 = vperm.xlu0 %579, %v546
          %v581 = vpop.permute.xlu0 %580
          %584 = vset.pattern.permute.xlu0 0
          %585 = vperm.xlu0 %584, %v547
          %v586 = vpop.permute.xlu0 %585
          %589 = vset.pattern.permute.xlu0 0
          %590 = vperm.xlu0 %589, %v548
          %v591 = vpop.permute.xlu0 %590
          %594 = vset.pattern.permute.xlu0 0
          %595 = vperm.xlu0 %594, %v549
          %v596 = vpop.permute.xlu0 %595
          %599 = vset.pattern.permute.xlu0 0
          %600 = vperm.xlu0 %599, %v550
          %v601 = vpop.permute.xlu0 %600
          %604 = vset.pattern.permute.xlu0 0
          %605 = vperm.xlu0 %604, %v551
          %v606 = vpop.permute.xlu0 %605
          %609 = vset.pattern.permute.xlu0 0
          %610 = vperm.xlu0 %609, %v552
          %v611 = vpop.permute.xlu0 %610
          %614 = vset.pattern.permute.xlu0 0
          %615 = vperm.xlu0 %614, %v553
          %v616 = vpop.permute.xlu0 %615
          %619 = vset.pattern.permute.xlu0 0
          %620 = vperm.xlu0 %619, %v554
          %v621 = vpop.permute.xlu0 %620
          %624 = vset.pattern.permute.xlu0 0
          %625 = vperm.xlu0 %624, %v555
          %v626 = vpop.permute.xlu0 %625
          %629 = vset.pattern.permute.xlu0 0
          %630 = vperm.xlu0 %629, %v556
          %v631 = vpop.permute.xlu0 %630
          %634 = vset.pattern.permute.xlu0 0
          %635 = vperm.xlu0 %634, %v557
          %v636 = vpop.permute.xlu0 %635
          %v654 = vunpack.c.l.b16 %v525
          %v655 = vunpack.c.l.b16 %v526
          %v656 = vunpack.c.l.b16 %v527
          %v657 = vunpack.c.l.b16 %v528
          %v658 = vunpack.c.l.b16 %v529
          %v659 = vunpack.c.l.b16 %v530
          %v660 = vunpack.c.l.b16 %v531
          %v661 = vunpack.c.l.b16 %v532
          %v662 = vunpack.c.l.b16 %v533
          %v663 = vunpack.c.l.b16 %v534
          %v664 = vunpack.c.l.b16 %v535
          %v665 = vunpack.c.l.b16 %v536
          %v666 = vunpack.c.l.b16 %v537
          %v667 = vunpack.c.l.b16 %v538
          %v668 = vunpack.c.l.b16 %v539
          %v669 = vunpack.c.l.b16 %v540
          %v670 = vpack.c.b16 %v655, %v654
          %v671 = vpack.c.b16 %v657, %v656
          %v672 = vpack.c.b16 %v659, %v658
          %v673 = vpack.c.b16 %v661, %v660
          %v674 = vpack.c.b16 %v663, %v662
          %v675 = vpack.c.b16 %v665, %v664
          %v676 = vpack.c.b16 %v667, %v666
          %v677 = vpack.c.b16 %v669, %v668
          %vm678 = vcmask 31744
          %v680 = vsel %vm678, %v670, 0
          %v683 = vsel %vm678, %v671, 0
          %v686 = vsel %vm678, %v672, 0
          %v689 = vsel %vm678, %v673, 0
          %v692 = vsel %vm678, %v674, 0
          %v695 = vsel %vm678, %v675, 0
          %v698 = vsel %vm678, %v676, 0
          %v701 = vsel %vm678, %v677, 0
          %vm703 = vcmask 1041408
          %v705 = vsel %vm703, %v541, 0
          %707 = vmatprep.subr.bf16.mxu0 0
          %708 = vmatpush1.bf16.msra.mxu0 0
          %709 = vmatprep.subr.bf16.mxu0 0
          %710 = vmatpush1.bf16.msra.mxu0 0
          %711 = vmatprep.subr.bf16.mxu0 0
          %712 = vmatpush1.bf16.msra.mxu0 0
          %713 = vmatprep.subr.bf16.mxu0 0
          %714 = vmatpush1.bf16.msra.mxu0 0
          %715 = vmatprep.subr.bf16.mxu0 0
          %716 = vmatpush1.bf16.msra.mxu0 0
          %717 = vmatprep.subr.bf16.mxu0 0
          %718 = vmatpush1.bf16.msra.mxu0 0
          %719 = vmatprep.subr.bf16.mxu0 0
          %720 = vmatpush1.bf16.msra.mxu0 0
          %721 = vmatprep.subr.bf16.mxu0 0
          %722 = vmatpush1.bf16.msra.mxu0 %v705
          %723 = vmatprep.subr.bf16.mxu0 0
          %724 = vmatpush2.bf16.msra.mxu0 0
          %725 = vmatprep.subr.bf16.mxu0 0
          %726 = vmatpush2.bf16.msra.mxu0 0
          %727 = vmatprep.subr.bf16.mxu0 0
          %728 = vmatpush2.bf16.msra.mxu0 0
          %729 = vmatprep.subr.bf16.mxu0 0
          %730 = vmatpush2.bf16.msra.mxu0 0
          %731 = vmatprep.subr.bf16.mxu0 0
          %732 = vmatpush2.bf16.msra.mxu0 0
          %733 = vmatprep.subr.bf16.mxu0 0
          %734 = vmatpush2.bf16.msra.mxu0 0
          %735 = vmatprep.subr.bf16.mxu0 0
          %736 = vmatpush2.bf16.msra.mxu0 0
          %737 = vmatprep.subr.bf16.mxu0 0
          %738 = vmatpush2.bf16.msra.mxu0 0
          %739 = vmatprep.mubr.bf16.mxu0 0
          %740 = vmatmul.mubr.bf16.gmra.mxu0 %v680
          %v741 = vpop.f32.mrf.mxu0
          %v742 = vadd.f32 %v561, %v741
          %v743 = vpop.f32.mrf.mxu0
          %v744 = vpop.f32.mrf.mxu0
          %v745 = vadd.f32 %v566, %v744
          %v746 = vpop.f32.mrf.mxu0
          %747 = vmatprep.mubr.bf16.mxu0 0
          %748 = vmatmul.mubr.bf16.gmra.mxu0 %v683
          %v749 = vpop.f32.mrf.mxu0
          %v750 = vadd.f32 %v571, %v749
          %v751 = vpop.f32.mrf.mxu0
          %v752 = vpop.f32.mrf.mxu0
          %v753 = vadd.f32 %v576, %v752
          %v754 = vpop.f32.mrf.mxu0
          %755 = vmatprep.mubr.bf16.mxu0 0
          %756 = vmatmul.mubr.bf16.gmra.mxu0 %v686
          %v757 = vpop.f32.mrf.mxu0
          %v758 = vadd.f32 %v581, %v757
          %v759 = vpop.f32.mrf.mxu0
          %v760 = vpop.f32.mrf.mxu0
          %v761 = vadd.f32 %v586, %v760
          %v762 = vpop.f32.mrf.mxu0
          %763 = vmatprep.mubr.bf16.mxu0 0
          %764 = vmatmul.mubr.bf16.gmra.mxu0 %v689
          %v765 = vpop.f32.mrf.mxu0
          %v766 = vadd.f32 %v591, %v765
          %v767 = vpop.f32.mrf.mxu0
          %v768 = vpop.f32.mrf.mxu0
          %v769 = vadd.f32 %v596, %v768
          %v770 = vpop.f32.mrf.mxu0
          %771 = vmatprep.mubr.bf16.mxu0 0
          %772 = vmatmul.mubr.bf16.gmra.mxu0 %v692
          %v773 = vpop.f32.mrf.mxu0
          %v774 = vadd.f32 %v601, %v773
          %v775 = vpop.f32.mrf.mxu0
          %v776 = vpop.f32.mrf.mxu0
          %v777 = vadd.f32 %v606, %v776
          %v778 = vpop.f32.mrf.mxu0
          %779 = vmatprep.mubr.bf16.mxu0 0
          %780 = vmatmul.mubr.bf16.gmra.mxu0 %v695
          %v781 = vpop.f32.mrf.mxu0
          %v782 = vadd.f32 %v611, %v781
          %v783 = vpop.f32.mrf.mxu0
          %v784 = vpop.f32.mrf.mxu0
          %v785 = vadd.f32 %v616, %v784
          %v786 = vpop.f32.mrf.mxu0
          %787 = vmatprep.mubr.bf16.mxu0 0
          %788 = vmatmul.mubr.bf16.gmra.mxu0 %v698
          %v789 = vpop.f32.mrf.mxu0
          %v790 = vadd.f32 %v621, %v789
          %v791 = vpop.f32.mrf.mxu0
          %v792 = vpop.f32.mrf.mxu0
          %v793 = vadd.f32 %v626, %v792
          %v794 = vpop.f32.mrf.mxu0
          %795 = vmatprep.mubr.bf16.mxu0 0
          %796 = vmatmul.mubr.bf16.gmra.mxu0 %v701
          %v797 = vpop.f32.mrf.mxu0
          %v798 = vadd.f32 %v631, %v797
          %v799 = vpop.f32.mrf.mxu0
          %v800 = vpop.f32.mrf.mxu0
          %v801 = vadd.f32 %v636, %v800
          %v802 = vpop.f32.mrf.mxu0
          %803 = vdwg.mxu0
          %v804 = vpack.c.bf16 %v745, %v742
          %v805 = vpack.c.bf16 %v753, %v750
          %v806 = vpack.c.bf16 %v761, %v758
          %v807 = vpack.c.bf16 %v769, %v766
          %v808 = vpack.c.bf16 %v777, %v774
          %v809 = vpack.c.bf16 %v785, %v782
          %v810 = vpack.c.bf16 %v793, %v790
          %v811 = vpack.c.bf16 %v801, %v798
          %v820 = vunpack.c.l.b16 %v804
          %v821 = vunpack.c.h.b16 %v804
          %v822 = vunpack.c.l.b16 %v805
          %v823 = vunpack.c.h.b16 %v805
          %v824 = vunpack.c.l.b16 %v806
          %v825 = vunpack.c.h.b16 %v806
          %v826 = vunpack.c.l.b16 %v807
          %v827 = vunpack.c.h.b16 %v807
          %v828 = vunpack.c.l.b16 %v808
          %v829 = vunpack.c.h.b16 %v808
          %v830 = vunpack.c.l.b16 %v809
          %v831 = vunpack.c.h.b16 %v809
          %v832 = vunpack.c.l.b16 %v810
          %v833 = vunpack.c.h.b16 %v810
          %v834 = vunpack.c.l.b16 %v811
          %v835 = vunpack.c.h.b16 %v811
          %v836 = vpack.c.b16 %v820, %v820
          %v837 = vpack.c.b16 %v821, %v821
          %v838 = vpack.c.b16 %v822, %v822
          %v839 = vpack.c.b16 %v823, %v823
          %v840 = vpack.c.b16 %v824, %v824
          %v841 = vpack.c.b16 %v825, %v825
          %v842 = vpack.c.b16 %v826, %v826
          %v843 = vpack.c.b16 %v827, %v827
          %v844 = vpack.c.b16 %v828, %v828
          %v845 = vpack.c.b16 %v829, %v829
          %v846 = vpack.c.b16 %v830, %v830
          %v847 = vpack.c.b16 %v831, %v831
          %v848 = vpack.c.b16 %v832, %v832
          %v849 = vpack.c.b16 %v833, %v833
          %v850 = vpack.c.b16 %v834, %v834
          %v851 = vpack.c.b16 %v835, %v835
          %vm868 = vcmask 125952
          %869 = vst.msk [vmem:[#allocation3] sm:$0xf] %vm868, %v836
          %870 = vst.msk [vmem:[#allocation3 + $0x4] sm:$0xf] %vm868, %v837
          %871 = vst.msk [vmem:[#allocation3 + $0x8] sm:$0xf] %vm868, %v838
          %872 = vst.msk [vmem:[#allocation3 + $0xc] sm:$0xf] %vm868, %v839
          %873 = vst.msk [vmem:[#allocation3 + $0x10] sm:$0xf] %vm868, %v840
          %874 = vst.msk [vmem:[#allocation3 + $0x14] sm:$0xf] %vm868, %v841
          %875 = vst.msk [vmem:[#allocation3 + $0x18] sm:$0xf] %vm868, %v842
          %876 = vst.msk [vmem:[#allocation3 + $0x1c] sm:$0xf] %vm868, %v843
          %877 = vst.msk [vmem:[#allocation3 + $0x20] sm:$0xf] %vm868, %v844
          %878 = vst.msk [vmem:[#allocation3 + $0x24] sm:$0xf] %vm868, %v845
          %879 = vst.msk [vmem:[#allocation3 + $0x28] sm:$0xf] %vm868, %v846
          %880 = vst.msk [vmem:[#allocation3 + $0x2c] sm:$0xf] %vm868, %v847
          %881 = vst.msk [vmem:[#allocation3 + $0x30] sm:$0xf] %vm868, %v848
          %882 = vst.msk [vmem:[#allocation3 + $0x34] sm:$0xf] %vm868, %v849
          %883 = vst.msk [vmem:[#allocation3 + $0x38] sm:$0xf] %vm868, %v850
          %884 = vst.msk [vmem:[#allocation3 + $0x3c] sm:$0xf] %vm868, %v851
          %v885 = vld [vmem:[%s6] sm:$0xf]
          %v886 = vld [vmem:[%s6 + $0x4] sm:$0xf]
          %v887 = vld [vmem:[%s6 + $0x8] sm:$0xf]
          %v888 = vld [vmem:[%s6 + $0xc] sm:$0xf]
          %v889 = vld [vmem:[%s6 + $0x10] sm:$0xf]
          %v890 = vld [vmem:[%s6 + $0x14] sm:$0xf]
          %v891 = vld [vmem:[%s6 + $0x18] sm:$0xf]
          %v892 = vld [vmem:[%s6 + $0x1c] sm:$0xf]
          %v893 = vld [vmem:[%s6 + $0x20] sm:$0xf]
          %v894 = vld [vmem:[%s6 + $0x24] sm:$0xf]
          %v895 = vld [vmem:[%s6 + $0x28] sm:$0xf]
          %v896 = vld [vmem:[%s6 + $0x2c] sm:$0xf]
          %v897 = vld [vmem:[%s6 + $0x30] sm:$0xf]
          %v898 = vld [vmem:[%s6 + $0x34] sm:$0xf]
          %v899 = vld [vmem:[%s6 + $0x38] sm:$0xf]
          %v900 = vld [vmem:[%s6 + $0x3c] sm:$0xf]
          %s901 = scalar_lea.vmem %s426, 2
          %v902 = vld [vmem:[%s901] sm:$0x3]
          %v903 = vld [vmem:[%s7] sm:$0xff]
          %v904 = vld [vmem:[%s7 + $0x8] sm:$0xff]
          %v905 = vld [vmem:[%s7 + $0x10] sm:$0xff]
          %v906 = vld [vmem:[%s7 + $0x18] sm:$0xff]
          %v907 = vld [vmem:[%s7 + $0x20] sm:$0xff]
          %v908 = vld [vmem:[%s7 + $0x28] sm:$0xff]
          %v909 = vld [vmem:[%s7 + $0x30] sm:$0xff]
          %v910 = vld [vmem:[%s7 + $0x38] sm:$0xff]
          %v911 = vld [vmem:[%s7 + $0x40] sm:$0xff]
          %v912 = vld [vmem:[%s7 + $0x48] sm:$0xff]
          %v913 = vld [vmem:[%s7 + $0x50] sm:$0xff]
          %v914 = vld [vmem:[%s7 + $0x58] sm:$0xff]
          %v915 = vld [vmem:[%s7 + $0x60] sm:$0xff]
          %v916 = vld [vmem:[%s7 + $0x68] sm:$0xff]
          %v917 = vld [vmem:[%s7 + $0x70] sm:$0xff]
          %v918 = vld [vmem:[%s7 + $0x78] sm:$0xff]
          %920 = vset.pattern.permute.xlu0 0
          %921 = vperm.xlu0 %920, %v903
          %v922 = vpop.permute.xlu0 %921
          %925 = vset.pattern.permute.xlu0 0
          %926 = vperm.xlu0 %925, %v904
          %v927 = vpop.permute.xlu0 %926
          %930 = vset.pattern.permute.xlu0 0
          %931 = vperm.xlu0 %930, %v905
          %v932 = vpop.permute.xlu0 %931
          %935 = vset.pattern.permute.xlu0 0
          %936 = vperm.xlu0 %935, %v906
          %v937 = vpop.permute.xlu0 %936
          %940 = vset.pattern.permute.xlu0 0
          %941 = vperm.xlu0 %940, %v907
          %v942 = vpop.permute.xlu0 %941
          %945 = vset.pattern.permute.xlu0 0
          %946 = vperm.xlu0 %945, %v908
          %v947 = vpop.permute.xlu0 %946
          %950 = vset.pattern.permute.xlu0 0
          %951 = vperm.xlu0 %950, %v909
          %v952 = vpop.permute.xlu0 %951
          %955 = vset.pattern.permute.xlu0 0
          %956 = vperm.xlu0 %955, %v910
          %v957 = vpop.permute.xlu0 %956
          %960 = vset.pattern.permute.xlu0 0
          %961 = vperm.xlu0 %960, %v911
          %v962 = vpop.permute.xlu0 %961
          %965 = vset.pattern.permute.xlu0 0
          %966 = vperm.xlu0 %965, %v912
          %v967 = vpop.permute.xlu0 %966
          %970 = vset.pattern.permute.xlu0 0
          %971 = vperm.xlu0 %970, %v913
          %v972 = vpop.permute.xlu0 %971
          %975 = vset.pattern.permute.xlu0 0
          %976 = vperm.xlu0 %975, %v914
          %v977 = vpop.permute.xlu0 %976
          %980 = vset.pattern.permute.xlu0 0
          %981 = vperm.xlu0 %980, %v915
          %v982 = vpop.permute.xlu0 %981
          %985 = vset.pattern.permute.xlu0 0
          %986 = vperm.xlu0 %985, %v916
          %v987 = vpop.permute.xlu0 %986
          %990 = vset.pattern.permute.xlu0 0
          %991 = vperm.xlu0 %990, %v917
          %v992 = vpop.permute.xlu0 %991
          %995 = vset.pattern.permute.xlu0 0
          %996 = vperm.xlu0 %995, %v918
          %v997 = vpop.permute.xlu0 %996
          %v1015 = vunpack.c.l.b16 %v885
          %v1016 = vunpack.c.l.b16 %v886
          %v1017 = vunpack.c.l.b16 %v887
          %v1018 = vunpack.c.l.b16 %v888
          %v1019 = vunpack.c.l.b16 %v889
          %v1020 = vunpack.c.l.b16 %v890
          %v1021 = vunpack.c.l.b16 %v891
          %v1022 = vunpack.c.l.b16 %v892
          %v1023 = vunpack.c.l.b16 %v893
          %v1024 = vunpack.c.l.b16 %v894
          %v1025 = vunpack.c.l.b16 %v895
          %v1026 = vunpack.c.l.b16 %v896
          %v1027 = vunpack.c.l.b16 %v897
          %v1028 = vunpack.c.l.b16 %v898
          %v1029 = vunpack.c.l.b16 %v899
          %v1030 = vunpack.c.l.b16 %v900
          %v1031 = vpack.c.b16 %v1016, %v1015
          %v1032 = vpack.c.b16 %v1018, %v1017
          %v1033 = vpack.c.b16 %v1020, %v1019
          %v1034 = vpack.c.b16 %v1022, %v1021
          %v1035 = vpack.c.b16 %v1024, %v1023
          %v1036 = vpack.c.b16 %v1026, %v1025
          %v1037 = vpack.c.b16 %v1028, %v1027
          %v1038 = vpack.c.b16 %v1030, %v1029
          %v1040 = vsel %vm678, %v1031, 0
          %v1043 = vsel %vm678, %v1032, 0
          %v1046 = vsel %vm678, %v1033, 0
          %v1049 = vsel %vm678, %v1034, 0
          %v1052 = vsel %vm678, %v1035, 0
          %v1055 = vsel %vm678, %v1036, 0
          %v1058 = vsel %vm678, %v1037, 0
          %v1061 = vsel %vm678, %v1038, 0
          %v1064 = vsel %vm703, %v902, 0
          %1066 = vmatprep.subr.bf16.mxu0 0
          %1067 = vmatpush1.bf16.msra.mxu0 0
          %1068 = vmatprep.subr.bf16.mxu0 0
          %1069 = vmatpush1.bf16.msra.mxu0 0
          %1070 = vmatprep.subr.bf16.mxu0 0
          %1071 = vmatpush1.bf16.msra.mxu0 0
          %1072 = vmatprep.subr.bf16.mxu0 0
          %1073 = vmatpush1.bf16.msra.mxu0 0
          %1074 = vmatprep.subr.bf16.mxu0 0
          %1075 = vmatpush1.bf16.msra.mxu0 0
          %1076 = vmatprep.subr.bf16.mxu0 0
          %1077 = vmatpush1.bf16.msra.mxu0 0
          %1078 = vmatprep.subr.bf16.mxu0 0
          %1079 = vmatpush1.bf16.msra.mxu0 0
          %1080 = vmatprep.subr.bf16.mxu0 0
          %1081 = vmatpush1.bf16.msra.mxu0 %v1064
          %1082 = vmatprep.subr.bf16.mxu0 0
          %1083 = vmatpush2.bf16.msra.mxu0 0
          %1084 = vmatprep.subr.bf16.mxu0 0
          %1085 = vmatpush2.bf16.msra.mxu0 0
          %1086 = vmatprep.subr.bf16.mxu0 0
          %1087 = vmatpush2.bf16.msra.mxu0 0
          %1088 = vmatprep.subr.bf16.mxu0 0
          %1089 = vmatpush2.bf16.msra.mxu0 0
          %1090 = vmatprep.subr.bf16.mxu0 0
          %1091 = vmatpush2.bf16.msra.mxu0 0
          %1092 = vmatprep.subr.bf16.mxu0 0
          %1093 = vmatpush2.bf16.msra.mxu0 0
          %1094 = vmatprep.subr.bf16.mxu0 0
          %1095 = vmatpush2.bf16.msra.mxu0 0
          %1096 = vmatprep.subr.bf16.mxu0 0
          %1097 = vmatpush2.bf16.msra.mxu0 0
          %1098 = vmatprep.mubr.bf16.mxu0 0
          %1099 = vmatmul.mubr.bf16.gmra.mxu0 %v1040
          %v1100 = vpop.f32.mrf.mxu0
          %v1101 = vadd.f32 %v922, %v1100
          %v1102 = vpop.f32.mrf.mxu0
          %v1103 = vpop.f32.mrf.mxu0
          %v1104 = vadd.f32 %v927, %v1103
          %v1105 = vpop.f32.mrf.mxu0
          %1106 = vmatprep.mubr.bf16.mxu0 0
          %1107 = vmatmul.mubr.bf16.gmra.mxu0 %v1043
          %v1108 = vpop.f32.mrf.mxu0
          %v1109 = vadd.f32 %v932, %v1108
          %v1110 = vpop.f32.mrf.mxu0
          %v1111 = vpop.f32.mrf.mxu0
          %v1112 = vadd.f32 %v937, %v1111
          %v1113 = vpop.f32.mrf.mxu0
          %1114 = vmatprep.mubr.bf16.mxu0 0
          %1115 = vmatmul.mubr.bf16.gmra.mxu0 %v1046
          %v1116 = vpop.f32.mrf.mxu0
          %v1117 = vadd.f32 %v942, %v1116
          %v1118 = vpop.f32.mrf.mxu0
          %v1119 = vpop.f32.mrf.mxu0
          %v1120 = vadd.f32 %v947, %v1119
          %v1121 = vpop.f32.mrf.mxu0
          %1122 = vmatprep.mubr.bf16.mxu0 0
          %1123 = vmatmul.mubr.bf16.gmra.mxu0 %v1049
          %v1124 = vpop.f32.mrf.mxu0
          %v1125 = vadd.f32 %v952, %v1124
          %v1126 = vpop.f32.mrf.mxu0
          %v1127 = vpop.f32.mrf.mxu0
          %v1128 = vadd.f32 %v957, %v1127
          %v1129 = vpop.f32.mrf.mxu0
          %1130 = vmatprep.mubr.bf16.mxu0 0
          %1131 = vmatmul.mubr.bf16.gmra.mxu0 %v1052
          %v1132 = vpop.f32.mrf.mxu0
          %v1133 = vadd.f32 %v962, %v1132
          %v1134 = vpop.f32.mrf.mxu0
          %v1135 = vpop.f32.mrf.mxu0
          %v1136 = vadd.f32 %v967, %v1135
          %v1137 = vpop.f32.mrf.mxu0
          %1138 = vmatprep.mubr.bf16.mxu0 0
          %1139 = vmatmul.mubr.bf16.gmra.mxu0 %v1055
          %v1140 = vpop.f32.mrf.mxu0
          %v1141 = vadd.f32 %v972, %v1140
          %v1142 = vpop.f32.mrf.mxu0
          %v1143 = vpop.f32.mrf.mxu0
          %v1144 = vadd.f32 %v977, %v1143
          %v1145 = vpop.f32.mrf.mxu0
          %1146 = vmatprep.mubr.bf16.mxu0 0
          %1147 = vmatmul.mubr.bf16.gmra.mxu0 %v1058
          %v1148 = vpop.f32.mrf.mxu0
          %v1149 = vadd.f32 %v982, %v1148
          %v1150 = vpop.f32.mrf.mxu0
          %v1151 = vpop.f32.mrf.mxu0
          %v1152 = vadd.f32 %v987, %v1151
          %v1153 = vpop.f32.mrf.mxu0
          %1154 = vmatprep.mubr.bf16.mxu0 0
          %1155 = vmatmul.mubr.bf16.gmra.mxu0 %v1061
          %v1156 = vpop.f32.mrf.mxu0
          %v1157 = vadd.f32 %v992, %v1156
          %v1158 = vpop.f32.mrf.mxu0
          %v1159 = vpop.f32.mrf.mxu0
          %v1160 = vadd.f32 %v997, %v1159
          %v1161 = vpop.f32.mrf.mxu0
          %1162 = vdwg.mxu0
          %v1163 = vpack.c.bf16 %v1104, %v1101
          %v1164 = vpack.c.bf16 %v1112, %v1109
          %v1165 = vpack.c.bf16 %v1120, %v1117
          %v1166 = vpack.c.bf16 %v1128, %v1125
          %v1167 = vpack.c.bf16 %v1136, %v1133
          %v1168 = vpack.c.bf16 %v1144, %v1141
          %v1169 = vpack.c.bf16 %v1152, %v1149
          %v1170 = vpack.c.bf16 %v1160, %v1157
          %v1179 = vunpack.c.l.b16 %v1163
          %v1180 = vunpack.c.h.b16 %v1163
          %v1181 = vunpack.c.l.b16 %v1164
          %v1182 = vunpack.c.h.b16 %v1164
          %v1183 = vunpack.c.l.b16 %v1165
          %v1184 = vunpack.c.h.b16 %v1165
          %v1185 = vunpack.c.l.b16 %v1166
          %v1186 = vunpack.c.h.b16 %v1166
          %v1187 = vunpack.c.l.b16 %v1167
          %v1188 = vunpack.c.h.b16 %v1167
          %v1189 = vunpack.c.l.b16 %v1168
          %v1190 = vunpack.c.h.b16 %v1168
          %v1191 = vunpack.c.l.b16 %v1169
          %v1192 = vunpack.c.h.b16 %v1169
          %v1193 = vunpack.c.l.b16 %v1170
          %v1194 = vunpack.c.h.b16 %v1170
          %v1195 = vpack.c.b16 %v1179, %v1179
          %v1196 = vpack.c.b16 %v1180, %v1180
          %v1197 = vpack.c.b16 %v1181, %v1181
          %v1198 = vpack.c.b16 %v1182, %v1182
          %v1199 = vpack.c.b16 %v1183, %v1183
          %v1200 = vpack.c.b16 %v1184, %v1184
          %v1201 = vpack.c.b16 %v1185, %v1185
          %v1202 = vpack.c.b16 %v1186, %v1186
          %v1203 = vpack.c.b16 %v1187, %v1187
          %v1204 = vpack.c.b16 %v1188, %v1188
          %v1205 = vpack.c.b16 %v1189, %v1189
          %v1206 = vpack.c.b16 %v1190, %v1190
          %v1207 = vpack.c.b16 %v1191, %v1191
          %v1208 = vpack.c.b16 %v1192, %v1192
          %v1209 = vpack.c.b16 %v1193, %v1193
          %v1210 = vpack.c.b16 %v1194, %v1194
          %s1227 = scalar_lea.vmem [#allocation3], 64
          %1228 = vst.msk [vmem:[%s1227] sm:$0xf] %vm868, %v1195
          %1229 = vst.msk [vmem:[%s1227 + $0x4] sm:$0xf] %vm868, %v1196
          %1230 = vst.msk [vmem:[%s1227 + $0x8] sm:$0xf] %vm868, %v1197
          %1231 = vst.msk [vmem:[%s1227 + $0xc] sm:$0xf] %vm868, %v1198
          %1232 = vst.msk [vmem:[%s1227 + $0x10] sm:$0xf] %vm868, %v1199
          %1233 = vst.msk [vmem:[%s1227 + $0x14] sm:$0xf] %vm868, %v1200
          %1234 = vst.msk [vmem:[%s1227 + $0x18] sm:$0xf] %vm868, %v1201
          %1235 = vst.msk [vmem:[%s1227 + $0x1c] sm:$0xf] %vm868, %v1202
          %1236 = vst.msk [vmem:[%s1227 + $0x20] sm:$0xf] %vm868, %v1203
          %1237 = vst.msk [vmem:[%s1227 + $0x24] sm:$0xf] %vm868, %v1204
          %1238 = vst.msk [vmem:[%s1227 + $0x28] sm:$0xf] %vm868, %v1205
          %1239 = vst.msk [vmem:[%s1227 + $0x2c] sm:$0xf] %vm868, %v1206
          %1240 = vst.msk [vmem:[%s1227 + $0x30] sm:$0xf] %vm868, %v1207
          %1241 = vst.msk [vmem:[%s1227 + $0x34] sm:$0xf] %vm868, %v1208
          %1242 = vst.msk [vmem:[%s1227 + $0x38] sm:$0xf] %vm868, %v1209
          %1243 = vst.msk [vmem:[%s1227 + $0x3c] sm:$0xf] %vm868, %v1210
        $region64: #{cross_attention_forward.1} parent=51 // pred_fallthru
          _
        %s1244 = smul.u32 %s30, 8
        %s1245 = sshra.s32 %s1244, 3
        %s1246 = sand.u32 %s1244, 7
        %s1247 = smul.addr %s1245, 4
        %s1248 = scalar_lea.vmem [#allocation2], %s1247
        %v1249 = vld [vmem:[%s1248] sm:$0xf]
        %v1250 = vld [vmem:[%s1248 + $0x4] sm:$0xf]
        %v1251 = vld [vmem:[#allocation2] sm:$0xf]
        %v1252 = vld [vmem:[#allocation2 + $0x4] sm:$0xf]
        %v1253 = vld [vmem:[#allocation3] sm:$0xf]
        %v1254 = vld [vmem:[#allocation3 + $0x4] sm:$0xf]
        %v1255 = vld [vmem:[#allocation3 + $0x8] sm:$0xf]
        %v1256 = vld [vmem:[#allocation3 + $0xc] sm:$0xf]
        %v1257 = vld [vmem:[#allocation3 + $0x10] sm:$0xf]
        %v1258 = vld [vmem:[#allocation3 + $0x14] sm:$0xf]
        %v1259 = vld [vmem:[#allocation3 + $0x18] sm:$0xf]
        %v1260 = vld [vmem:[#allocation3 + $0x1c] sm:$0xf]
        %v1261 = vld [vmem:[#allocation3 + $0x20] sm:$0xf]
        %v1262 = vld [vmem:[#allocation3 + $0x24] sm:$0xf]
        %v1263 = vld [vmem:[#allocation3 + $0x28] sm:$0xf]
        %v1264 = vld [vmem:[#allocation3 + $0x2c] sm:$0xf]
        %v1265 = vld [vmem:[#allocation3 + $0x30] sm:$0xf]
        %v1266 = vld [vmem:[#allocation3 + $0x34] sm:$0xf]
        %v1267 = vld [vmem:[#allocation3 + $0x38] sm:$0xf]
        %v1268 = vld [vmem:[#allocation3 + $0x3c] sm:$0xf]
        %v1269 = vld [vmem:[#allocation3 + $0x40] sm:$0xf]
        %v1270 = vld [vmem:[#allocation3 + $0x44] sm:$0xf]
        %v1271 = vld [vmem:[#allocation3 + $0x48] sm:$0xf]
        %v1272 = vld [vmem:[#allocation3 + $0x4c] sm:$0xf]
        %v1273 = vld [vmem:[#allocation3 + $0x50] sm:$0xf]
        %v1274 = vld [vmem:[#allocation3 + $0x54] sm:$0xf]
        %v1275 = vld [vmem:[#allocation3 + $0x58] sm:$0xf]
        %v1276 = vld [vmem:[#allocation3 + $0x5c] sm:$0xf]
        %v1277 = vld [vmem:[#allocation3 + $0x60] sm:$0xf]
        %v1278 = vld [vmem:[#allocation3 + $0x64] sm:$0xf]
        %v1279 = vld [vmem:[#allocation3 + $0x68] sm:$0xf]
        %v1280 = vld [vmem:[#allocation3 + $0x6c] sm:$0xf]
        %v1281 = vld [vmem:[#allocation3 + $0x70] sm:$0xf]
        %v1282 = vld [vmem:[#allocation3 + $0x74] sm:$0xf]
        %v1283 = vld [vmem:[#allocation3 + $0x78] sm:$0xf]
        %v1284 = vld [vmem:[#allocation3 + $0x7c] sm:$0xf]
        %1285 = vmatprep.subr.bf16.mxu0 0
        %1286 = vmatpush1.bf16.xpose.msra.mxu0 0
        %1287 = vmatprep.subr.bf16.mxu0 0
        %1288 = vmatpush1.bf16.xpose.msra.mxu0 0
        %1289 = vmatprep.subr.bf16.mxu0 0
        %1290 = vmatpush1.bf16.xpose.msra.mxu0 0
        %1291 = vmatprep.subr.bf16.mxu0 0
        %1292 = vmatpush1.bf16.xpose.msra.mxu0 0
        %1293 = vmatprep.subr.bf16.mxu0 0
        %1294 = vmatpush1.bf16.xpose.msra.mxu0 0
        %1295 = vmatprep.subr.bf16.mxu0 0
        %1296 = vmatpush1.bf16.xpose.msra.mxu0 0
        %1297 = vmatprep.subr.bf16.mxu0 0
        %1298 = vmatpush1.bf16.xpose.msra.mxu0 0
        %1299 = vmatprep.subr.bf16.mxu0 0
        %1300 = vmatpush1.bf16.xpose.msra.mxu0 %v1251
        %1301 = vmatprep.subr.bf16.mxu0 0
        %1302 = vmatpush2.bf16.xpose.msra.mxu0 0
        %1303 = vmatprep.subr.bf16.mxu0 0
        %1304 = vmatpush2.bf16.xpose.msra.mxu0 0
        %1305 = vmatprep.subr.bf16.mxu0 0
        %1306 = vmatpush2.bf16.xpose.msra.mxu0 0
        %1307 = vmatprep.subr.bf16.mxu0 0
        %1308 = vmatpush2.bf16.xpose.msra.mxu0 0
        %1309 = vmatprep.subr.bf16.mxu0 0
        %1310 = vmatpush2.bf16.xpose.msra.mxu0 0
        %1311 = vmatprep.subr.bf16.mxu0 0
        %1312 = vmatpush2.bf16.xpose.msra.mxu0 0
        %1313 = vmatprep.subr.bf16.mxu0 0
        %1314 = vmatpush2.bf16.xpose.msra.mxu0 0
        %1315 = vmatprep.subr.bf16.mxu0 0
        %1316 = vmatpush2.bf16.xpose.msra.mxu0 0
        %1317 = vmatprep.mubr.bf16.mxu0 0
        %1318 = vmatmul.mubr.bf16.gmra.mxu0 %v1249
        %v1319 = vpop.f32.mrf.mxu0
        %v1320 = vadd.f32 0.0, %v1319
        %v1321 = vpop.f32.mrf.mxu0
        %v1322 = vpop.f32.mrf.mxu0
        %v1323 = vpop.f32.mrf.mxu0
        %1324 = vdwg.mxu0
        %1325 = vmatprep.subr.bf16.mxu0 0
        %1326 = vmatpush1.bf16.xpose.msra.mxu0 0
        %1327 = vmatprep.subr.bf16.mxu0 0
        %1328 = vmatpush1.bf16.xpose.msra.mxu0 0
        %1329 = vmatprep.subr.bf16.mxu0 0
        %1330 = vmatpush1.bf16.xpose.msra.mxu0 0
        %1331 = vmatprep.subr.bf16.mxu0 0
        %1332 = vmatpush1.bf16.xpose.msra.mxu0 0
        %1333 = vmatprep.subr.bf16.mxu0 0
        %1334 = vmatpush1.bf16.xpose.msra.mxu0 0
        %1335 = vmatprep.subr.bf16.mxu0 0
        %1336 = vmatpush1.bf16.xpose.msra.mxu0 0
        %1337 = vmatprep.subr.bf16.mxu0 0
        %1338 = vmatpush1.bf16.xpose.msra.mxu0 0
        %1339 = vmatprep.subr.bf16.mxu0 0
        %1340 = vmatpush1.bf16.xpose.msra.mxu0 %v1252
        %1341 = vmatprep.subr.bf16.mxu0 0
        %1342 = vmatpush2.bf16.xpose.msra.mxu0 0
        %1343 = vmatprep.subr.bf16.mxu0 0
        %1344 = vmatpush2.bf16.xpose.msra.mxu0 0
        %1345 = vmatprep.subr.bf16.mxu0 0
        %1346 = vmatpush2.bf16.xpose.msra.mxu0 0
        %1347 = vmatprep.subr.bf16.mxu0 0
        %1348 = vmatpush2.bf16.xpose.msra.mxu0 0
        %1349 = vmatprep.subr.bf16.mxu0 0
        %1350 = vmatpush2.bf16.xpose.msra.mxu0 0
        %1351 = vmatprep.subr.bf16.mxu0 0
        %1352 = vmatpush2.bf16.xpose.msra.mxu0 0
        %1353 = vmatprep.subr.bf16.mxu0 0
        %1354 = vmatpush2.bf16.xpose.msra.mxu0 0
        %1355 = vmatprep.subr.bf16.mxu0 0
        %1356 = vmatpush2.bf16.xpose.msra.mxu0 0
        %1357 = vmatprep.mubr.bf16.mxu0 0
        %1358 = vmatmul.mubr.bf16.gmra.mxu0 %v1250
        %v1359 = vpop.f32.mrf.mxu0
        %v1360 = vadd.f32 0.0, %v1359
        %v1361 = vpop.f32.mrf.mxu0
        %v1362 = vpop.f32.mrf.mxu0
        %v1363 = vpop.f32.mrf.mxu0
        %1364 = vdwg.mxu0
        %v1365 = vld [vmem:[%s356] sm:$0x3]
        %v1366 = vld [vmem:[%s356 + $0x2] sm:$0x3]
        %vm1367 = vnez %v1365
        %vm1368 = vnez %v1366
        %v1369 = vsel %vm1367, 16843009, 0
        %v1370 = vsel %vm1368, 16843009, 0
        %v1371 = vunpack.c.0.s8 %v1369
        %v1372 = vunpack.c.0.s8 %v1370
        %vm1373 = vcmp.ne.s32.totalorder %v1371, 0
        %vm1374 = vcmp.ne.s32.totalorder %v1372, 0
        %v1375 = vsel %vm1373, %v1320, -1e+09
        %v1376 = vsel %vm1374, %v1360, -1e+09
        %vm1377 = vcmask 64512
        %v1378 = vsel %vm1377, %v1375, -inf
        %1379 = vmax.xlane.f32.xlu0 %v1378
        %v1380 = vpop.xlane.xlu0 %1379
        %v1381 = vsel %vm1377, %v1376, -inf
        %1382 = vmax.xlane.f32.xlu0 %v1381
        %v1383 = vpop.xlane.xlu0 %1382
        %v1384 = vsub.f32 %v1375, %v1380
        %v1385 = vsub.f32 %v1376, %v1383
        %v1386 = vmul.f32 %v1384, 0.17677669
        %v1387 = vmul.f32 %v1385, 0.17677669
        %v1388 = vmul.f32 %v1386, 1.442695
        %v1389 = vpow.pop %v1388
        %v1390 = vmul.f32 %v1387, 1.442695
        %v1391 = vpow.pop %v1390
        %v1392 = vsel %vm1377, %v1389, 0.0
        %1393 = vadd.xlane.f32.xlu0 %v1392
        %v1394 = vpop.xlane.xlu0 %1393
        %v1395 = vsel %vm1377, %v1391, 0.0
        %1396 = vadd.xlane.f32.xlu0 %v1395
        %v1397 = vpop.xlane.xlu0 %1396
        %v1398 = vpack.c.bf16 %v1389, %v1389
        %v1399 = vpack.c.bf16 %v1391, %v1391
        %v1401 = vsel %vm1377, %v1398, 0
        %vm1403 = vcmask 1043456
        %v1405 = vsel %vm1403, %v1251, 0
        %1407 = vmatprep.subr.bf16.mxu0 0
        %1408 = vmatpush1.bf16.msra.mxu0 0
        %1409 = vmatprep.subr.bf16.mxu0 0
        %1410 = vmatpush1.bf16.msra.mxu0 0
        %1411 = vmatprep.subr.bf16.mxu0 0
        %1412 = vmatpush1.bf16.msra.mxu0 0
        %1413 = vmatprep.subr.bf16.mxu0 0
        %1414 = vmatpush1.bf16.msra.mxu0 0
        %1415 = vmatprep.subr.bf16.mxu0 0
        %1416 = vmatpush1.bf16.msra.mxu0 0
        %1417 = vmatprep.subr.bf16.mxu0 0
        %1418 = vmatpush1.bf16.msra.mxu0 0
        %1419 = vmatprep.subr.bf16.mxu0 0
        %1420 = vmatpush1.bf16.msra.mxu0 0
        %1421 = vmatprep.subr.bf16.mxu0 0
        %1422 = vmatpush1.bf16.msra.mxu0 %v1405
        %1423 = vmatprep.subr.bf16.mxu0 0
        %1424 = vmatpush2.bf16.msra.mxu0 0
        %1425 = vmatprep.subr.bf16.mxu0 0
        %1426 = vmatpush2.bf16.msra.mxu0 0
        %1427 = vmatprep.subr.bf16.mxu0 0
        %1428 = vmatpush2.bf16.msra.mxu0 0
        %1429 = vmatprep.subr.bf16.mxu0 0
        %1430 = vmatpush2.bf16.msra.mxu0 0
        %1431 = vmatprep.subr.bf16.mxu0 0
        %1432 = vmatpush2.bf16.msra.mxu0 0
        %1433 = vmatprep.subr.bf16.mxu0 0
        %1434 = vmatpush2.bf16.msra.mxu0 0
        %1435 = vmatprep.subr.bf16.mxu0 0
        %1436 = vmatpush2.bf16.msra.mxu0 0
        %1437 = vmatprep.subr.bf16.mxu0 0
        %1438 = vmatpush2.bf16.msra.mxu0 0
        %1439 = vmatprep.mubr.bf16.mxu0 0
        %1440 = vmatmul.mubr.bf16.gmra.mxu0 %v1401
        %v1441 = vpop.f32.mrf.mxu0
        %v1442 = vadd.f32 0.0, %v1441
        %v1443 = vpop.f32.mrf.mxu0
        %v1444 = vpop.f32.mrf.mxu0
        %v1445 = vpop.f32.mrf.mxu0
        %1446 = vdwg.mxu0
        %v1448 = vsel %vm1377, %v1399, 0
        %v1451 = vsel %vm1403, %v1252, 0
        %1453 = vmatprep.subr.bf16.mxu0 0
        %1454 = vmatpush1.bf16.msra.mxu0 0
        %1455 = vmatprep.subr.bf16.mxu0 0
        %1456 = vmatpush1.bf16.msra.mxu0 0
        %1457 = vmatprep.subr.bf16.mxu0 0
        %1458 = vmatpush1.bf16.msra.mxu0 0
        %1459 = vmatprep.subr.bf16.mxu0 0
        %1460 = vmatpush1.bf16.msra.mxu0 0
        %1461 = vmatprep.subr.bf16.mxu0 0
        %1462 = vmatpush1.bf16.msra.mxu0 0
        %1463 = vmatprep.subr.bf16.mxu0 0
        %1464 = vmatpush1.bf16.msra.mxu0 0
        %1465 = vmatprep.subr.bf16.mxu0 0
        %1466 = vmatpush1.bf16.msra.mxu0 0
        %1467 = vmatprep.subr.bf16.mxu0 0
        %1468 = vmatpush1.bf16.msra.mxu0 %v1451
        %1469 = vmatprep.subr.bf16.mxu0 0
        %1470 = vmatpush2.bf16.msra.mxu0 0
        %1471 = vmatprep.subr.bf16.mxu0 0
        %1472 = vmatpush2.bf16.msra.mxu0 0
        %1473 = vmatprep.subr.bf16.mxu0 0
        %1474 = vmatpush2.bf16.msra.mxu0 0
        %1475 = vmatprep.subr.bf16.mxu0 0
        %1476 = vmatpush2.bf16.msra.mxu0 0
        %1477 = vmatprep.subr.bf16.mxu0 0
        %1478 = vmatpush2.bf16.msra.mxu0 0
        %1479 = vmatprep.subr.bf16.mxu0 0
        %1480 = vmatpush2.bf16.msra.mxu0 0
        %1481 = vmatprep.subr.bf16.mxu0 0
        %1482 = vmatpush2.bf16.msra.mxu0 0
        %1483 = vmatprep.subr.bf16.mxu0 0
        %1484 = vmatpush2.bf16.msra.mxu0 0
        %1485 = vmatprep.mubr.bf16.mxu0 0
        %1486 = vmatmul.mubr.bf16.gmra.mxu0 %v1448
        %v1487 = vpop.f32.mrf.mxu0
        %v1488 = vadd.f32 0.0, %v1487
        %v1489 = vpop.f32.mrf.mxu0
        %v1490 = vpop.f32.mrf.mxu0
        %v1491 = vpop.f32.mrf.mxu0
        %1492 = vdwg.mxu0
        %v1493 = vrcp.pop %v1394
        %v1494 = vrcp.pop %v1397
        %v1495 = vmul.f32 %v1442, %v1493
        %v1496 = vmul.f32 %v1488, %v1494
        %v1513 = vunpack.c.l.b16 %v1253
        %v1514 = vunpack.c.l.b16 %v1254
        %v1515 = vunpack.c.l.b16 %v1255
        %v1516 = vunpack.c.l.b16 %v1256
        %v1517 = vunpack.c.l.b16 %v1257
        %v1518 = vunpack.c.l.b16 %v1258
        %v1519 = vunpack.c.l.b16 %v1259
        %v1520 = vunpack.c.l.b16 %v1260
        %v1521 = vunpack.c.l.b16 %v1261
        %v1522 = vunpack.c.l.b16 %v1262
        %v1523 = vunpack.c.l.b16 %v1263
        %v1524 = vunpack.c.l.b16 %v1264
        %v1525 = vunpack.c.l.b16 %v1265
        %v1526 = vunpack.c.l.b16 %v1266
        %v1527 = vunpack.c.l.b16 %v1267
        %v1528 = vunpack.c.l.b16 %v1268
        %v1529 = vpack.c.b16 %v1514, %v1513
        %v1530 = vpack.c.b16 %v1516, %v1515
        %v1531 = vpack.c.b16 %v1518, %v1517
        %v1532 = vpack.c.b16 %v1520, %v1519
        %v1533 = vpack.c.b16 %v1522, %v1521
        %v1534 = vpack.c.b16 %v1524, %v1523
        %v1535 = vpack.c.b16 %v1526, %v1525
        %v1536 = vpack.c.b16 %v1528, %v1527
        %1545 = vmatprep.subr.bf16.mxu0 0
        %1546 = vmatpush1.bf16.msra.mxu0 %v1536
        %1547 = vmatprep.subr.bf16.mxu0 0
        %1548 = vmatpush1.bf16.msra.mxu0 %v1535
        %1549 = vmatprep.subr.bf16.mxu0 0
        %1550 = vmatpush1.bf16.msra.mxu0 %v1534
        %1551 = vmatprep.subr.bf16.mxu0 0
        %1552 = vmatpush1.bf16.msra.mxu0 %v1533
        %1553 = vmatprep.subr.bf16.mxu0 0
        %1554 = vmatpush1.bf16.msra.mxu0 %v1532
        %1555 = vmatprep.subr.bf16.mxu0 0
        %1556 = vmatpush1.bf16.msra.mxu0 %v1531
        %1557 = vmatprep.subr.bf16.mxu0 0
        %1558 = vmatpush1.bf16.msra.mxu0 %v1530
        %1559 = vmatprep.subr.bf16.mxu0 0
        %1560 = vmatpush1.bf16.msra.mxu0 %v1529
        %1561 = vmatprep.subr.bf16.mxu0 0
        %1562 = vmatpush2.bf16.msra.mxu0 0
        %1563 = vmatprep.subr.bf16.mxu0 0
        %1564 = vmatpush2.bf16.msra.mxu0 0
        %1565 = vmatprep.subr.bf16.mxu0 0
        %1566 = vmatpush2.bf16.msra.mxu0 0
        %1567 = vmatprep.subr.bf16.mxu0 0
        %1568 = vmatpush2.bf16.msra.mxu0 0
        %1569 = vmatprep.subr.bf16.mxu0 0
        %1570 = vmatpush2.bf16.msra.mxu0 0
        %1571 = vmatprep.subr.bf16.mxu0 0
        %1572 = vmatpush2.bf16.msra.mxu0 0
        %1573 = vmatprep.subr.bf16.mxu0 0
        %1574 = vmatpush2.bf16.msra.mxu0 0
        %1575 = vmatprep.subr.bf16.mxu0 0
        %1576 = vmatpush2.bf16.msra.mxu0 0
        %1577 = vmatprep.mubr.bf16.mxu0 0
        %1578 = vmatmul.mubr.bf16.gmra.mxu0 %v1249
        %v1579 = vpop.f32.mrf.mxu0
        %v1580 = vadd.f32 0.0, %v1579
        %v1581 = vpop.f32.mrf.mxu0
        %v1582 = vpop.f32.mrf.mxu0
        %v1583 = vpop.f32.mrf.mxu0
        %1584 = vdwg.mxu0
        %v1601 = vunpack.c.l.b16 %v1269
        %v1602 = vunpack.c.l.b16 %v1270
        %v1603 = vunpack.c.l.b16 %v1271
        %v1604 = vunpack.c.l.b16 %v1272
        %v1605 = vunpack.c.l.b16 %v1273
        %v1606 = vunpack.c.l.b16 %v1274
        %v1607 = vunpack.c.l.b16 %v1275
        %v1608 = vunpack.c.l.b16 %v1276
        %v1609 = vunpack.c.l.b16 %v1277
        %v1610 = vunpack.c.l.b16 %v1278
        %v1611 = vunpack.c.l.b16 %v1279
        %v1612 = vunpack.c.l.b16 %v1280
        %v1613 = vunpack.c.l.b16 %v1281
        %v1614 = vunpack.c.l.b16 %v1282
        %v1615 = vunpack.c.l.b16 %v1283
        %v1616 = vunpack.c.l.b16 %v1284
        %v1617 = vpack.c.b16 %v1602, %v1601
        %v1618 = vpack.c.b16 %v1604, %v1603
        %v1619 = vpack.c.b16 %v1606, %v1605
        %v1620 = vpack.c.b16 %v1608, %v1607
        %v1621 = vpack.c.b16 %v1610, %v1609
        %v1622 = vpack.c.b16 %v1612, %v1611
        %v1623 = vpack.c.b16 %v1614, %v1613
        %v1624 = vpack.c.b16 %v1616, %v1615
        %1633 = vmatprep.subr.bf16.mxu0 0
        %1634 = vmatpush1.bf16.msra.mxu0 %v1624
        %1635 = vmatprep.subr.bf16.mxu0 0
        %1636 = vmatpush1.bf16.msra.mxu0 %v1623
        %1637 = vmatprep.subr.bf16.mxu0 0
        %1638 = vmatpush1.bf16.msra.mxu0 %v1622
        %1639 = vmatprep.subr.bf16.mxu0 0
        %1640 = vmatpush1.bf16.msra.mxu0 %v1621
        %1641 = vmatprep.subr.bf16.mxu0 0
        %1642 = vmatpush1.bf16.msra.mxu0 %v1620
        %1643 = vmatprep.subr.bf16.mxu0 0
        %1644 = vmatpush1.bf16.msra.mxu0 %v1619
        %1645 = vmatprep.subr.bf16.mxu0 0
        %1646 = vmatpush1.bf16.msra.mxu0 %v1618
        %1647 = vmatprep.subr.bf16.mxu0 0
        %1648 = vmatpush1.bf16.msra.mxu0 %v1617
        %1649 = vmatprep.subr.bf16.mxu0 0
        %1650 = vmatpush2.bf16.msra.mxu0 0
        %1651 = vmatprep.subr.bf16.mxu0 0
        %1652 = vmatpush2.bf16.msra.mxu0 0
        %1653 = vmatprep.subr.bf16.mxu0 0
        %1654 = vmatpush2.bf16.msra.mxu0 0
        %1655 = vmatprep.subr.bf16.mxu0 0
        %1656 = vmatpush2.bf16.msra.mxu0 0
        %1657 = vmatprep.subr.bf16.mxu0 0
        %1658 = vmatpush2.bf16.msra.mxu0 0
        %1659 = vmatprep.subr.bf16.mxu0 0
        %1660 = vmatpush2.bf16.msra.mxu0 0
        %1661 = vmatprep.subr.bf16.mxu0 0
        %1662 = vmatpush2.bf16.msra.mxu0 0
        %1663 = vmatprep.subr.bf16.mxu0 0
        %1664 = vmatpush2.bf16.msra.mxu0 0
        %1665 = vmatprep.mubr.bf16.mxu0 0
        %1666 = vmatmul.mubr.bf16.gmra.mxu0 %v1250
        %v1667 = vpop.f32.mrf.mxu0
        %v1668 = vadd.f32 0.0, %v1667
        %v1669 = vpop.f32.mrf.mxu0
        %v1670 = vpop.f32.mrf.mxu0
        %v1671 = vpop.f32.mrf.mxu0
        %1672 = vdwg.mxu0
        %v1673 = vld [vmem:[%s365] sm:$0x3]
        %v1674 = vld [vmem:[%s365 + $0x2] sm:$0x3]
        %vm1675 = vnez %v1673
        %vm1676 = vnez %v1674
        %v1677 = vsel %vm1675, 16843009, 0
        %v1678 = vsel %vm1676, 16843009, 0
        %v1679 = vunpack.c.0.s8 %v1677
        %v1680 = vunpack.c.0.s8 %v1678
        %vm1681 = vcmp.ne.s32.totalorder %v1679, 0
        %vm1682 = vcmp.ne.s32.totalorder %v1680, 0
        %v1683 = vsel %vm1681, %v1580, -1e+09
        %v1684 = vsel %vm1682, %v1668, -1e+09
        %vm1685 = vcmask 130048
        %v1686 = vsel %vm1685, %v1683, -inf
        %1687 = vmax.xlane.f32.xlu0 %v1686
        %v1688 = vpop.xlane.xlu0 %1687
        %v1689 = vsel %vm1685, %v1684, -inf
        %1690 = vmax.xlane.f32.xlu0 %v1689
        %v1691 = vpop.xlane.xlu0 %1690
        %v1692 = vsub.f32 %v1683, %v1688
        %v1693 = vsub.f32 %v1684, %v1691
        %v1694 = vmul.f32 %v1692, 0.17677669
        %v1695 = vmul.f32 %v1693, 0.17677669
        %v1696 = vmul.f32 %v1694, 1.442695
        %v1697 = vpow.pop %v1696
        %v1698 = vmul.f32 %v1695, 1.442695
        %v1699 = vpow.pop %v1698
        %v1700 = vsel %vm1685, %v1697, 0.0
        %1701 = vadd.xlane.f32.xlu0 %v1700
        %v1702 = vpop.xlane.xlu0 %1701
        %v1703 = vsel %vm1685, %v1699, 0.0
        %1704 = vadd.xlane.f32.xlu0 %v1703
        %v1705 = vpop.xlane.xlu0 %1704
        %v1706 = vpack.c.bf16 %v1697, %v1697
        %v1707 = vpack.c.bf16 %v1699, %v1699
        %v1709 = vsel %vm1685, %v1706, 0
        %v1712 = vsel %vm1685, %v1529, 0
        %v1715 = vsel %vm1685, %v1530, 0
        %v1718 = vsel %vm1685, %v1531, 0
        %v1721 = vsel %vm1685, %v1532, 0
        %v1724 = vsel %vm1685, %v1533, 0
        %v1727 = vsel %vm1685, %v1534, 0
        %v1730 = vsel %vm1685, %v1535, 0
        %v1733 = vsel %vm1685, %v1536, 0
        %1735 = vmatprep.subr.bf16.mxu0 0
        %1736 = vmatpush1.bf16.xpose.msra.mxu0 %v1733
        %1737 = vmatprep.subr.bf16.mxu0 0
        %1738 = vmatpush1.bf16.xpose.msra.mxu0 %v1730
        %1739 = vmatprep.subr.bf16.mxu0 0
        %1740 = vmatpush1.bf16.xpose.msra.mxu0 %v1727
        %1741 = vmatprep.subr.bf16.mxu0 0
        %1742 = vmatpush1.bf16.xpose.msra.mxu0 %v1724
        %1743 = vmatprep.subr.bf16.mxu0 0
        %1744 = vmatpush1.bf16.xpose.msra.mxu0 %v1721
        %1745 = vmatprep.subr.bf16.mxu0 0
        %1746 = vmatpush1.bf16.xpose.msra.mxu0 %v1718
        %1747 = vmatprep.subr.bf16.mxu0 0
        %1748 = vmatpush1.bf16.xpose.msra.mxu0 %v1715
        %1749 = vmatprep.subr.bf16.mxu0 0
        %1750 = vmatpush1.bf16.xpose.msra.mxu0 %v1712
        %1751 = vmatprep.subr.bf16.mxu0 0
        %1752 = vmatpush2.bf16.xpose.msra.mxu0 0
        %1753 = vmatprep.subr.bf16.mxu0 0
        %1754 = vmatpush2.bf16.xpose.msra.mxu0 0
        %1755 = vmatprep.subr.bf16.mxu0 0
        %1756 = vmatpush2.bf16.xpose.msra.mxu0 0
        %1757 = vmatprep.subr.bf16.mxu0 0
        %1758 = vmatpush2.bf16.xpose.msra.mxu0 0
        %1759 = vmatprep.subr.bf16.mxu0 0
        %1760 = vmatpush2.bf16.xpose.msra.mxu0 0
        %1761 = vmatprep.subr.bf16.mxu0 0
        %1762 = vmatpush2.bf16.xpose.msra.mxu0 0
        %1763 = vmatprep.subr.bf16.mxu0 0
        %1764 = vmatpush2.bf16.xpose.msra.mxu0 0
        %1765 = vmatprep.subr.bf16.mxu0 0
        %1766 = vmatpush2.bf16.xpose.msra.mxu0 0
        %1767 = vmatprep.mubr.bf16.mxu0 0
        %1768 = vmatmul.mubr.bf16.gmra.mxu0 %v1709
        %v1769 = vpop.f32.mrf.mxu0
        %v1770 = vadd.f32 0.0, %v1769
        %v1771 = vpop.f32.mrf.mxu0
        %v1772 = vpop.f32.mrf.mxu0
        %v1773 = vpop.f32.mrf.mxu0
        %1774 = vdwg.mxu0
        %v1776 = vsel %vm1685, %v1707, 0
        %v1779 = vsel %vm1685, %v1617, 0
        %v1782 = vsel %vm1685, %v1618, 0
        %v1785 = vsel %vm1685, %v1619, 0
        %v1788 = vsel %vm1685, %v1620, 0
        %v1791 = vsel %vm1685, %v1621, 0
        %v1794 = vsel %vm1685, %v1622, 0
        %v1797 = vsel %vm1685, %v1623, 0
        %v1800 = vsel %vm1685, %v1624, 0
        %1802 = vmatprep.subr.bf16.mxu0 0
        %1803 = vmatpush1.bf16.xpose.msra.mxu0 %v1800
        %1804 = vmatprep.subr.bf16.mxu0 0
        %1805 = vmatpush1.bf16.xpose.msra.mxu0 %v1797
        %1806 = vmatprep.subr.bf16.mxu0 0
        %1807 = vmatpush1.bf16.xpose.msra.mxu0 %v1794
        %1808 = vmatprep.subr.bf16.mxu0 0
        %1809 = vmatpush1.bf16.xpose.msra.mxu0 %v1791
        %1810 = vmatprep.subr.bf16.mxu0 0
        %1811 = vmatpush1.bf16.xpose.msra.mxu0 %v1788
        %1812 = vmatprep.subr.bf16.mxu0 0
        %1813 = vmatpush1.bf16.xpose.msra.mxu0 %v1785
        %1814 = vmatprep.subr.bf16.mxu0 0
        %1815 = vmatpush1.bf16.xpose.msra.mxu0 %v1782
        %1816 = vmatprep.subr.bf16.mxu0 0
        %1817 = vmatpush1.bf16.xpose.msra.mxu0 %v1779
        %1818 = vmatprep.subr.bf16.mxu0 0
        %1819 = vmatpush2.bf16.xpose.msra.mxu0 0
        %1820 = vmatprep.subr.bf16.mxu0 0
        %1821 = vmatpush2.bf16.xpose.msra.mxu0 0
        %1822 = vmatprep.subr.bf16.mxu0 0
        %1823 = vmatpush2.bf16.xpose.msra.mxu0 0
        %1824 = vmatprep.subr.bf16.mxu0 0
        %1825 = vmatpush2.bf16.xpose.msra.mxu0 0
        %1826 = vmatprep.subr.bf16.mxu0 0
        %1827 = vmatpush2.bf16.xpose.msra.mxu0 0
        %1828 = vmatprep.subr.bf16.mxu0 0
        %1829 = vmatpush2.bf16.xpose.msra.mxu0 0
        %1830 = vmatprep.subr.bf16.mxu0 0
        %1831 = vmatpush2.bf16.xpose.msra.mxu0 0
        %1832 = vmatprep.subr.bf16.mxu0 0
        %1833 = vmatpush2.bf16.xpose.msra.mxu0 0
        %1834 = vmatprep.mubr.bf16.mxu0 0
        %1835 = vmatmul.mubr.bf16.gmra.mxu0 %v1776
        %v1836 = vpop.f32.mrf.mxu0
        %v1837 = vadd.f32 0.0, %v1836
        %v1838 = vpop.f32.mrf.mxu0
        %v1839 = vpop.f32.mrf.mxu0
        %v1840 = vpop.f32.mrf.mxu0
        %1841 = vdwg.mxu0
        %v1842 = vrcp.pop %v1702
        %v1843 = vrcp.pop %v1705
        %v1844 = vmul.f32 %v1770, %v1842
        %v1845 = vmul.f32 %v1837, %v1843
        %v1846 = vadd.f32 %v1495, %v1844
        %v1847 = vadd.f32 %v1496, %v1845
        %v1848 = vadd.f32 %v1846, 0.5
        %v1849 = vadd.f32 %v1847, 0.5
        %v1850 = vmax.f32 %v1848, 0.0
        %v1851 = vmax.f32 %v1849, 0.0
        %v1852 = vmin.f32 %v1850, 63.0
        %v1853 = vmin.f32 %v1851, 63.0
        %v1854 = vcvt.f32.s32.to.zero.pseudo %v1852
        %v1855 = vcvt.f32.s32.to.zero.pseudo %v1853
        %1856 = vst [vmem:[%s437] sm:$0xff] %v1854
        %1857 = vst [vmem:[%s437 + $0x8] sm:$0xff] %v1855
        %s1858 = smul.u32 2, %s29
        %p1859 = scmp.lt.s32.totalorder %s1858, 3
        %s1860 = scalar_select %p1859, %s1858, 3
        %p1861 = scmp.lt.s32.totalorder %s30, 0
        %s1862 = scalar_select %p1861, %s30, 0
        %s1863 = sadd.s32 %s1862, %s1860
        %s1864 = smul.addr %s1863, 8
        %s1865 = scalar_lea.vmem %s8, %s1864
        // Predicated region
        $region65: #{cross_attention_forward.1} parent=51 // pred_check
          %p1866 = pneg %p249
        $region66: #{cross_attention_forward.1} parent=51 // pred_check_branch
          %1868 = sbr.rel (%p1866) target = $region68
        $region67: #{cross_attention_forward.1} parent=51 // pred_region
          %s1869 = smul.u32 2, %s29
        $region68: #{cross_attention_forward.1} parent=51 // pred_fallthru
          _
      $region52: #{cross_attention_forward.1} parent=5 // pred_fallthru
        _
      %p1870 = scmp.le.s32.totalorder 2, %s20
      // Predicated region
      $region69: #{cross_attention_forward.1} parent=5 // pred_check
        %p1871 = pneg %p1870
      $region70: #{cross_attention_forward.1} parent=5 // pred_check_branch
        %1873 = sbr.rel (%p1871) target = $region72
      $region71: #{cross_attention_forward.1} parent=5 // pred_region
        %s1874 = ssub.s32 %s20, 2
        // Predicated region
        $region73: #{cross_attention_forward.1} parent=71 // pred_check
          %p1875 = pneg %p255
        $region74: #{cross_attention_forward.1} parent=71 // pred_check_branch
          %1877 = sbr.rel (%p1875) target = $region76
        $region75: #{cross_attention_forward.1} parent=71 // pred_region
          %s1878 = smul.u32 2, %s31
          %p1879 = scmp.lt.s32.totalorder %s1878, 3
          %s1880 = scalar_select %p1879, %s1878, 3
          %p1881 = scmp.lt.s32.totalorder %s32, 0
          %s1882 = scalar_select %p1881, %s32, 0
          %s1883 = sadd.s32 %s1882, %s1880
          %s1884 = smul.addr %s1883, 8
          %s1885 = scalar_lea.vmem %s8, %s1884
        $region76: #{cross_attention_forward.1} parent=71 // pred_fallthru
          _
      $region72: #{cross_attention_forward.1} parent=5 // pred_fallthru
        _
    $region6: #{cross_attention_forward.1} parent=1 // loop_footer
      %s24 = sadd.s32 1, %s20
    $region7: #{cross_attention_forward.1} parent=1 // loop_footer_branch
      %19 = sbr.rel target = $region3
    $region8: #{cross_attention_forward.1} parent=1 // loop_exit
      _
    %1886 = vsyncpa [#allocation5], 1
    %s1887 = scalar_lea.sflag [#allocation5], 1
    %1888 = vsyncpa %s1887, 1
    %1889 = vsyncpa [#allocation7], 1
    %s1890 = scalar_lea.sflag [#allocation7], 1
    %1891 = vsyncpa %s1890, 1

// kernel: cross_attention_forward.1
$region0: #{cross_attention_forward.1}
  #allocation0 [shape = 'u32[]', space=smem, size = 0x4, offset = 0x4, fixed_abs, tag = 'smem constant byte address 0x4 - core index']
  #allocation1 [shape = 'u32[144,128]{1,0:T(1,128)}', space=vmem, size = 0x12000, scoped, tag = 'internal scratch']
  #allocation2 [shape = 'bf16[2,8,128]{2,1,0:T(8,128)(2,1)}', space=vmem, size = 0x1000, scoped, tag = 'scratch operand']
  #allocation3 [shape = 'bf16[2,128,16]{2,1,0:T(8,128)(2,1)}', space=vmem, size = 0x10000, scoped, tag = 'scratch operand']
  %s0 = inlined_call_operand.vmem [shape: bf16[4,8,32], index: 0, kind: input, shape index: {}]
  %s1 = inlined_call_operand.vmem [shape: bf16[4,4,16], index: 1, kind: input, shape index: {}]
  %s2 = inlined_call_operand.hbm [shape: s8[4,8,8], index: 2, kind: input, shape index: {}]
  %s3 = inlined_call_operand.hbm [shape: s8[4,8,16], index: 3, kind: input, shape index: {}]
  %s4 = inlined_call_operand.vmem [shape: bf16[32,128], index: 4, kind: input, shape index: {}]
  %s5 = inlined_call_operand.vmem [shape: f32[1,128], index: 5, kind: input, shape index: {}]
  %s6 = inlined_call_operand.vmem [shape: bf16[128,4], index: 6, kind: input, shape index: {}]
  %s7 = inlined_call_operand.vmem [shape: f32[128,1], index: 7, kind: input, shape index: {}]
  %s8 = inlined_call_operand.vmem [shape: s32[4,8,128], index: 8, kind: output, shape index: {}]
  %s9 = sld [smem:[#allocation0]]
  $region77: #{cross_attention_forward.1} parent=0
    _
  %s11 = ssub.s32 1, %s9
  %s12 = scalar_select 0, %s11, %s9
  $region1: #{cross_attention_forward.1} parent=0
    #allocation4 [shape = 'u8[4096]{0}', space=vmem, size = 0x1000, scoped, tag = 'input window, operand 2']
    #allocation5 [shape = 's32[2]{0}', space=sflag, size = 0x8, scoped, tag = 'scoped memory for cross_attention_forward.1']
    #allocation6 [shape = 'u8[4096]{0}', space=vmem, size = 0x1000, scoped, tag = 'input window, operand 3']
    #allocation7 [shape = 's32[2]{0}', space=sflag, size = 0x8, scoped, tag = 'scoped memory for cross_attention_forward.1']
    %13 = vsyncpa [#allocation5], 0
    %s14 = scalar_lea.sflag [#allocation5], 1
    %15 = vsyncpa %s14, 0
    %16 = vsyncpa [#allocation7], 0
    %s17 = scalar_lea.sflag [#allocation7], 1
    %18 = vsyncpa %s17, 0
    loop: start=0, step=1, limit=4
    $region2: #{cross_attention_forward.1} parent=1 // loop_pre_header
      _
    $region3: #{cross_attention_forward.1} parent=1 // loop_header
      %s20 = sphi 0, %s24
      %p21 = scmp.ge.s32.totalorder %s20, 4
      %s27 = sphi 0, %s39
      %s28 = sphi 0, %s35
      %s29 = sphi 0, %s27
      %s30 = sphi 0, %s28
      %s31 = sphi 0, %s29
      %s32 = sphi 0, %s30
      %s42 = sphi 0, %s44
      %s45 = sphi 0, %s42
      %s46 = sphi 0, %s45
      %s62 = sphi 0, %s46
      %s68 = sphi 0, %s70
      %s71 = sphi 0, %s68
      %s72 = sphi 0, %s71
      %s88 = sphi 0, %s72
      %s96 = sphi 0, %s98
      %s99 = sphi 0, %s96
      %s100 = sphi 0, %s99
      %s116 = sphi 0, %s100
      %s124 = sphi 0, %s126
      %s127 = sphi 0, %s124
      %s128 = sphi 0, %s127
      %s144 = sphi 0, %s128
      %s148 = sphi 0, %s148
      %s150 = sphi 0, %s148
      %s151 = sphi 0, %s150
      %s165 = sphi 0, %s151
      %s169 = sphi 0, %s169
      %s171 = sphi 0, %s169
      %s172 = sphi 0, %s171
      %s186 = sphi 0, %s172
      %s190 = sphi 0, %s190
      %s192 = sphi 0, %s190
      %s193 = sphi 0, %s192
      %s207 = sphi 0, %s193
      %s211 = sphi 0, %s211
      %s213 = sphi 0, %s211
      %s214 = sphi 0, %s213
      %s228 = sphi 0, %s214
      %s236 = sphi 0, %s238
      %s239 = sphi 0, %s236
      %s240 = sphi 0, %s239
      %s256 = sphi 0, %s240
    $region4: #{cross_attention_forward.1} parent=1 // loop_header_branch
      %23 = sbr.rel (%p21) target = $region8
    $region5: #{cross_attention_forward.1} parent=1 // loop_body
      %s25 = ssub.s32 %s20, 1
      %s26 = ssub.s32 %s20, 2
      %s33 = sadd.s32 1, %s28
      %p34 = scmp.ge.s32.totalorder %s33, 1
      %s35 = scalar_select %p34, 0, %s33
      %s36 = sadd.s32 1, %s27
      %s37 = scalar_select %p34, %s36, %s27
      %p38 = scmp.ge.s32.totalorder %s37, 2
      %s39 = scalar_select %p38, 0, %s37
      %s40 = ssub.s32 %s27, %s39
      %p41 = scmp.eq.s32.totalorder %s40, 0
      %s43 = sadd.s32 %s42, 1
      %s44 = scalar_select %p41, %s42, %s43
      %p47 = pneg %p41
      %p48 = scmp.eq.s32.totalorder %s20, 1
      %p49 = por %p47, %p48
      %p50 = scmp.ne.s32.totalorder %s42, %s45
      %p51 = scmp.eq.s32.totalorder %s20, 0
      %p52 = por %p50, %p51
      %p53 = scmp.ne.s32.totalorder %s42, %s45
      %p54 = scmp.eq.s32.totalorder %s25, 1
      %p55 = por %p53, %p54
      %p56 = scmp.ne.s32.totalorder %s45, %s46
      %p57 = scmp.eq.s32.totalorder %s25, 0
      %p58 = por %p56, %p57
      %p59 = scmp.ne.s32.totalorder %s45, %s46
      %p60 = scmp.eq.s32.totalorder %s26, 1
      %p61 = por %p59, %p60
      %p63 = scmp.ne.s32.totalorder %s46, %s62
      %p64 = scmp.eq.s32.totalorder %s26, 0
      %p65 = por %p63, %p64
      %s66 = ssub.s32 %s27, %s39
      %p67 = scmp.eq.s32.totalorder %s66, 0
      %s69 = sadd.s32 %s68, 1
      %s70 = scalar_select %p67, %s68, %s69
      %p73 = pneg %p67
      %p74 = scmp.eq.s32.totalorder %s20, 1
      %p75 = por %p73, %p74
      %p76 = scmp.ne.s32.totalorder %s68, %s71
      %p77 = scmp.eq.s32.totalorder %s20, 0
      %p78 = por %p76, %p77
      %p79 = scmp.ne.s32.totalorder %s68, %s71
      %p80 = scmp.eq.s32.totalorder %s25, 1
      %p81 = por %p79, %p80
      %p82 = scmp.ne.s32.totalorder %s71, %s72
      %p83 = scmp.eq.s32.totalorder %s25, 0
      %p84 = por %p82, %p83
      %p85 = scmp.ne.s32.totalorder %s71, %s72
      %p86 = scmp.eq.s32.totalorder %s26, 1
      %p87 = por %p85, %p86
      %p89 = scmp.ne.s32.totalorder %s72, %s88
      %p90 = scmp.eq.s32.totalorder %s26, 0
      %p91 = por %p89, %p90
      %s92 = ssub.s32 %s27, %s39
      %s93 = ssub.s32 %s28, %s35
      %s94 = sor.u32 %s92, %s93
      %p95 = scmp.eq.s32.totalorder %s94, 0
      %s97 = sadd.s32 %s96, 1
      %s98 = scalar_select %p95, %s96, %s97
      %p101 = pneg %p95
      %p102 = scmp.eq.s32.totalorder %s20, 1
      %p103 = por %p101, %p102
      %p104 = scmp.ne.s32.totalorder %s96, %s99
      %p105 = scmp.eq.s32.totalorder %s20, 0
      %p106 = por %p104, %p105
      %p107 = scmp.ne.s32.totalorder %s96, %s99
      %p108 = scmp.eq.s32.totalorder %s25, 1
      %p109 = por %p107, %p108
      %p110 = scmp.ne.s32.totalorder %s99, %s100
      %p111 = scmp.eq.s32.totalorder %s25, 0
      %p112 = por %p110, %p111
      %p113 = scmp.ne.s32.totalorder %s99, %s100
      %p114 = scmp.eq.s32.totalorder %s26, 1
      %p115 = por %p113, %p114
      %p117 = scmp.ne.s32.totalorder %s100, %s116
      %p118 = scmp.eq.s32.totalorder %s26, 0
      %p119 = por %p117, %p118
      %s120 = ssub.s32 %s27, %s39
      %s121 = ssub.s32 %s28, %s35
      %s122 = sor.u32 %s120, %s121
      %p123 = scmp.eq.s32.totalorder %s122, 0
      %s125 = sadd.s32 %s124, 1
      %s126 = scalar_select %p123, %s124, %s125
      %p129 = pneg %p123
      %p130 = scmp.eq.s32.totalorder %s20, 1
      %p131 = por %p129, %p130
      %p132 = scmp.ne.s32.totalorder %s124, %s127
      %p133 = scmp.eq.s32.totalorder %s20, 0
      %p134 = por %p132, %p133
      %p135 = scmp.ne.s32.totalorder %s124, %s127
      %p136 = scmp.eq.s32.totalorder %s25, 1
      %p137 = por %p135, %p136
      %p138 = scmp.ne.s32.totalorder %s127, %s128
      %p139 = scmp.eq.s32.totalorder %s25, 0
      %p140 = por %p138, %p139
      %p141 = scmp.ne.s32.totalorder %s127, %s128
      %p142 = scmp.eq.s32.totalorder %s26, 1
      %p143 = por %p141, %p142
      %p145 = scmp.ne.s32.totalorder %s128, %s144
      %p146 = scmp.eq.s32.totalorder %s26, 0
      %p147 = por %p145, %p146
      %s149 = sadd.s32 %s148, 1
      %p152 = scmp.eq.s32.totalorder %s20, 1
      %p153 = scmp.ne.s32.totalorder %s148, %s150
      %p154 = scmp.eq.s32.totalorder %s20, 0
      %p155 = por %p153, %p154
      %p156 = scmp.ne.s32.totalorder %s148, %s150
      %p157 = scmp.eq.s32.totalorder %s25, 1
      %p158 = por %p156, %p157
      %p159 = scmp.ne.s32.totalorder %s150, %s151
      %p160 = scmp.eq.s32.totalorder %s25, 0
      %p161 = por %p159, %p160
      %p162 = scmp.ne.s32.totalorder %s150, %s151
      %p163 = scmp.eq.s32.totalorder %s26, 1
      %p164 = por %p162, %p163
      %p166 = scmp.ne.s32.totalorder %s151, %s165
      %p167 = scmp.eq.s32.totalorder %s26, 0
      %p168 = por %p166, %p167
      %s170 = sadd.s32 %s169, 1
      %p173 = scmp.eq.s32.totalorder %s20, 1
      %p174 = scmp.ne.s32.totalorder %s169, %s171
      %p175 = scmp.eq.s32.totalorder %s20, 0
      %p176 = por %p174, %p175
      %p177 = scmp.ne.s32.totalorder %s169, %s171
      %p178 = scmp.eq.s32.totalorder %s25, 1
      %p179 = por %p177, %p178
      %p180 = scmp.ne.s32.totalorder %s171, %s172
      %p181 = scmp.eq.s32.totalorder %s25, 0
      %p182 = por %p180, %p181
      %p183 = scmp.ne.s32.totalorder %s171, %s172
      %p184 = scmp.eq.s32.totalorder %s26, 1
      %p185 = por %p183, %p184
      %p187 = scmp.ne.s32.totalorder %s172, %s186
      %p188 = scmp.eq.s32.totalorder %s26, 0
      %p189 = por %p187, %p188
      %s191 = sadd.s32 %s190, 1
      %p194 = scmp.eq.s32.totalorder %s20, 1
      %p195 = scmp.ne.s32.totalorder %s190, %s192
      %p196 = scmp.eq.s32.totalorder %s20, 0
      %p197 = por %p195, %p196
      %p198 = scmp.ne.s32.totalorder %s190, %s192
      %p199 = scmp.eq.s32.totalorder %s25, 1
      %p200 = por %p198, %p199
      %p201 = scmp.ne.s32.totalorder %s192, %s193
      %p202 = scmp.eq.s32.totalorder %s25, 0
      %p203 = por %p201, %p202
      %p204 = scmp.ne.s32.totalorder %s192, %s193
      %p205 = scmp.eq.s32.totalorder %s26, 1
      %p206 = por %p204, %p205
      %p208 = scmp.ne.s32.totalorder %s193, %s207
      %p209 = scmp.eq.s32.totalorder %s26, 0
      %p210 = por %p208, %p209
      %s212 = sadd.s32 %s211, 1
      %p215 = scmp.eq.s32.totalorder %s20, 1
      %p216 = scmp.ne.s32.totalorder %s211, %s213
      %p217 = scmp.eq.s32.totalorder %s20, 0
      %p218 = por %p216, %p217
      %p219 = scmp.ne.s32.totalorder %s211, %s213
      %p220 = scmp.eq.s32.totalorder %s25, 1
      %p221 = por %p219, %p220
      %p222 = scmp.ne.s32.totalorder %s213, %s214
      %p223 = scmp.eq.s32.totalorder %s25, 0
      %p224 = por %p222, %p223
      %p225 = scmp.ne.s32.totalorder %s213, %s214
      %p226 = scmp.eq.s32.totalorder %s26, 1
      %p227 = por %p225, %p226
      %p229 = scmp.ne.s32.totalorder %s214, %s228
      %p230 = scmp.eq.s32.totalorder %s26, 0
      %p231 = por %p229, %p230
      %s232 = ssub.s32 %s27, %s39
      %s233 = ssub.s32 %s28, %s35
      %s234 = sor.u32 %s232, %s233
      %p235 = scmp.eq.s32.totalorder %s234, 0
      %s237 = sadd.s32 %s236, 1
      %s238 = scalar_select %p235, %s236, %s237
      %p241 = pneg %p235
      %p242 = scmp.eq.s32.totalorder %s20, 1
      %p243 = por %p241, %p242
      %p244 = scmp.ne.s32.totalorder %s236, %s239
      %p245 = scmp.eq.s32.totalorder %s20, 0
      %p246 = por %p244, %p245
      %p247 = scmp.ne.s32.totalorder %s236, %s239
      %p248 = scmp.eq.s32.totalorder %s25, 1
      %p249 = por %p247, %p248
      %p250 = scmp.ne.s32.totalorder %s239, %s240
      %p251 = scmp.eq.s32.totalorder %s25, 0
      %p252 = por %p250, %p251
      %p253 = scmp.ne.s32.totalorder %s239, %s240
      %p254 = scmp.eq.s32.totalorder %s26, 1
      %p255 = por %p253, %p254
      %p257 = scmp.ne.s32.totalorder %s240, %s256
      %p258 = scmp.eq.s32.totalorder %s26, 0
      %p259 = por %p257, %p258
      %p260 = scmp.le.s32.totalorder 1, %s20
      %p261 = scmp.lt.s32.totalorder %s20, 3
      %p262 = pnand %p260, %p261
      %p263 = pneg %p262
      // Predicated region
      $region9: #{cross_attention_forward.1} parent=5 // pred_check
        _
      $region10: #{cross_attention_forward.1} parent=5 // pred_check_branch
        %265 = sbr.rel (%p262) target = $region12
      $region11: #{cross_attention_forward.1} parent=5 // pred_region
        %s266 = ssub.s32 %s20, 1
        // Predicated region
        $region13: #{cross_attention_forward.1} parent=11 // pred_check
          %p267 = pneg %p161
        $region14: #{cross_attention_forward.1} parent=11 // pred_check_branch
          %269 = sbr.rel (%p267) target = $region16
        $region15: #{cross_attention_forward.1} parent=11 // pred_region
          _
        $region16: #{cross_attention_forward.1} parent=11 // pred_fallthru
          _
        // Predicated region
        $region17: #{cross_attention_forward.1} parent=11 // pred_check
          %p270 = pneg %p182
        $region18: #{cross_attention_forward.1} parent=11 // pred_check_branch
          %272 = sbr.rel (%p270) target = $region20
        $region19: #{cross_attention_forward.1} parent=11 // pred_region
          _
        $region20: #{cross_attention_forward.1} parent=11 // pred_fallthru
          _
        // Predicated region
        $region21: #{cross_attention_forward.1} parent=11 // pred_check
          %p273 = pneg %p203
        $region22: #{cross_attention_forward.1} parent=11 // pred_check_branch
          %275 = sbr.rel (%p273) target = $region24
        $region23: #{cross_attention_forward.1} parent=11 // pred_region
          _
        $region24: #{cross_attention_forward.1} parent=11 // pred_fallthru
          _
        // Predicated region
        $region25: #{cross_attention_forward.1} parent=11 // pred_check
          %p276 = pneg %p224
        $region26: #{cross_attention_forward.1} parent=11 // pred_check_branch
          %278 = sbr.rel (%p276) target = $region28
        $region27: #{cross_attention_forward.1} parent=11 // pred_region
          _
        $region28: #{cross_attention_forward.1} parent=11 // pred_fallthru
          _
      $region12: #{cross_attention_forward.1} parent=5 // pred_fallthru
        _
      %p279 = scmp.lt.s32.totalorder %s20, 2
      // Predicated region
      $region29: #{cross_attention_forward.1} parent=5 // pred_check
        %p280 = pneg %p279
      $region30: #{cross_attention_forward.1} parent=5 // pred_check_branch
        %282 = sbr.rel (%p280) target = $region32
      $region31: #{cross_attention_forward.1} parent=5 // pred_region
        // Predicated region
        $region33: #{cross_attention_forward.1} parent=31 // pred_check
          %p283 = pneg %p52
        $region34: #{cross_attention_forward.1} parent=31 // pred_check_branch
          %285 = sbr.rel (%p283) target = $region36
        $region35: #{cross_attention_forward.1} parent=31 // pred_region
          %s286 = smul.u32 2, %s27
          %p287 = scmp.lt.s32.totalorder %s286, 3
          %s288 = scalar_select %p287, %s286, 3
          %s289 = smul.addr %s288, 4
          %s290 = scalar_lea.vmem %s0, %s289
          %s291 = smul.u32 2, %s27
        $region36: #{cross_attention_forward.1} parent=31 // pred_fallthru
          _
        // Predicated region
        $region37: #{cross_attention_forward.1} parent=31 // pred_check
          %p292 = pneg %p78
        $region38: #{cross_attention_forward.1} parent=31 // pred_check_branch
          %294 = sbr.rel (%p292) target = $region40
        $region39: #{cross_attention_forward.1} parent=31 // pred_region
          %s295 = smul.u32 2, %s27
          %p296 = scmp.lt.s32.totalorder %s295, 3
          %s297 = scalar_select %p296, %s295, 3
          %s298 = smul.addr %s297, 2
          %s299 = scalar_lea.vmem %s1, %s298
          %s300 = smul.u32 2, %s27
        $region40: #{cross_attention_forward.1} parent=31 // pred_fallthru
          _
        // Predicated region
        $region41: #{cross_attention_forward.1} parent=31 // pred_check
          %p301 = pneg %p106
        $region42: #{cross_attention_forward.1} parent=31 // pred_check_branch
          %303 = sbr.rel (%p301) target = $region44
        $region43: #{cross_attention_forward.1} parent=31 // pred_region
          %s304 = sand.u32 %s96, 1
          %s305 = scalar_lea.sflag [#allocation5], %s304
          %s306 = sand.u32 %s96, 1
          %s307 = smul.addr %s306, 4
          %s308 = scalar_lea.vmem [#allocation4], %s307
          %s309 = smul.u32 2, %s27
          %s311 = ssub.s32 64, 64
          %312 = vsyncadd %s305, %s311
          %s313 = sadd.s32 %s28, %s309
          %s314 = smul.addr %s313, 32
          %s315 = scalar_lea.hbm %s2, %s314
          %s316 = sshll.u32 %s308, 4
          %s317 = int_to_ptr.vmem [resolvable:$true] %s316
          %322 = dma.hbm_to_vmem [thread:$0]  %s315, 64, %s317, %s305, 32, 32, 2
        $region44: #{cross_attention_forward.1} parent=31 // pred_fallthru
          _
        // Predicated region
        $region45: #{cross_attention_forward.1} parent=31 // pred_check
          %p323 = pneg %p134
        $region46: #{cross_attention_forward.1} parent=31 // pred_check_branch
          %325 = sbr.rel (%p323) target = $region48
        $region47: #{cross_attention_forward.1} parent=31 // pred_region
          %s326 = sand.u32 %s124, 1
          %s327 = scalar_lea.sflag [#allocation7], %s326
          %s328 = sand.u32 %s124, 1
          %s329 = smul.addr %s328, 4
          %s330 = scalar_lea.vmem [#allocation6], %s329
          %s331 = smul.u32 2, %s27
          %s333 = ssub.s32 64, 64
          %334 = vsyncadd %s327, %s333
          %s335 = sadd.s32 %s28, %s331
          %s336 = smul.addr %s335, 32
          %s337 = scalar_lea.hbm %s3, %s336
          %s338 = sshll.u32 %s330, 4
          %s339 = int_to_ptr.vmem [resolvable:$true] %s338
          %344 = dma.hbm_to_vmem [thread:$0]  %s337, 64, %s339, %s327, 32, 32, 2
        $region48: #{cross_attention_forward.1} parent=31 // pred_fallthru
          _
      $region32: #{cross_attention_forward.1} parent=5 // pred_fallthru
        _
      %p345 = scmp.le.s32.totalorder 1, %s20
      %p346 = scmp.lt.s32.totalorder %s20, 3
      %p347 = pnand %p345, %p346
      %p348 = pneg %p347
      // Predicated region
      $region49: #{cross_attention_forward.1} parent=5 // pred_check
        _
      $region50: #{cross_attention_forward.1} parent=5 // pred_check_branch
        %350 = sbr.rel (%p347) target = $region52
      $region51: #{cross_attention_forward.1} parent=5 // pred_region
        %s351 = ssub.s32 %s20, 1
        %s352 = sand.u32 %s99, 1
        %s353 = scalar_lea.sflag [#allocation5], %s352
        %s354 = sand.u32 %s99, 1
        %s355 = smul.addr %s354, 4
        %s356 = scalar_lea.vmem [#allocation4], %s355
        // Predicated region
        $region53: #{cross_attention_forward.1} parent=51 // pred_check
          %p357 = pneg %p112
        $region54: #{cross_attention_forward.1} parent=51 // pred_check_branch
          %359 = sbr.rel (%p357) target = $region56
        $region55: #{cross_attention_forward.1} parent=51 // pred_region
          %360 = dma.done %s353, 64
        $region56: #{cross_attention_forward.1} parent=51 // pred_fallthru
          _
        %s361 = sand.u32 %s127, 1
        %s362 = scalar_lea.sflag [#allocation7], %s361
        %s363 = sand.u32 %s127, 1
        %s364 = smul.addr %s363, 4
        %s365 = scalar_lea.vmem [#allocation6], %s364
        // Predicated region
        $region57: #{cross_attention_forward.1} parent=51 // pred_check
          %p366 = pneg %p140
        $region58: #{cross_attention_forward.1} parent=51 // pred_check_branch
          %368 = sbr.rel (%p366) target = $region60
        $region59: #{cross_attention_forward.1} parent=51 // pred_region
          %369 = dma.done %s362, 64
        $region60: #{cross_attention_forward.1} parent=51 // pred_fallthru
          _
        %s370 = smul.u32 2, %s29
        %p371 = scmp.lt.s32.totalorder %s370, 3
        %s372 = scalar_select %p371, %s370, 3
        %s373 = smul.addr %s372, 4
        %s374 = scalar_lea.vmem %s0, %s373
        %p375 = pneg %p58
        %p376 = pneg %p55
        %s377 = smul.u32 2, %s29
        %p378 = scmp.lt.s32.totalorder %s377, 3
        %s379 = scalar_select %p378, %s377, 3
        %s380 = smul.addr %s379, 2
        %s381 = scalar_lea.vmem %s1, %s380
        %p382 = pneg %p84
        %p383 = pneg %p81
        %s384 = sand.u32 %s99, 1
        %s385 = scalar_lea.sflag [#allocation5], %s384
        %s386 = sand.u32 %s99, 1
        %s387 = smul.addr %s386, 4
        %s388 = scalar_lea.vmem [#allocation4], %s387
        %p389 = pneg %p112
        %p390 = pneg %p109
        %s391 = sand.u32 %s127, 1
        %s392 = scalar_lea.sflag [#allocation7], %s391
        %s393 = sand.u32 %s127, 1
        %s394 = smul.addr %s393, 4
        %s395 = scalar_lea.vmem [#allocation6], %s394
        %p396 = pneg %p140
        %p397 = pneg %p137
        %p398 = pneg %p161
        %p399 = pneg %p158
        %p400 = pneg %p182
        %p401 = pneg %p179
        %p402 = pneg %p203
        %p403 = pneg %p200
        %p404 = pneg %p224
        %p405 = pneg %p221
        %p406 = pneg %p252
        %p407 = pneg %p249
        %s408 = smul.u32 2, %s29
        %p409 = scmp.lt.s32.totalorder %s408, 3
        %s410 = scalar_select %p409, %s408, 3
        %p411 = scmp.lt.s32.totalorder %s30, 0
        %s412 = scalar_select %p411, %s30, 0
        %s413 = sadd.s32 %s412, %s410
        %s414 = smul.addr %s413, 8
        %s415 = scalar_lea.vmem %s8, %s414
        %s416 = smul.u32 2, %s29
        %p417 = scmp.lt.s32.totalorder %s416, 3
        %s418 = scalar_select %p417, %s416, 3
        %s419 = smul.addr %s418, 4
        %s420 = scalar_lea.vmem %s0, %s419
        %s421 = smul.u32 2, %s29
        %s422 = smul.u32 2, %s29
        %p423 = scmp.lt.s32.totalorder %s422, 3
        %s424 = scalar_select %p423, %s422, 3
        %s425 = smul.addr %s424, 2
        %s426 = scalar_lea.vmem %s1, %s425
        %s427 = smul.u32 2, %s29
        %s428 = smul.u32 2, %s29
        %s429 = smul.u32 2, %s29
        %s430 = smul.u32 2, %s29
        %p431 = scmp.lt.s32.totalorder %s430, 3
        %s432 = scalar_select %p431, %s430, 3
        %p433 = scmp.lt.s32.totalorder %s30, 0
        %s434 = scalar_select %p433, %s30, 0
        %s435 = sadd.s32 %s434, %s432
        %s436 = smul.addr %s435, 8
        %s437 = scalar_lea.vmem %s8, %s436
        %s438 = smul.u32 2, %s29
        %p442 = scmp.eq.s32.totalorder %s30, 0
        // Predicated region
        $region61: #{cross_attention_forward.1} parent=51 // pred_check
          %p443 = pneg %p442
        $region62: #{cross_attention_forward.1} parent=51 // pred_check_branch
          %445 = sbr.rel (%p443) target = $region64
        $region63: #{cross_attention_forward.1} parent=51 // pred_region
          %v446 = vld [vmem:[%s420] sm:$0xf]
          %v447 = vld [vmem:[%s420 + $0x4] sm:$0xf]
          %v448 = vld [vmem:[%s4] sm:$0xf]
          %v449 = vld [vmem:[%s4 + $0x4] sm:$0xf]
          %v450 = vld [vmem:[%s4 + $0x8] sm:$0xf]
          %v451 = vld [vmem:[%s4 + $0xc] sm:$0xf]
          %v452 = vld [vmem:[%s5] sm:$0x1]
          %v454 = vlaneseq
          %v455 = vshrl.u32 %v454, 7
          %v456 = vsub.s32 0, %v455
          %v457 = vrot.slane %v452, %v456
          %v461 = vunpack.c.l.b16 %v446
          %v462 = vunpack.c.l.b16 %v447
          %v463 = vpack.c.b16 %v462, %v461
          %v468 = vunpack.c.l.b16 %v448
          %v469 = vunpack.c.l.b16 %v449
          %v470 = vunpack.c.l.b16 %v450
          %v471 = vunpack.c.l.b16 %v451
          %v472 = vpack.c.b16 %v469, %v468
          %v473 = vpack.c.b16 %v471, %v470
          %vm476 = vcmask 261120
          %v478 = vsel %vm476, %v463, 0
          %480 = vmatprep.subr.bf16.mxu0 0
          %481 = vmatpush1.bf16.msra.mxu0 0
          %482 = vmatprep.subr.bf16.mxu0 0
          %483 = vmatpush1.bf16.msra.mxu0 0
          %484 = vmatprep.subr.bf16.mxu0 0
          %485 = vmatpush1.bf16.msra.mxu0 0
          %486 = vmatprep.subr.bf16.mxu0 0
          %487 = vmatpush1.bf16.msra.mxu0 0
          %488 = vmatprep.subr.bf16.mxu0 0
          %489 = vmatpush1.bf16.msra.mxu0 0
          %490 = vmatprep.subr.bf16.mxu0 0
          %491 = vmatpush1.bf16.msra.mxu0 0
          %492 = vmatprep.subr.bf16.mxu0 0
          %493 = vmatpush1.bf16.msra.mxu0 %v473
          %494 = vmatprep.subr.bf16.mxu0 0
          %495 = vmatpush1.bf16.msra.mxu0 %v472
          %496 = vmatprep.subr.bf16.mxu0 0
          %497 = vmatpush2.bf16.msra.mxu0 0
          %498 = vmatprep.subr.bf16.mxu0 0
          %499 = vmatpush2.bf16.msra.mxu0 0
          %500 = vmatprep.subr.bf16.mxu0 0
          %501 = vmatpush2.bf16.msra.mxu0 0
          %502 = vmatprep.subr.bf16.mxu0 0
          %503 = vmatpush2.bf16.msra.mxu0 0
          %504 = vmatprep.subr.bf16.mxu0 0
          %505 = vmatpush2.bf16.msra.mxu0 0
          %506 = vmatprep.subr.bf16.mxu0 0
          %507 = vmatpush2.bf16.msra.mxu0 0
          %508 = vmatprep.subr.bf16.mxu0 0
          %509 = vmatpush2.bf16.msra.mxu0 0
          %510 = vmatprep.subr.bf16.mxu0 0
          %511 = vmatpush2.bf16.msra.mxu0 0
          %512 = vmatprep.mubr.bf16.mxu0 0
          %513 = vmatmul.mubr.bf16.gmra.mxu0 %v478
          %v514 = vpop.f32.mrf.mxu0
          %v515 = vadd.f32 %v457, %v514
          %v516 = vpop.f32.mrf.mxu0
          %v517 = vpop.f32.mrf.mxu0
          %v518 = vadd.f32 %v457, %v517
          %v519 = vpop.f32.mrf.mxu0
          %520 = vdwg.mxu0
          %v521 = vpack.c.bf16 %v515, %v515
          %v522 = vpack.c.bf16 %v518, %v518
          %523 = vst [vmem:[#allocation2] sm:$0xf] %v521
          %524 = vst [vmem:[#allocation2 + $0x4] sm:$0xf] %v522
          %v525 = vld [vmem:[%s6] sm:$0xf]
          %v526 = vld [vmem:[%s6 + $0x4] sm:$0xf]
          %v527 = vld [vmem:[%s6 + $0x8] sm:$0xf]
          %v528 = vld [vmem:[%s6 + $0xc] sm:$0xf]
          %v529 = vld [vmem:[%s6 + $0x10] sm:$0xf]
          %v530 = vld [vmem:[%s6 + $0x14] sm:$0xf]
          %v531 = vld [vmem:[%s6 + $0x18] sm:$0xf]
          %v532 = vld [vmem:[%s6 + $0x1c] sm:$0xf]
          %v533 = vld [vmem:[%s6 + $0x20] sm:$0xf]
          %v534 = vld [vmem:[%s6 + $0x24] sm:$0xf]
          %v535 = vld [vmem:[%s6 + $0x28] sm:$0xf]
          %v536 = vld [vmem:[%s6 + $0x2c] sm:$0xf]
          %v537 = vld [vmem:[%s6 + $0x30] sm:$0xf]
          %v538 = vld [vmem:[%s6 + $0x34] sm:$0xf]
          %v539 = vld [vmem:[%s6 + $0x38] sm:$0xf]
          %v540 = vld [vmem:[%s6 + $0x3c] sm:$0xf]
          %v541 = vld [vmem:[%s426] sm:$0x3]
          %v542 = vld [vmem:[%s7] sm:$0xff]
          %v543 = vld [vmem:[%s7 + $0x8] sm:$0xff]
          %v544 = vld [vmem:[%s7 + $0x10] sm:$0xff]
          %v545 = vld [vmem:[%s7 + $0x18] sm:$0xff]
          %v546 = vld [vmem:[%s7 + $0x20] sm:$0xff]
          %v547 = vld [vmem:[%s7 + $0x28] sm:$0xff]
          %v548 = vld [vmem:[%s7 + $0x30] sm:$0xff]
          %v549 = vld [vmem:[%s7 + $0x38] sm:$0xff]
          %v550 = vld [vmem:[%s7 + $0x40] sm:$0xff]
          %v551 = vld [vmem:[%s7 + $0x48] sm:$0xff]
          %v552 = vld [vmem:[%s7 + $0x50] sm:$0xff]
          %v553 = vld [vmem:[%s7 + $0x58] sm:$0xff]
          %v554 = vld [vmem:[%s7 + $0x60] sm:$0xff]
          %v555 = vld [vmem:[%s7 + $0x68] sm:$0xff]
          %v556 = vld [vmem:[%s7 + $0x70] sm:$0xff]
          %v557 = vld [vmem:[%s7 + $0x78] sm:$0xff]
          %559 = vset.pattern.permute.xlu0 0
          %560 = vperm.xlu0 %559, %v542
          %v561 = vpop.permute.xlu0 %560
          %564 = vset.pattern.permute.xlu0 0
          %565 = vperm.xlu0 %564, %v543
          %v566 = vpop.permute.xlu0 %565
          %569 = vset.pattern.permute.xlu0 0
          %570 = vperm.xlu0 %569, %v544
          %v571 = vpop.permute.xlu0 %570
          %574 = vset.pattern.permute.xlu0 0
          %575 = vperm.xlu0 %574, %v545
          %v576 = vpop.permute.xlu0 %575
          %579 = vset.pattern.permute.xlu0 0
          %580 = vperm.xlu0 %579, %v546
          %v581 = vpop.permute.xlu0 %580
          %584 = vset.pattern.permute.xlu0 0
          %585 = vperm.xlu0 %584, %v547
          %v586 = vpop.permute.xlu0 %585
          %589 = vset.pattern.permute.xlu0 0
          %590 = vperm.xlu0 %589, %v548
          %v591 = vpop.permute.xlu0 %590
          %594 = vset.pattern.permute.xlu0 0
          %595 = vperm.xlu0 %594, %v549
          %v596 = vpop.permute.xlu0 %595
          %599 = vset.pattern.permute.xlu0 0
          %600 = vperm.xlu0 %599, %v550
          %v601 = vpop.permute.xlu0 %600
          %604 = vset.pattern.permute.xlu0 0
          %605 = vperm.xlu0 %604, %v551
          %v606 = vpop.permute.xlu0 %605
          %609 = vset.pattern.permute.xlu0 0
          %610 = vperm.xlu0 %609, %v552
          %v611 = vpop.permute.xlu0 %610
          %614 = vset.pattern.permute.xlu0 0
          %615 = vperm.xlu0 %614, %v553
          %v616 = vpop.permute.xlu0 %615
          %619 = vset.pattern.permute.xlu0 0
          %620 = vperm.xlu0 %619, %v554
          %v621 = vpop.permute.xlu0 %620
          %624 = vset.pattern.permute.xlu0 0
          %625 = vperm.xlu0 %624, %v555
          %v626 = vpop.permute.xlu0 %625
          %629 = vset.pattern.permute.xlu0 0
          %630 = vperm.xlu0 %629, %v556
          %v631 = vpop.permute.xlu0 %630
          %634 = vset.pattern.permute.xlu0 0
          %635 = vperm.xlu0 %634, %v557
          %v636 = vpop.permute.xlu0 %635
          %v654 = vunpack.c.l.b16 %v525
          %v655 = vunpack.c.l.b16 %v526
          %v656 = vunpack.c.l.b16 %v527
          %v657 = vunpack.c.l.b16 %v528
          %v658 = vunpack.c.l.b16 %v529
          %v659 = vunpack.c.l.b16 %v530
          %v660 = vunpack.c.l.b16 %v531
          %v661 = vunpack.c.l.b16 %v532
          %v662 = vunpack.c.l.b16 %v533
          %v663 = vunpack.c.l.b16 %v534
          %v664 = vunpack.c.l.b16 %v535
          %v665 = vunpack.c.l.b16 %v536
          %v666 = vunpack.c.l.b16 %v537
          %v667 = vunpack.c.l.b16 %v538
          %v668 = vunpack.c.l.b16 %v539
          %v669 = vunpack.c.l.b16 %v540
          %v670 = vpack.c.b16 %v655, %v654
          %v671 = vpack.c.b16 %v657, %v656
          %v672 = vpack.c.b16 %v659, %v658
          %v673 = vpack.c.b16 %v661, %v660
          %v674 = vpack.c.b16 %v663, %v662
          %v675 = vpack.c.b16 %v665, %v664
          %v676 = vpack.c.b16 %v667, %v666
          %v677 = vpack.c.b16 %v669, %v668
          %vm678 = vcmask 31744
          %v680 = vsel %vm678, %v670, 0
          %v683 = vsel %vm678, %v671, 0
          %v686 = vsel %vm678, %v672, 0
          %v689 = vsel %vm678, %v673, 0
          %v692 = vsel %vm678, %v674, 0
          %v695 = vsel %vm678, %v675, 0
          %v698 = vsel %vm678, %v676, 0
          %v701 = vsel %vm678, %v677, 0
          %vm703 = vcmask 1041408
          %v705 = vsel %vm703, %v541, 0
          %707 = vmatprep.subr.bf16.mxu0 0
          %708 = vmatpush1.bf16.msra.mxu0 0
          %709 = vmatprep.subr.bf16.mxu0 0
          %710 = vmatpush1.bf16.msra.mxu0 0
          %711 = vmatprep.subr.bf16.mxu0 0
          %712 = vmatpush1.bf16.msra.mxu0 0
          %713 = vmatprep.subr.bf16.mxu0 0
          %714 = vmatpush1.bf16.msra.mxu0 0
          %715 = vmatprep.subr.bf16.mxu0 0
          %716 = vmatpush1.bf16.msra.mxu0 0
          %717 = vmatprep.subr.bf16.mxu0 0
          %718 = vmatpush1.bf16.msra.mxu0 0
          %719 = vmatprep.subr.bf16.mxu0 0
          %720 = vmatpush1.bf16.msra.mxu0 0
          %721 = vmatprep.subr.bf16.mxu0 0
          %722 = vmatpush1.bf16.msra.mxu0 %v705
          %723 = vmatprep.subr.bf16.mxu0 0
          %724 = vmatpush2.bf16.msra.mxu0 0
          %725 = vmatprep.subr.bf16.mxu0 0
          %726 = vmatpush2.bf16.msra.mxu0 0
          %727 = vmatprep.subr.bf16.mxu0 0
          %728 = vmatpush2.bf16.msra.mxu0 0
          %729 = vmatprep.subr.bf16.mxu0 0
          %730 = vmatpush2.bf16.msra.mxu0 0
          %731 = vmatprep.subr.bf16.mxu0 0
          %732 = vmatpush2.bf16.msra.mxu0 0
          %733 = vmatprep.subr.bf16.mxu0 0
          %734 = vmatpush2.bf16.msra.mxu0 0
          %735 = vmatprep.subr.bf16.mxu0 0
          %736 = vmatpush2.bf16.msra.mxu0 0
          %737 = vmatprep.subr.bf16.mxu0 0
          %738 = vmatpush2.bf16.msra.mxu0 0
          %739 = vmatprep.mubr.bf16.mxu0 0
          %740 = vmatmul.mubr.bf16.gmra.mxu0 %v680
          %v741 = vpop.f32.mrf.mxu0
          %v742 = vadd.f32 %v561, %v741
          %v743 = vpop.f32.mrf.mxu0
          %v744 = vpop.f32.mrf.mxu0
          %v745 = vadd.f32 %v566, %v744
          %v746 = vpop.f32.mrf.mxu0
          %747 = vmatprep.mubr.bf16.mxu0 0
          %748 = vmatmul.mubr.bf16.gmra.mxu0 %v683
          %v749 = vpop.f32.mrf.mxu0
          %v750 = vadd.f32 %v571, %v749
          %v751 = vpop.f32.mrf.mxu0
          %v752 = vpop.f32.mrf.mxu0
          %v753 = vadd.f32 %v576, %v752
          %v754 = vpop.f32.mrf.mxu0
          %755 = vmatprep.mubr.bf16.mxu0 0
          %756 = vmatmul.mubr.bf16.gmra.mxu0 %v686
          %v757 = vpop.f32.mrf.mxu0
          %v758 = vadd.f32 %v581, %v757
          %v759 = vpop.f32.mrf.mxu0
          %v760 = vpop.f32.mrf.mxu0
          %v761 = vadd.f32 %v586, %v760
          %v762 = vpop.f32.mrf.mxu0
          %763 = vmatprep.mubr.bf16.mxu0 0
          %764 = vmatmul.mubr.bf16.gmra.mxu0 %v689
          %v765 = vpop.f32.mrf.mxu0
          %v766 = vadd.f32 %v591, %v765
          %v767 = vpop.f32.mrf.mxu0
          %v768 = vpop.f32.mrf.mxu0
          %v769 = vadd.f32 %v596, %v768
          %v770 = vpop.f32.mrf.mxu0
          %771 = vmatprep.mubr.bf16.mxu0 0
          %772 = vmatmul.mubr.bf16.gmra.mxu0 %v692
          %v773 = vpop.f32.mrf.mxu0
          %v774 = vadd.f32 %v601, %v773
          %v775 = vpop.f32.mrf.mxu0
          %v776 = vpop.f32.mrf.mxu0
          %v777 = vadd.f32 %v606, %v776
          %v778 = vpop.f32.mrf.mxu0
          %779 = vmatprep.mubr.bf16.mxu0 0
          %780 = vmatmul.mubr.bf16.gmra.mxu0 %v695
          %v781 = vpop.f32.mrf.mxu0
          %v782 = vadd.f32 %v611, %v781
          %v783 = vpop.f32.mrf.mxu0
          %v784 = vpop.f32.mrf.mxu0
          %v785 = vadd.f32 %v616, %v784
          %v786 = vpop.f32.mrf.mxu0
          %787 = vmatprep.mubr.bf16.mxu0 0
          %788 = vmatmul.mubr.bf16.gmra.mxu0 %v698
          %v789 = vpop.f32.mrf.mxu0
          %v790 = vadd.f32 %v621, %v789
          %v791 = vpop.f32.mrf.mxu0
          %v792 = vpop.f32.mrf.mxu0
          %v793 = vadd.f32 %v626, %v792
          %v794 = vpop.f32.mrf.mxu0
          %795 = vmatprep.mubr.bf16.mxu0 0
          %796 = vmatmul.mubr.bf16.gmra.mxu0 %v701
          %v797 = vpop.f32.mrf.mxu0
          %v798 = vadd.f32 %v631, %v797
          %v799 = vpop.f32.mrf.mxu0
          %v800 = vpop.f32.mrf.mxu0
          %v801 = vadd.f32 %v636, %v800
          %v802 = vpop.f32.mrf.mxu0
          %803 = vdwg.mxu0
          %v804 = vpack.c.bf16 %v745, %v742
          %v805 = vpack.c.bf16 %v753, %v750
          %v806 = vpack.c.bf16 %v761, %v758
          %v807 = vpack.c.bf16 %v769, %v766
          %v808 = vpack.c.bf16 %v777, %v774
          %v809 = vpack.c.bf16 %v785, %v782
          %v810 = vpack.c.bf16 %v793, %v790
          %v811 = vpack.c.bf16 %v801, %v798
          %v820 = vunpack.c.l.b16 %v804
          %v821 = vunpack.c.h.b16 %v804
          %v822 = vunpack.c.l.b16 %v805
          %v823 = vunpack.c.h.b16 %v805
          %v824 = vunpack.c.l.b16 %v806
          %v825 = vunpack.c.h.b16 %v806
          %v826 = vunpack.c.l.b16 %v807
          %v827 = vunpack.c.h.b16 %v807
          %v828 = vunpack.c.l.b16 %v808
          %v829 = vunpack.c.h.b16 %v808
          %v830 = vunpack.c.l.b16 %v809
          %v831 = vunpack.c.h.b16 %v809
          %v832 = vunpack.c.l.b16 %v810
          %v833 = vunpack.c.h.b16 %v810
          %v834 = vunpack.c.l.b16 %v811
          %v835 = vunpack.c.h.b16 %v811
          %v836 = vpack.c.b16 %v820, %v820
          %v837 = vpack.c.b16 %v821, %v821
          %v838 = vpack.c.b16 %v822, %v822
          %v839 = vpack.c.b16 %v823, %v823
          %v840 = vpack.c.b16 %v824, %v824
          %v841 = vpack.c.b16 %v825, %v825
          %v842 = vpack.c.b16 %v826, %v826
          %v843 = vpack.c.b16 %v827, %v827
          %v844 = vpack.c.b16 %v828, %v828
          %v845 = vpack.c.b16 %v829, %v829
          %v846 = vpack.c.b16 %v830, %v830
          %v847 = vpack.c.b16 %v831, %v831
          %v848 = vpack.c.b16 %v832, %v832
          %v849 = vpack.c.b16 %v833, %v833
          %v850 = vpack.c.b16 %v834, %v834
          %v851 = vpack.c.b16 %v835, %v835
          %vm868 = vcmask 125952
          %869 = vst.msk [vmem:[#allocation3] sm:$0xf] %vm868, %v836
          %870 = vst.msk [vmem:[#allocation3 + $0x4] sm:$0xf] %vm868, %v837
          %871 = vst.msk [vmem:[#allocation3 + $0x8] sm:$0xf] %vm868, %v838
          %872 = vst.msk [vmem:[#allocation3 + $0xc] sm:$0xf] %vm868, %v839
          %873 = vst.msk [vmem:[#allocation3 + $0x10] sm:$0xf] %vm868, %v840
          %874 = vst.msk [vmem:[#allocation3 + $0x14] sm:$0xf] %vm868, %v841
          %875 = vst.msk [vmem:[#allocation3 + $0x18] sm:$0xf] %vm868, %v842
          %876 = vst.msk [vmem:[#allocation3 + $0x1c] sm:$0xf] %vm868, %v843
          %877 = vst.msk [vmem:[#allocation3 + $0x20] sm:$0xf] %vm868, %v844
          %878 = vst.msk [vmem:[#allocation3 + $0x24] sm:$0xf] %vm868, %v845
          %879 = vst.msk [vmem:[#allocation3 + $0x28] sm:$0xf] %vm868, %v846
          %880 = vst.msk [vmem:[#allocation3 + $0x2c] sm:$0xf] %vm868, %v847
          %881 = vst.msk [vmem:[#allocation3 + $0x30] sm:$0xf] %vm868, %v848
          %882 = vst.msk [vmem:[#allocation3 + $0x34] sm:$0xf] %vm868, %v849
          %883 = vst.msk [vmem:[#allocation3 + $0x38] sm:$0xf] %vm868, %v850
          %884 = vst.msk [vmem:[#allocation3 + $0x3c] sm:$0xf] %vm868, %v851
          %v885 = vld [vmem:[%s6] sm:$0xf]
          %v886 = vld [vmem:[%s6 + $0x4] sm:$0xf]
          %v887 = vld [vmem:[%s6 + $0x8] sm:$0xf]
          %v888 = vld [vmem:[%s6 + $0xc] sm:$0xf]
          %v889 = vld [vmem:[%s6 + $0x10] sm:$0xf]
          %v890 = vld [vmem:[%s6 + $0x14] sm:$0xf]
          %v891 = vld [vmem:[%s6 + $0x18] sm:$0xf]
          %v892 = vld [vmem:[%s6 + $0x1c] sm:$0xf]
          %v893 = vld [vmem:[%s6 + $0x20] sm:$0xf]
          %v894 = vld [vmem:[%s6 + $0x24] sm:$0xf]
          %v895 = vld [vmem:[%s6 + $0x28] sm:$0xf]
          %v896 = vld [vmem:[%s6 + $0x2c] sm:$0xf]
          %v897 = vld [vmem:[%s6 + $0x30] sm:$0xf]
          %v898 = vld [vmem:[%s6 + $0x34] sm:$0xf]
          %v899 = vld [vmem:[%s6 + $0x38] sm:$0xf]
          %v900 = vld [vmem:[%s6 + $0x3c] sm:$0xf]
          %s901 = scalar_lea.vmem %s426, 2
          %v902 = vld [vmem:[%s901] sm:$0x3]
          %v903 = vld [vmem:[%s7] sm:$0xff]
          %v904 = vld [vmem:[%s7 + $0x8] sm:$0xff]
          %v905 = vld [vmem:[%s7 + $0x10] sm:$0xff]
          %v906 = vld [vmem:[%s7 + $0x18] sm:$0xff]
          %v907 = vld [vmem:[%s7 + $0x20] sm:$0xff]
          %v908 = vld [vmem:[%s7 + $0x28] sm:$0xff]
          %v909 = vld [vmem:[%s7 + $0x30] sm:$0xff]
          %v910 = vld [vmem:[%s7 + $0x38] sm:$0xff]
          %v911 = vld [vmem:[%s7 + $0x40] sm:$0xff]
          %v912 = vld [vmem:[%s7 + $0x48] sm:$0xff]
          %v913 = vld [vmem:[%s7 + $0x50] sm:$0xff]
          %v914 = vld [vmem:[%s7 + $0x58] sm:$0xff]
          %v915 = vld [vmem:[%s7 + $0x60] sm:$0xff]
          %v916 = vld [vmem:[%s7 + $0x68] sm:$0xff]
          %v917 = vld [vmem:[%s7 + $0x70] sm:$0xff]
          %v918 = vld [vmem:[%s7 + $0x78] sm:$0xff]
          %920 = vset.pattern.permute.xlu0 0
          %921 = vperm.xlu0 %920, %v903
          %v922 = vpop.permute.xlu0 %921
          %925 = vset.pattern.permute.xlu0 0
          %926 = vperm.xlu0 %925, %v904
          %v927 = vpop.permute.xlu0 %926
          %930 = vset.pattern.permute.xlu0 0
          %931 = vperm.xlu0 %930, %v905
          %v932 = vpop.permute.xlu0 %931
          %935 = vset.pattern.permute.xlu0 0
          %936 = vperm.xlu0 %935, %v906
          %v937 = vpop.permute.xlu0 %936
          %940 = vset.pattern.permute.xlu0 0
          %941 = vperm.xlu0 %940, %v907
          %v942 = vpop.permute.xlu0 %941
          %945 = vset.pattern.permute.xlu0 0
          %946 = vperm.xlu0 %945, %v908
          %v947 = vpop.permute.xlu0 %946
          %950 = vset.pattern.permute.xlu0 0
          %951 = vperm.xlu0 %950, %v909
          %v952 = vpop.permute.xlu0 %951
          %955 = vset.pattern.permute.xlu0 0
          %956 = vperm.xlu0 %955, %v910
          %v957 = vpop.permute.xlu0 %956
          %960 = vset.pattern.permute.xlu0 0
          %961 = vperm.xlu0 %960, %v911
          %v962 = vpop.permute.xlu0 %961
          %965 = vset.pattern.permute.xlu0 0
          %966 = vperm.xlu0 %965, %v912
          %v967 = vpop.permute.xlu0 %966
          %970 = vset.pattern.permute.xlu0 0
          %971 = vperm.xlu0 %970, %v913
          %v972 = vpop.permute.xlu0 %971
          %975 = vset.pattern.permute.xlu0 0
          %976 = vperm.xlu0 %975, %v914
          %v977 = vpop.permute.xlu0 %976
          %980 = vset.pattern.permute.xlu0 0
          %981 = vperm.xlu0 %980, %v915
          %v982 = vpop.permute.xlu0 %981
          %985 = vset.pattern.permute.xlu0 0
          %986 = vperm.xlu0 %985, %v916
          %v987 = vpop.permute.xlu0 %986
          %990 = vset.pattern.permute.xlu0 0
          %991 = vperm.xlu0 %990, %v917
          %v992 = vpop.permute.xlu0 %991
          %995 = vset.pattern.permute.xlu0 0
          %996 = vperm.xlu0 %995, %v918
          %v997 = vpop.permute.xlu0 %996
          %v1015 = vunpack.c.l.b16 %v885
          %v1016 = vunpack.c.l.b16 %v886
          %v1017 = vunpack.c.l.b16 %v887
          %v1018 = vunpack.c.l.b16 %v888
          %v1019 = vunpack.c.l.b16 %v889
          %v1020 = vunpack.c.l.b16 %v890
          %v1021 = vunpack.c.l.b16 %v891
          %v1022 = vunpack.c.l.b16 %v892
          %v1023 = vunpack.c.l.b16 %v893
          %v1024 = vunpack.c.l.b16 %v894
          %v1025 = vunpack.c.l.b16 %v895
          %v1026 = vunpack.c.l.b16 %v896
          %v1027 = vunpack.c.l.b16 %v897
          %v1028 = vunpack.c.l.b16 %v898
          %v1029 = vunpack.c.l.b16 %v899
          %v1030 = vunpack.c.l.b16 %v900
          %v1031 = vpack.c.b16 %v1016, %v1015
          %v1032 = vpack.c.b16 %v1018, %v1017
          %v1033 = vpack.c.b16 %v1020, %v1019
          %v1034 = vpack.c.b16 %v1022, %v1021
          %v1035 = vpack.c.b16 %v1024, %v1023
          %v1036 = vpack.c.b16 %v1026, %v1025
          %v1037 = vpack.c.b16 %v1028, %v1027
          %v1038 = vpack.c.b16 %v1030, %v1029
          %v1040 = vsel %vm678, %v1031, 0
          %v1043 = vsel %vm678, %v1032, 0
          %v1046 = vsel %vm678, %v1033, 0
          %v1049 = vsel %vm678, %v1034, 0
          %v1052 = vsel %vm678, %v1035, 0
          %v1055 = vsel %vm678, %v1036, 0
          %v1058 = vsel %vm678, %v1037, 0
          %v1061 = vsel %vm678, %v1038, 0
          %v1064 = vsel %vm703, %v902, 0
          %1066 = vmatprep.subr.bf16.mxu0 0
          %1067 = vmatpush1.bf16.msra.mxu0 0
          %1068 = vmatprep.subr.bf16.mxu0 0
          %1069 = vmatpush1.bf16.msra.mxu0 0
          %1070 = vmatprep.subr.bf16.mxu0 0
          %1071 = vmatpush1.bf16.msra.mxu0 0
          %1072 = vmatprep.subr.bf16.mxu0 0
          %1073 = vmatpush1.bf16.msra.mxu0 0
          %1074 = vmatprep.subr.bf16.mxu0 0
          %1075 = vmatpush1.bf16.msra.mxu0 0
          %1076 = vmatprep.subr.bf16.mxu0 0
          %1077 = vmatpush1.bf16.msra.mxu0 0
          %1078 = vmatprep.subr.bf16.mxu0 0
          %1079 = vmatpush1.bf16.msra.mxu0 0
          %1080 = vmatprep.subr.bf16.mxu0 0
          %1081 = vmatpush1.bf16.msra.mxu0 %v1064
          %1082 = vmatprep.subr.bf16.mxu0 0
          %1083 = vmatpush2.bf16.msra.mxu0 0
          %1084 = vmatprep.subr.bf16.mxu0 0
          %1085 = vmatpush2.bf16.msra.mxu0 0
          %1086 = vmatprep.subr.bf16.mxu0 0
          %1087 = vmatpush2.bf16.msra.mxu0 0
          %1088 = vmatprep.subr.bf16.mxu0 0
          %1089 = vmatpush2.bf16.msra.mxu0 0
          %1090 = vmatprep.subr.bf16.mxu0 0
          %1091 = vmatpush2.bf16.msra.mxu0 0
          %1092 = vmatprep.subr.bf16.mxu0 0
          %1093 = vmatpush2.bf16.msra.mxu0 0
          %1094 = vmatprep.subr.bf16.mxu0 0
          %1095 = vmatpush2.bf16.msra.mxu0 0
          %1096 = vmatprep.subr.bf16.mxu0 0
          %1097 = vmatpush2.bf16.msra.mxu0 0
          %1098 = vmatprep.mubr.bf16.mxu0 0
          %1099 = vmatmul.mubr.bf16.gmra.mxu0 %v1040
          %v1100 = vpop.f32.mrf.mxu0
          %v1101 = vadd.f32 %v922, %v1100
          %v1102 = vpop.f32.mrf.mxu0
          %v1103 = vpop.f32.mrf.mxu0
          %v1104 = vadd.f32 %v927, %v1103
          %v1105 = vpop.f32.mrf.mxu0
          %1106 = vmatprep.mubr.bf16.mxu0 0
          %1107 = vmatmul.mubr.bf16.gmra.mxu0 %v1043
          %v1108 = vpop.f32.mrf.mxu0
          %v1109 = vadd.f32 %v932, %v1108
          %v1110 = vpop.f32.mrf.mxu0
          %v1111 = vpop.f32.mrf.mxu0
          %v1112 = vadd.f32 %v937, %v1111
          %v1113 = vpop.f32.mrf.mxu0
          %1114 = vmatprep.mubr.bf16.mxu0 0
          %1115 = vmatmul.mubr.bf16.gmra.mxu0 %v1046
          %v1116 = vpop.f32.mrf.mxu0
          %v1117 = vadd.f32 %v942, %v1116
          %v1118 = vpop.f32.mrf.mxu0
          %v1119 = vpop.f32.mrf.mxu0
          %v1120 = vadd.f32 %v947, %v1119
          %v1121 = vpop.f32.mrf.mxu0
          %1122 = vmatprep.mubr.bf16.mxu0 0
          %1123 = vmatmul.mubr.bf16.gmra.mxu0 %v1049
          %v1124 = vpop.f32.mrf.mxu0
          %v1125 = vadd.f32 %v952, %v1124
          %v1126 = vpop.f32.mrf.mxu0
          %v1127 = vpop.f32.mrf.mxu0
          %v1128 = vadd.f32 %v957, %v1127
          %v1129 = vpop.f32.mrf.mxu0
          %1130 = vmatprep.mubr.bf16.mxu0 0
          %1131 = vmatmul.mubr.bf16.gmra.mxu0 %v1052
          %v1132 = vpop.f32.mrf.mxu0
          %v1133 = vadd.f32 %v962, %v1132
          %v1134 = vpop.f32.mrf.mxu0
          %v1135 = vpop.f32.mrf.mxu0
          %v1136 = vadd.f32 %v967, %v1135
          %v1137 = vpop.f32.mrf.mxu0
          %1138 = vmatprep.mubr.bf16.mxu0 0
          %1139 = vmatmul.mubr.bf16.gmra.mxu0 %v1055
          %v1140 = vpop.f32.mrf.mxu0
          %v1141 = vadd.f32 %v972, %v1140
          %v1142 = vpop.f32.mrf.mxu0
          %v1143 = vpop.f32.mrf.mxu0
          %v1144 = vadd.f32 %v977, %v1143
          %v1145 = vpop.f32.mrf.mxu0
          %1146 = vmatprep.mubr.bf16.mxu0 0
          %1147 = vmatmul.mubr.bf16.gmra.mxu0 %v1058
          %v1148 = vpop.f32.mrf.mxu0
          %v1149 = vadd.f32 %v982, %v1148
          %v1150 = vpop.f32.mrf.mxu0
          %v1151 = vpop.f32.mrf.mxu0
          %v1152 = vadd.f32 %v987, %v1151
          %v1153 = vpop.f32.mrf.mxu0
          %1154 = vmatprep.mubr.bf16.mxu0 0
          %1155 = vmatmul.mubr.bf16.gmra.mxu0 %v1061
          %v1156 = vpop.f32.mrf.mxu0
          %v1157 = vadd.f32 %v992, %v1156
          %v1158 = vpop.f32.mrf.mxu0
          %v1159 = vpop.f32.mrf.mxu0
          %v1160 = vadd.f32 %v997, %v1159
          %v1161 = vpop.f32.mrf.mxu0
          %1162 = vdwg.mxu0
          %v1163 = vpack.c.bf16 %v1104, %v1101
          %v1164 = vpack.c.bf16 %v1112, %v1109
          %v1165 = vpack.c.bf16 %v1120, %v1117
          %v1166 = vpack.c.bf16 %v1128, %v1125
          %v1167 = vpack.c.bf16 %v1136, %v1133
          %v1168 = vpack.c.bf16 %v1144, %v1141
          %v1169 = vpack.c.bf16 %v1152, %v1149
          %v1170 = vpack.c.bf16 %v1160, %v1157
          %v1179 = vunpack.c.l.b16 %v1163
          %v1180 = vunpack.c.h.b16 %v1163
          %v1181 = vunpack.c.l.b16 %v1164
          %v1182 = vunpack.c.h.b16 %v1164
          %v1183 = vunpack.c.l.b16 %v1165
          %v1184 = vunpack.c.h.b16 %v1165
          %v1185 = vunpack.c.l.b16 %v1166
          %v1186 = vunpack.c.h.b16 %v1166
          %v1187 = vunpack.c.l.b16 %v1167
          %v1188 = vunpack.c.h.b16 %v1167
          %v1189 = vunpack.c.l.b16 %v1168
          %v1190 = vunpack.c.h.b16 %v1168
          %v1191 = vunpack.c.l.b16 %v1169
          %v1192 = vunpack.c.h.b16 %v1169
          %v1193 = vunpack.c.l.b16 %v1170
          %v1194 = vunpack.c.h.b16 %v1170
          %v1195 = vpack.c.b16 %v1179, %v1179
          %v1196 = vpack.c.b16 %v1180, %v1180
          %v1197 = vpack.c.b16 %v1181, %v1181
          %v1198 = vpack.c.b16 %v1182, %v1182
          %v1199 = vpack.c.b16 %v1183, %v1183
          %v1200 = vpack.c.b16 %v1184, %v1184
          %v1201 = vpack.c.b16 %v1185, %v1185
          %v1202 = vpack.c.b16 %v1186, %v1186
          %v1203 = vpack.c.b16 %v1187, %v1187
          %v1204 = vpack.c.b16 %v1188, %v1188
          %v1205 = vpack.c.b16 %v1189, %v1189
          %v1206 = vpack.c.b16 %v1190, %v1190
          %v1207 = vpack.c.b16 %v1191, %v1191
          %v1208 = vpack.c.b16 %v1192, %v1192
          %v1209 = vpack.c.b16 %v1193, %v1193
          %v1210 = vpack.c.b16 %v1194, %v1194
          %s1227 = scalar_lea.vmem [#allocation3], 64
          %1228 = vst.msk [vmem:[%s1227] sm:$0xf] %vm868, %v1195
          %1229 = vst.msk [vmem:[%s1227 + $0x4] sm:$0xf] %vm868, %v1196
          %1230 = vst.msk [vmem:[%s1227 + $0x8] sm:$0xf] %vm868, %v1197
          %1231 = vst.msk [vmem:[%s1227 + $0xc] sm:$0xf] %vm868, %v1198
          %1232 = vst.msk [vmem:[%s1227 + $0x10] sm:$0xf] %vm868, %v1199
          %1233 = vst.msk [vmem:[%s1227 + $0x14] sm:$0xf] %vm868, %v1200
          %1234 = vst.msk [vmem:[%s1227 + $0x18] sm:$0xf] %vm868, %v1201
          %1235 = vst.msk [vmem:[%s1227 + $0x1c] sm:$0xf] %vm868, %v1202
          %1236 = vst.msk [vmem:[%s1227 + $0x20] sm:$0xf] %vm868, %v1203
          %1237 = vst.msk [vmem:[%s1227 + $0x24] sm:$0xf] %vm868, %v1204
          %1238 = vst.msk [vmem:[%s1227 + $0x28] sm:$0xf] %vm868, %v1205
          %1239 = vst.msk [vmem:[%s1227 + $0x2c] sm:$0xf] %vm868, %v1206
          %1240 = vst.msk [vmem:[%s1227 + $0x30] sm:$0xf] %vm868, %v1207
          %1241 = vst.msk [vmem:[%s1227 + $0x34] sm:$0xf] %vm868, %v1208
          %1242 = vst.msk [vmem:[%s1227 + $0x38] sm:$0xf] %vm868, %v1209
          %1243 = vst.msk [vmem:[%s1227 + $0x3c] sm:$0xf] %vm868, %v1210
        $region64: #{cross_attention_forward.1} parent=51 // pred_fallthru
          _
        %s1244 = smul.u32 %s30, 8
        %s1245 = sshra.s32 %s1244, 3
        %s1246 = sand.u32 %s1244, 7
        %s1247 = smul.addr %s1245, 4
        %s1248 = scalar_lea.vmem [#allocation2], %s1247
        %v1249 = vld [vmem:[%s1248] sm:$0xf]
        %v1250 = vld [vmem:[%s1248 + $0x4] sm:$0xf]
        %v1251 = vld [vmem:[#allocation2] sm:$0xf]
        %v1252 = vld [vmem:[#allocation2 + $0x4] sm:$0xf]
        %v1253 = vld [vmem:[#allocation3] sm:$0xf]
        %v1254 = vld [vmem:[#allocation3 + $0x4] sm:$0xf]
        %v1255 = vld [vmem:[#allocation3 + $0x8] sm:$0xf]
        %v1256 = vld [vmem:[#allocation3 + $0xc] sm:$0xf]
        %v1257 = vld [vmem:[#allocation3 + $0x10] sm:$0xf]
        %v1258 = vld [vmem:[#allocation3 + $0x14] sm:$0xf]
        %v1259 = vld [vmem:[#allocation3 + $0x18] sm:$0xf]
        %v1260 = vld [vmem:[#allocation3 + $0x1c] sm:$0xf]
        %v1261 = vld [vmem:[#allocation3 + $0x20] sm:$0xf]
        %v1262 = vld [vmem:[#allocation3 + $0x24] sm:$0xf]
        %v1263 = vld [vmem:[#allocation3 + $0x28] sm:$0xf]
        %v1264 = vld [vmem:[#allocation3 + $0x2c] sm:$0xf]
        %v1265 = vld [vmem:[#allocation3 + $0x30] sm:$0xf]
        %v1266 = vld [vmem:[#allocation3 + $0x34] sm:$0xf]
        %v1267 = vld [vmem:[#allocation3 + $0x38] sm:$0xf]
        %v1268 = vld [vmem:[#allocation3 + $0x3c] sm:$0xf]
        %v1269 = vld [vmem:[#allocation3 + $0x40] sm:$0xf]
        %v1270 = vld [vmem:[#allocation3 + $0x44] sm:$0xf]
        %v1271 = vld [vmem:[#allocation3 + $0x48] sm:$0xf]
        %v1272 = vld [vmem:[#allocation3 + $0x4c] sm:$0xf]
        %v1273 = vld [vmem:[#allocation3 + $0x50] sm:$0xf]
        %v1274 = vld [vmem:[#allocation3 + $0x54] sm:$0xf]
        %v1275 = vld [vmem:[#allocation3 + $0x58] sm:$0xf]
        %v1276 = vld [vmem:[#allocation3 + $0x5c] sm:$0xf]
        %v1277 = vld [vmem:[#allocation3 + $0x60] sm:$0xf]
        %v1278 = vld [vmem:[#allocation3 + $0x64] sm:$0xf]
        %v1279 = vld [vmem:[#allocation3 + $0x68] sm:$0xf]
        %v1280 = vld [vmem:[#allocation3 + $0x6c] sm:$0xf]
        %v1281 = vld [vmem:[#allocation3 + $0x70] sm:$0xf]
        %v1282 = vld [vmem:[#allocation3 + $0x74] sm:$0xf]
        %v1283 = vld [vmem:[#allocation3 + $0x78] sm:$0xf]
        %v1284 = vld [vmem:[#allocation3 + $0x7c] sm:$0xf]
        %1285 = vmatprep.subr.bf16.mxu0 0
        %1286 = vmatpush1.bf16.xpose.msra.mxu0 0
        %1287 = vmatprep.subr.bf16.mxu0 0
        %1288 = vmatpush1.bf16.xpose.msra.mxu0 0
        %1289 = vmatprep.subr.bf16.mxu0 0
        %1290 = vmatpush1.bf16.xpose.msra.mxu0 0
        %1291 = vmatprep.subr.bf16.mxu0 0
        %1292 = vmatpush1.bf16.xpose.msra.mxu0 0
        %1293 = vmatprep.subr.bf16.mxu0 0
        %1294 = vmatpush1.bf16.xpose.msra.mxu0 0
        %1295 = vmatprep.subr.bf16.mxu0 0
        %1296 = vmatpush1.bf16.xpose.msra.mxu0 0
        %1297 = vmatprep.subr.bf16.mxu0 0
        %1298 = vmatpush1.bf16.xpose.msra.mxu0 0
        %1299 = vmatprep.subr.bf16.mxu0 0
        %1300 = vmatpush1.bf16.xpose.msra.mxu0 %v1251
        %1301 = vmatprep.subr.bf16.mxu0 0
        %1302 = vmatpush2.bf16.xpose.msra.mxu0 0
        %1303 = vmatprep.subr.bf16.mxu0 0
        %1304 = vmatpush2.bf16.xpose.msra.mxu0 0
        %1305 = vmatprep.subr.bf16.mxu0 0
        %1306 = vmatpush2.bf16.xpose.msra.mxu0 0
        %1307 = vmatprep.subr.bf16.mxu0 0
        %1308 = vmatpush2.bf16.xpose.msra.mxu0 0
        %1309 = vmatprep.subr.bf16.mxu0 0
        %1310 = vmatpush2.bf16.xpose.msra.mxu0 0
        %1311 = vmatprep.subr.bf16.mxu0 0
        %1312 = vmatpush2.bf16.xpose.msra.mxu0 0
        %1313 = vmatprep.subr.bf16.mxu0 0
        %1314 = vmatpush2.bf16.xpose.msra.mxu0 0
        %1315 = vmatprep.subr.bf16.mxu0 0
        %1316 = vmatpush2.bf16.xpose.msra.mxu0 0
        %1317 = vmatprep.mubr.bf16.mxu0 0
        %1318 = vmatmul.mubr.bf16.gmra.mxu0 %v1249
        %v1319 = vpop.f32.mrf.mxu0
        %v1320 = vadd.f32 0.0, %v1319
        %v1321 = vpop.f32.mrf.mxu0
        %v1322 = vpop.f32.mrf.mxu0
        %v1323 = vpop.f32.mrf.mxu0
        %1324 = vdwg.mxu0
        %1325 = vmatprep.subr.bf16.mxu0 0
        %1326 = vmatpush1.bf16.xpose.msra.mxu0 0
        %1327 = vmatprep.subr.bf16.mxu0 0
        %1328 = vmatpush1.bf16.xpose.msra.mxu0 0
        %1329 = vmatprep.subr.bf16.mxu0 0
        %1330 = vmatpush1.bf16.xpose.msra.mxu0 0
        %1331 = vmatprep.subr.bf16.mxu0 0
        %1332 = vmatpush1.bf16.xpose.msra.mxu0 0
        %1333 = vmatprep.subr.bf16.mxu0 0
        %1334 = vmatpush1.bf16.xpose.msra.mxu0 0
        %1335 = vmatprep.subr.bf16.mxu0 0
        %1336 = vmatpush1.bf16.xpose.msra.mxu0 0
        %1337 = vmatprep.subr.bf16.mxu0 0
        %1338 = vmatpush1.bf16.xpose.msra.mxu0 0
        %1339 = vmatprep.subr.bf16.mxu0 0
        %1340 = vmatpush1.bf16.xpose.msra.mxu0 %v1252
        %1341 = vmatprep.subr.bf16.mxu0 0
        %1342 = vmatpush2.bf16.xpose.msra.mxu0 0
        %1343 = vmatprep.subr.bf16.mxu0 0
        %1344 = vmatpush2.bf16.xpose.msra.mxu0 0
        %1345 = vmatprep.subr.bf16.mxu0 0
        %1346 = vmatpush2.bf16.xpose.msra.mxu0 0
        %1347 = vmatprep.subr.bf16.mxu0 0
        %1348 = vmatpush2.bf16.xpose.msra.mxu0 0
        %1349 = vmatprep.subr.bf16.mxu0 0
        %1350 = vmatpush2.bf16.xpose.msra.mxu0 0
        %1351 = vmatprep.subr.bf16.mxu0 0
        %1352 = vmatpush2.bf16.xpose.msra.mxu0 0
        %1353 = vmatprep.subr.bf16.mxu0 0
        %1354 = vmatpush2.bf16.xpose.msra.mxu0 0
        %1355 = vmatprep.subr.bf16.mxu0 0
        %1356 = vmatpush2.bf16.xpose.msra.mxu0 0
        %1357 = vmatprep.mubr.bf16.mxu0 0
        %1358 = vmatmul.mubr.bf16.gmra.mxu0 %v1250
        %v1359 = vpop.f32.mrf.mxu0
        %v1360 = vadd.f32 0.0, %v1359
        %v1361 = vpop.f32.mrf.mxu0
        %v1362 = vpop.f32.mrf.mxu0
        %v1363 = vpop.f32.mrf.mxu0
        %1364 = vdwg.mxu0
        %v1365 = vld [vmem:[%s356] sm:$0x3]
        %v1366 = vld [vmem:[%s356 + $0x2] sm:$0x3]
        %vm1367 = vnez %v1365
        %vm1368 = vnez %v1366
        %v1369 = vsel %vm1367, 16843009, 0
        %v1370 = vsel %vm1368, 16843009, 0
        %v1371 = vunpack.c.0.s8 %v1369
        %v1372 = vunpack.c.0.s8 %v1370
        %vm1373 = vcmp.ne.s32.totalorder %v1371, 0
        %vm1374 = vcmp.ne.s32.totalorder %v1372, 0
        %v1375 = vsel %vm1373, %v1320, -1e+09
        %v1376 = vsel %vm1374, %v1360, -1e+09
        %vm1377 = vcmask 64512
        %v1378 = vsel %vm1377, %v1375, -inf
        %1379 = vmax.xlane.f32.xlu0 %v1378
        %v1380 = vpop.xlane.xlu0 %1379
        %v1381 = vsel %vm1377, %v1376, -inf
        %1382 = vmax.xlane.f32.xlu0 %v1381
        %v1383 = vpop.xlane.xlu0 %1382
        %v1384 = vsub.f32 %v1375, %v1380
        %v1385 = vsub.f32 %v1376, %v1383
        %v1386 = vmul.f32 %v1384, 0.17677669
        %v1387 = vmul.f32 %v1385, 0.17677669
        %v1388 = vmul.f32 %v1386, 1.442695
        %v1389 = vpow.pop %v1388
        %v1390 = vmul.f32 %v1387, 1.442695
        %v1391 = vpow.pop %v1390
        %v1392 = vsel %vm1377, %v1389, 0.0
        %1393 = vadd.xlane.f32.xlu0 %v1392
        %v1394 = vpop.xlane.xlu0 %1393
        %v1395 = vsel %vm1377, %v1391, 0.0
        %1396 = vadd.xlane.f32.xlu0 %v1395
        %v1397 = vpop.xlane.xlu0 %1396
        %v1398 = vpack.c.bf16 %v1389, %v1389
        %v1399 = vpack.c.bf16 %v1391, %v1391
        %v1401 = vsel %vm1377, %v1398, 0
        %vm1403 = vcmask 1043456
        %v1405 = vsel %vm1403, %v1251, 0
        %1407 = vmatprep.subr.bf16.mxu0 0
        %1408 = vmatpush1.bf16.msra.mxu0 0
        %1409 = vmatprep.subr.bf16.mxu0 0
        %1410 = vmatpush1.bf16.msra.mxu0 0
        %1411 = vmatprep.subr.bf16.mxu0 0
        %1412 = vmatpush1.bf16.msra.mxu0 0
        %1413 = vmatprep.subr.bf16.mxu0 0
        %1414 = vmatpush1.bf16.msra.mxu0 0
        %1415 = vmatprep.subr.bf16.mxu0 0
        %1416 = vmatpush1.bf16.msra.mxu0 0
        %1417 = vmatprep.subr.bf16.mxu0 0
        %1418 = vmatpush1.bf16.msra.mxu0 0
        %1419 = vmatprep.subr.bf16.mxu0 0
        %1420 = vmatpush1.bf16.msra.mxu0 0
        %1421 = vmatprep.subr.bf16.mxu0 0
        %1422 = vmatpush1.bf16.msra.mxu0 %v1405
        %1423 = vmatprep.subr.bf16.mxu0 0
        %1424 = vmatpush2.bf16.msra.mxu0 0
        %1425 = vmatprep.subr.bf16.mxu0 0
        %1426 = vmatpush2.bf16.msra.mxu0 0
        %1427 = vmatprep.subr.bf16.mxu0 0
        %1428 = vmatpush2.bf16.msra.mxu0 0
        %1429 = vmatprep.subr.bf16.mxu0 0
        %1430 = vmatpush2.bf16.msra.mxu0 0
        %1431 = vmatprep.subr.bf16.mxu0 0
        %1432 = vmatpush2.bf16.msra.mxu0 0
        %1433 = vmatprep.subr.bf16.mxu0 0
        %1434 = vmatpush2.bf16.msra.mxu0 0
        %1435 = vmatprep.subr.bf16.mxu0 0
        %1436 = vmatpush2.bf16.msra.mxu0 0
        %1437 = vmatprep.subr.bf16.mxu0 0
        %1438 = vmatpush2.bf16.msra.mxu0 0
        %1439 = vmatprep.mubr.bf16.mxu0 0
        %1440 = vmatmul.mubr.bf16.gmra.mxu0 %v1401
        %v1441 = vpop.f32.mrf.mxu0
        %v1442 = vadd.f32 0.0, %v1441
        %v1443 = vpop.f32.mrf.mxu0
        %v1444 = vpop.f32.mrf.mxu0
        %v1445 = vpop.f32.mrf.mxu0
        %1446 = vdwg.mxu0
        %v1448 = vsel %vm1377, %v1399, 0
        %v1451 = vsel %vm1403, %v1252, 0
        %1453 = vmatprep.subr.bf16.mxu0 0
        %1454 = vmatpush1.bf16.msra.mxu0 0
        %1455 = vmatprep.subr.bf16.mxu0 0
        %1456 = vmatpush1.bf16.msra.mxu0 0
        %1457 = vmatprep.subr.bf16.mxu0 0
        %1458 = vmatpush1.bf16.msra.mxu0 0
        %1459 = vmatprep.subr.bf16.mxu0 0
        %1460 = vmatpush1.bf16.msra.mxu0 0
        %1461 = vmatprep.subr.bf16.mxu0 0
        %1462 = vmatpush1.bf16.msra.mxu0 0
        %1463 = vmatprep.subr.bf16.mxu0 0
        %1464 = vmatpush1.bf16.msra.mxu0 0
        %1465 = vmatprep.subr.bf16.mxu0 0
        %1466 = vmatpush1.bf16.msra.mxu0 0
        %1467 = vmatprep.subr.bf16.mxu0 0
        %1468 = vmatpush1.bf16.msra.mxu0 %v1451
        %1469 = vmatprep.subr.bf16.mxu0 0
        %1470 = vmatpush2.bf16.msra.mxu0 0
        %1471 = vmatprep.subr.bf16.mxu0 0
        %1472 = vmatpush2.bf16.msra.mxu0 0
        %1473 = vmatprep.subr.bf16.mxu0 0
        %1474 = vmatpush2.bf16.msra.mxu0 0
        %1475 = vmatprep.subr.bf16.mxu0 0
        %1476 = vmatpush2.bf16.msra.mxu0 0
        %1477 = vmatprep.subr.bf16.mxu0 0
        %1478 = vmatpush2.bf16.msra.mxu0 0
        %1479 = vmatprep.subr.bf16.mxu0 0
        %1480 = vmatpush2.bf16.msra.mxu0 0
        %1481 = vmatprep.subr.bf16.mxu0 0
        %1482 = vmatpush2.bf16.msra.mxu0 0
        %1483 = vmatprep.subr.bf16.mxu0 0
        %1484 = vmatpush2.bf16.msra.mxu0 0
        %1485 = vmatprep.mubr.bf16.mxu0 0
        %1486 = vmatmul.mubr.bf16.gmra.mxu0 %v1448
        %v1487 = vpop.f32.mrf.mxu0
        %v1488 = vadd.f32 0.0, %v1487
        %v1489 = vpop.f32.mrf.mxu0
        %v1490 = vpop.f32.mrf.mxu0
        %v1491 = vpop.f32.mrf.mxu0
        %1492 = vdwg.mxu0
        %v1493 = vrcp.pop %v1394
        %v1494 = vrcp.pop %v1397
        %v1495 = vmul.f32 %v1442, %v1493
        %v1496 = vmul.f32 %v1488, %v1494
        %v1513 = vunpack.c.l.b16 %v1253
        %v1514 = vunpack.c.l.b16 %v1254
        %v1515 = vunpack.c.l.b16 %v1255
        %v1516 = vunpack.c.l.b16 %v1256
        %v1517 = vunpack.c.l.b16 %v1257
        %v1518 = vunpack.c.l.b16 %v1258
        %v1519 = vunpack.c.l.b16 %v1259
        %v1520 = vunpack.c.l.b16 %v1260
        %v1521 = vunpack.c.l.b16 %v1261
        %v1522 = vunpack.c.l.b16 %v1262
        %v1523 = vunpack.c.l.b16 %v1263
        %v1524 = vunpack.c.l.b16 %v1264
        %v1525 = vunpack.c.l.b16 %v1265
        %v1526 = vunpack.c.l.b16 %v1266
        %v1527 = vunpack.c.l.b16 %v1267
        %v1528 = vunpack.c.l.b16 %v1268
        %v1529 = vpack.c.b16 %v1514, %v1513
        %v1530 = vpack.c.b16 %v1516, %v1515
        %v1531 = vpack.c.b16 %v1518, %v1517
        %v1532 = vpack.c.b16 %v1520, %v1519
        %v1533 = vpack.c.b16 %v1522, %v1521
        %v1534 = vpack.c.b16 %v1524, %v1523
        %v1535 = vpack.c.b16 %v1526, %v1525
        %v1536 = vpack.c.b16 %v1528, %v1527
        %1545 = vmatprep.subr.bf16.mxu0 0
        %1546 = vmatpush1.bf16.msra.mxu0 %v1536
        %1547 = vmatprep.subr.bf16.mxu0 0
        %1548 = vmatpush1.bf16.msra.mxu0 %v1535
        %1549 = vmatprep.subr.bf16.mxu0 0
        %1550 = vmatpush1.bf16.msra.mxu0 %v1534
        %1551 = vmatprep.subr.bf16.mxu0 0
        %1552 = vmatpush1.bf16.msra.mxu0 %v1533
        %1553 = vmatprep.subr.bf16.mxu0 0
        %1554 = vmatpush1.bf16.msra.mxu0 %v1532
        %1555 = vmatprep.subr.bf16.mxu0 0
        %1556 = vmatpush1.bf16.msra.mxu0 %v1531
        %1557 = vmatprep.subr.bf16.mxu0 0
        %1558 = vmatpush1.bf16.msra.mxu0 %v1530
        %1559 = vmatprep.subr.bf16.mxu0 0
        %1560 = vmatpush1.bf16.msra.mxu0 %v1529
        %1561 = vmatprep.subr.bf16.mxu0 0
        %1562 = vmatpush2.bf16.msra.mxu0 0
        %1563 = vmatprep.subr.bf16.mxu0 0
        %1564 = vmatpush2.bf16.msra.mxu0 0
        %1565 = vmatprep.subr.bf16.mxu0 0
        %1566 = vmatpush2.bf16.msra.mxu0 0
        %1567 = vmatprep.subr.bf16.mxu0 0
        %1568 = vmatpush2.bf16.msra.mxu0 0
        %1569 = vmatprep.subr.bf16.mxu0 0
        %1570 = vmatpush2.bf16.msra.mxu0 0
        %1571 = vmatprep.subr.bf16.mxu0 0
        %1572 = vmatpush2.bf16.msra.mxu0 0
        %1573 = vmatprep.subr.bf16.mxu0 0
        %1574 = vmatpush2.bf16.msra.mxu0 0
        %1575 = vmatprep.subr.bf16.mxu0 0
        %1576 = vmatpush2.bf16.msra.mxu0 0
        %1577 = vmatprep.mubr.bf16.mxu0 0
        %1578 = vmatmul.mubr.bf16.gmra.mxu0 %v1249
        %v1579 = vpop.f32.mrf.mxu0
        %v1580 = vadd.f32 0.0, %v1579
        %v1581 = vpop.f32.mrf.mxu0
        %v1582 = vpop.f32.mrf.mxu0
        %v1583 = vpop.f32.mrf.mxu0
        %1584 = vdwg.mxu0
        %v1601 = vunpack.c.l.b16 %v1269
        %v1602 = vunpack.c.l.b16 %v1270
        %v1603 = vunpack.c.l.b16 %v1271
        %v1604 = vunpack.c.l.b16 %v1272
        %v1605 = vunpack.c.l.b16 %v1273
        %v1606 = vunpack.c.l.b16 %v1274
        %v1607 = vunpack.c.l.b16 %v1275
        %v1608 = vunpack.c.l.b16 %v1276
        %v1609 = vunpack.c.l.b16 %v1277
        %v1610 = vunpack.c.l.b16 %v1278
        %v1611 = vunpack.c.l.b16 %v1279
        %v1612 = vunpack.c.l.b16 %v1280
        %v1613 = vunpack.c.l.b16 %v1281
        %v1614 = vunpack.c.l.b16 %v1282
        %v1615 = vunpack.c.l.b16 %v1283
        %v1616 = vunpack.c.l.b16 %v1284
        %v1617 = vpack.c.b16 %v1602, %v1601
        %v1618 = vpack.c.b16 %v1604, %v1603
        %v1619 = vpack.c.b16 %v1606, %v1605
        %v1620 = vpack.c.b16 %v1608, %v1607
        %v1621 = vpack.c.b16 %v1610, %v1609
        %v1622 = vpack.c.b16 %v1612, %v1611
        %v1623 = vpack.c.b16 %v1614, %v1613
        %v1624 = vpack.c.b16 %v1616, %v1615
        %1633 = vmatprep.subr.bf16.mxu0 0
        %1634 = vmatpush1.bf16.msra.mxu0 %v1624
        %1635 = vmatprep.subr.bf16.mxu0 0
        %1636 = vmatpush1.bf16.msra.mxu0 %v1623
        %1637 = vmatprep.subr.bf16.mxu0 0
        %1638 = vmatpush1.bf16.msra.mxu0 %v1622
        %1639 = vmatprep.subr.bf16.mxu0 0
        %1640 = vmatpush1.bf16.msra.mxu0 %v1621
        %1641 = vmatprep.subr.bf16.mxu0 0
        %1642 = vmatpush1.bf16.msra.mxu0 %v1620
        %1643 = vmatprep.subr.bf16.mxu0 0
        %1644 = vmatpush1.bf16.msra.mxu0 %v1619
        %1645 = vmatprep.subr.bf16.mxu0 0
        %1646 = vmatpush1.bf16.msra.mxu0 %v1618
        %1647 = vmatprep.subr.bf16.mxu0 0
        %1648 = vmatpush1.bf16.msra.mxu0 %v1617
        %1649 = vmatprep.subr.bf16.mxu0 0
        %1650 = vmatpush2.bf16.msra.mxu0 0
        %1651 = vmatprep.subr.bf16.mxu0 0
        %1652 = vmatpush2.bf16.msra.mxu0 0
        %1653 = vmatprep.subr.bf16.mxu0 0
        %1654 = vmatpush2.bf16.msra.mxu0 0
        %1655 = vmatprep.subr.bf16.mxu0 0
        %1656 = vmatpush2.bf16.msra.mxu0 0
        %1657 = vmatprep.subr.bf16.mxu0 0
        %1658 = vmatpush2.bf16.msra.mxu0 0
        %1659 = vmatprep.subr.bf16.mxu0 0
        %1660 = vmatpush2.bf16.msra.mxu0 0
        %1661 = vmatprep.subr.bf16.mxu0 0
        %1662 = vmatpush2.bf16.msra.mxu0 0
        %1663 = vmatprep.subr.bf16.mxu0 0
        %1664 = vmatpush2.bf16.msra.mxu0 0
        %1665 = vmatprep.mubr.bf16.mxu0 0
        %1666 = vmatmul.mubr.bf16.gmra.mxu0 %v1250
        %v1667 = vpop.f32.mrf.mxu0
        %v1668 = vadd.f32 0.0, %v1667
        %v1669 = vpop.f32.mrf.mxu0
        %v1670 = vpop.f32.mrf.mxu0
        %v1671 = vpop.f32.mrf.mxu0
        %1672 = vdwg.mxu0
        %v1673 = vld [vmem:[%s365] sm:$0x3]
        %v1674 = vld [vmem:[%s365 + $0x2] sm:$0x3]
        %vm1675 = vnez %v1673
        %vm1676 = vnez %v1674
        %v1677 = vsel %vm1675, 16843009, 0
        %v1678 = vsel %vm1676, 16843009, 0
        %v1679 = vunpack.c.0.s8 %v1677
        %v1680 = vunpack.c.0.s8 %v1678
        %vm1681 = vcmp.ne.s32.totalorder %v1679, 0
        %vm1682 = vcmp.ne.s32.totalorder %v1680, 0
        %v1683 = vsel %vm1681, %v1580, -1e+09
        %v1684 = vsel %vm1682, %v1668, -1e+09
        %vm1685 = vcmask 130048
        %v1686 = vsel %vm1685, %v1683, -inf
        %1687 = vmax.xlane.f32.xlu0 %v1686
        %v1688 = vpop.xlane.xlu0 %1687
        %v1689 = vsel %vm1685, %v1684, -inf
        %1690 = vmax.xlane.f32.xlu0 %v1689
        %v1691 = vpop.xlane.xlu0 %1690
        %v1692 = vsub.f32 %v1683, %v1688
        %v1693 = vsub.f32 %v1684, %v1691
        %v1694 = vmul.f32 %v1692, 0.17677669
        %v1695 = vmul.f32 %v1693, 0.17677669
        %v1696 = vmul.f32 %v1694, 1.442695
        %v1697 = vpow.pop %v1696
        %v1698 = vmul.f32 %v1695, 1.442695
        %v1699 = vpow.pop %v1698
        %v1700 = vsel %vm1685, %v1697, 0.0
        %1701 = vadd.xlane.f32.xlu0 %v1700
        %v1702 = vpop.xlane.xlu0 %1701
        %v1703 = vsel %vm1685, %v1699, 0.0
        %1704 = vadd.xlane.f32.xlu0 %v1703
        %v1705 = vpop.xlane.xlu0 %1704
        %v1706 = vpack.c.bf16 %v1697, %v1697
        %v1707 = vpack.c.bf16 %v1699, %v1699
        %v1709 = vsel %vm1685, %v1706, 0
        %v1712 = vsel %vm1685, %v1529, 0
        %v1715 = vsel %vm1685, %v1530, 0
        %v1718 = vsel %vm1685, %v1531, 0
        %v1721 = vsel %vm1685, %v1532, 0
        %v1724 = vsel %vm1685, %v1533, 0
        %v1727 = vsel %vm1685, %v1534, 0
        %v1730 = vsel %vm1685, %v1535, 0
        %v1733 = vsel %vm1685, %v1536, 0
        %1735 = vmatprep.subr.bf16.mxu0 0
        %1736 = vmatpush1.bf16.xpose.msra.mxu0 %v1733
        %1737 = vmatprep.subr.bf16.mxu0 0
        %1738 = vmatpush1.bf16.xpose.msra.mxu0 %v1730
        %1739 = vmatprep.subr.bf16.mxu0 0
        %1740 = vmatpush1.bf16.xpose.msra.mxu0 %v1727
        %1741 = vmatprep.subr.bf16.mxu0 0
        %1742 = vmatpush1.bf16.xpose.msra.mxu0 %v1724
        %1743 = vmatprep.subr.bf16.mxu0 0
        %1744 = vmatpush1.bf16.xpose.msra.mxu0 %v1721
        %1745 = vmatprep.subr.bf16.mxu0 0
        %1746 = vmatpush1.bf16.xpose.msra.mxu0 %v1718
        %1747 = vmatprep.subr.bf16.mxu0 0
        %1748 = vmatpush1.bf16.xpose.msra.mxu0 %v1715
        %1749 = vmatprep.subr.bf16.mxu0 0
        %1750 = vmatpush1.bf16.xpose.msra.mxu0 %v1712
        %1751 = vmatprep.subr.bf16.mxu0 0
        %1752 = vmatpush2.bf16.xpose.msra.mxu0 0
        %1753 = vmatprep.subr.bf16.mxu0 0
        %1754 = vmatpush2.bf16.xpose.msra.mxu0 0
        %1755 = vmatprep.subr.bf16.mxu0 0
        %1756 = vmatpush2.bf16.xpose.msra.mxu0 0
        %1757 = vmatprep.subr.bf16.mxu0 0
        %1758 = vmatpush2.bf16.xpose.msra.mxu0 0
        %1759 = vmatprep.subr.bf16.mxu0 0
        %1760 = vmatpush2.bf16.xpose.msra.mxu0 0
        %1761 = vmatprep.subr.bf16.mxu0 0
        %1762 = vmatpush2.bf16.xpose.msra.mxu0 0
        %1763 = vmatprep.subr.bf16.mxu0 0
        %1764 = vmatpush2.bf16.xpose.msra.mxu0 0
        %1765 = vmatprep.subr.bf16.mxu0 0
        %1766 = vmatpush2.bf16.xpose.msra.mxu0 0
        %1767 = vmatprep.mubr.bf16.mxu0 0
        %1768 = vmatmul.mubr.bf16.gmra.mxu0 %v1709
        %v1769 = vpop.f32.mrf.mxu0
        %v1770 = vadd.f32 0.0, %v1769
        %v1771 = vpop.f32.mrf.mxu0
        %v1772 = vpop.f32.mrf.mxu0
        %v1773 = vpop.f32.mrf.mxu0
        %1774 = vdwg.mxu0
        %v1776 = vsel %vm1685, %v1707, 0
        %v1779 = vsel %vm1685, %v1617, 0
        %v1782 = vsel %vm1685, %v1618, 0
        %v1785 = vsel %vm1685, %v1619, 0
        %v1788 = vsel %vm1685, %v1620, 0
        %v1791 = vsel %vm1685, %v1621, 0
        %v1794 = vsel %vm1685, %v1622, 0
        %v1797 = vsel %vm1685, %v1623, 0
        %v1800 = vsel %vm1685, %v1624, 0
        %1802 = vmatprep.subr.bf16.mxu0 0
        %1803 = vmatpush1.bf16.xpose.msra.mxu0 %v1800
        %1804 = vmatprep.subr.bf16.mxu0 0
        %1805 = vmatpush1.bf16.xpose.msra.mxu0 %v1797
        %1806 = vmatprep.subr.bf16.mxu0 0
        %1807 = vmatpush1.bf16.xpose.msra.mxu0 %v1794
        %1808 = vmatprep.subr.bf16.mxu0 0
        %1809 = vmatpush1.bf16.xpose.msra.mxu0 %v1791
        %1810 = vmatprep.subr.bf16.mxu0 0
        %1811 = vmatpush1.bf16.xpose.msra.mxu0 %v1788
        %1812 = vmatprep.subr.bf16.mxu0 0
        %1813 = vmatpush1.bf16.xpose.msra.mxu0 %v1785
        %1814 = vmatprep.subr.bf16.mxu0 0
        %1815 = vmatpush1.bf16.xpose.msra.mxu0 %v1782
        %1816 = vmatprep.subr.bf16.mxu0 0
        %1817 = vmatpush1.bf16.xpose.msra.mxu0 %v1779
        %1818 = vmatprep.subr.bf16.mxu0 0
        %1819 = vmatpush2.bf16.xpose.msra.mxu0 0
        %1820 = vmatprep.subr.bf16.mxu0 0
        %1821 = vmatpush2.bf16.xpose.msra.mxu0 0
        %1822 = vmatprep.subr.bf16.mxu0 0
        %1823 = vmatpush2.bf16.xpose.msra.mxu0 0
        %1824 = vmatprep.subr.bf16.mxu0 0
        %1825 = vmatpush2.bf16.xpose.msra.mxu0 0
        %1826 = vmatprep.subr.bf16.mxu0 0
        %1827 = vmatpush2.bf16.xpose.msra.mxu0 0
        %1828 = vmatprep.subr.bf16.mxu0 0
        %1829 = vmatpush2.bf16.xpose.msra.mxu0 0
        %1830 = vmatprep.subr.bf16.mxu0 0
        %1831 = vmatpush2.bf16.xpose.msra.mxu0 0
        %1832 = vmatprep.subr.bf16.mxu0 0
        %1833 = vmatpush2.bf16.xpose.msra.mxu0 0
        %1834 = vmatprep.mubr.bf16.mxu0 0
        %1835 = vmatmul.mubr.bf16.gmra.mxu0 %v1776
        %v1836 = vpop.f32.mrf.mxu0
        %v1837 = vadd.f32 0.0, %v1836
        %v1838 = vpop.f32.mrf.mxu0
        %v1839 = vpop.f32.mrf.mxu0
        %v1840 = vpop.f32.mrf.mxu0
        %1841 = vdwg.mxu0
        %v1842 = vrcp.pop %v1702
        %v1843 = vrcp.pop %v1705
        %v1844 = vmul.f32 %v1770, %v1842
        %v1845 = vmul.f32 %v1837, %v1843
        %v1846 = vadd.f32 %v1495, %v1844
        %v1847 = vadd.f32 %v1496, %v1845
        %v1848 = vadd.f32 %v1846, 0.5
        %v1849 = vadd.f32 %v1847, 0.5
        %v1850 = vmax.f32 %v1848, 0.0
        %v1851 = vmax.f32 %v1849, 0.0
        %v1852 = vmin.f32 %v1850, 63.0
        %v1853 = vmin.f32 %v1851, 63.0
        %v1854 = vcvt.f32.s32.to.zero.pseudo %v1852
        %v1855 = vcvt.f32.s32.to.zero.pseudo %v1853
        %1856 = vst [vmem:[%s437] sm:$0xff] %v1854
        %1857 = vst [vmem:[%s437 + $0x8] sm:$0xff] %v1855
        %s1858 = smul.u32 2, %s29
        %p1859 = scmp.lt.s32.totalorder %s1858, 3
        %s1860 = scalar_select %p1859, %s1858, 3
        %p1861 = scmp.lt.s32.totalorder %s30, 0
        %s1862 = scalar_select %p1861, %s30, 0
        %s1863 = sadd.s32 %s1862, %s1860
        %s1864 = smul.addr %s1863, 8
        %s1865 = scalar_lea.vmem %s8, %s1864
        // Predicated region
        $region65: #{cross_attention_forward.1} parent=51 // pred_check
          %p1866 = pneg %p249
        $region66: #{cross_attention_forward.1} parent=51 // pred_check_branch
          %1868 = sbr.rel (%p1866) target = $region68
        $region67: #{cross_attention_forward.1} parent=51 // pred_region
          %s1869 = smul.u32 2, %s29
        $region68: #{cross_attention_forward.1} parent=51 // pred_fallthru
          _
      $region52: #{cross_attention_forward.1} parent=5 // pred_fallthru
        _
      %p1870 = scmp.le.s32.totalorder 2, %s20
      // Predicated region
      $region69: #{cross_attention_forward.1} parent=5 // pred_check
        %p1871 = pneg %p1870
      $region70: #{cross_attention_forward.1} parent=5 // pred_check_branch
        %1873 = sbr.rel (%p1871) target = $region72
      $region71: #{cross_attention_forward.1} parent=5 // pred_region
        %s1874 = ssub.s32 %s20, 2
        // Predicated region
        $region73: #{cross_attention_forward.1} parent=71 // pred_check
          %p1875 = pneg %p255
        $region74: #{cross_attention_forward.1} parent=71 // pred_check_branch
          %1877 = sbr.rel (%p1875) target = $region76
        $region75: #{cross_attention_forward.1} parent=71 // pred_region
          %s1878 = smul.u32 2, %s31
          %p1879 = scmp.lt.s32.totalorder %s1878, 3
          %s1880 = scalar_select %p1879, %s1878, 3
          %p1881 = scmp.lt.s32.totalorder %s32, 0
          %s1882 = scalar_select %p1881, %s32, 0
          %s1883 = sadd.s32 %s1882, %s1880
          %s1884 = smul.addr %s1883, 8
          %s1885 = scalar_lea.vmem %s8, %s1884
        $region76: #{cross_attention_forward.1} parent=71 // pred_fallthru
          _
      $region72: #{cross_attention_forward.1} parent=5 // pred_fallthru
        _
    $region6: #{cross_attention_forward.1} parent=1 // loop_footer
      %s24 = sadd.s32 1, %s20
    $region7: #{cross_attention_forward.1} parent=1 // loop_footer_branch
      %19 = sbr.rel target = $region3
    $region8: #{cross_attention_forward.1} parent=1 // loop_exit
      _
    %1886 = vsyncpa [#allocation5], 1
    %s1887 = scalar_lea.sflag [#allocation5], 1
    %1888 = vsyncpa %s1887, 1
    %1889 = vsyncpa [#allocation7], 1
    %s1890 = scalar_lea.sflag [#allocation7], 1
    %1891 = vsyncpa %s1890, 1

</llo_original>
